<compile_context>
chip_gen: v7x
topology: tpu7x:2x2x1
jax: 0.10.0
libtpu: 0.0.40
codegen_flags: <defaults>
</compile_context>

<pallas_src>
import functools
import math

import jax
import jax.numpy as jnp
from jax import lax
from jax.experimental import pallas as pl
from jax.experimental.pallas import tpu as pltpu

NUM_GROUPS = 32      # nn.GroupNorm(32, features) hard-coded in the module
GN_EPS = 1e-5        # nn.GroupNorm default eps

# Applied per-dot below (only a handful of well-shaped matmuls remain).
MATMUL_PRECISION = jax.lax.Precision.HIGHEST


def _dot(a, b):
    return jnp.dot(a, b, precision=MATMUL_PRECISION,
                   preferred_element_type=jnp.float32)


# ----------------------------------------------------------------------------
# Single fused kernel: GroupNorm + 2x MultiheadAttention + Dense + residual.
# ----------------------------------------------------------------------------
def _attn_block_kernel(x_ref, gamma_ref, beta_ref,
                       wq_ref, wkv_ref, wo_ref, bq_ref, bkv_ref, bo_ref,
                       wd_ref, bd_ref, out_ref,
                       *, attn_type, num_heads, B, C, D, HW, num_groups, eps):
    f32 = jnp.float32
    E = HW                       # attention embedding dim == H*W
    E2 = 2 * E                   # fused lane width (frame 0 | frame 1)
    L = B                        # MHA sequence length == video batch
    BC = B * C
    hd = E // num_heads
    gs = C // num_groups         # GroupNorm channels per group (flat view)
    DHW = D * HW                 # == E2 (D == 2)
    inv_sqrt2 = 1.0 / math.sqrt(2.0)

    x = x_ref[...].astype(f32)                                   # (BC, 2E)

    # ---------------- GroupNorm -------------------------------------------
    # The module reshapes (B,C,D,H,W) -> (B*D,C,H,W) by flat reinterpretation,
    # so a normalization group is `gs` consecutive values of r = m*D + d
    # (m = b*C + c, d = frame).  gs == 1 -> stats per (row, frame half);
    # even gs -> stats over gs/D consecutive full rows (pooled if gs/D > 1).
    if gs == 1:
        halves = []
        for d in range(D):
            xd = x[:, d * E:(d + 1) * E]
            mu = jnp.sum(xd, axis=-1, keepdims=True) * (1.0 / HW)
            xc = xd - mu
            var = jnp.sum(xc * xc, axis=-1, keepdims=True) * (1.0 / HW)
            halves.append(xc * lax.rsqrt(var + eps)
                          * gamma_ref[:, d:d + 1] + beta_ref[:, d:d + 1])
        xn = jnp.concatenate(halves, axis=1)                     # (BC, 2E)
    else:
        gsm = gs // D                                            # rows per group
        if gsm == 1:
            pool_rows = lambda col: col
        else:
            # Small 0/1 pool / broadcast maps (never an (R,R) map).
            G = BC // gsm
            pool = (lax.broadcasted_iota(jnp.int32, (G, BC), 1) // gsm
                    == lax.broadcasted_iota(jnp.int32, (G, BC), 0)).astype(f32)
            bcast = (lax.broadcasted_iota(jnp.int32, (BC, G), 0) // gsm
                     == lax.broadcasted_iota(jnp.int32, (BC, G), 1)).astype(f32)
            pool_rows = lambda col: _dot(bcast, _dot(pool, col))
        inv_n = 1.0 / (gs * HW)
        mu = pool_rows(jnp.sum(x, axis=-1, keepdims=True)) * inv_n
        xc = x - mu
        var = pool_rows(jnp.sum(xc * xc, axis=-1, keepdims=True)) * inv_n
        xf = xc * lax.rsqrt(var + eps)
        xn = jnp.concatenate(
            [xf[:, d * E:(d + 1) * E] * gamma_ref[:, d:d + 1] + beta_ref[:, d:d + 1]
             for d in range(D)], axis=1)                         # (BC, 2E)

    # ---------------- projections (both branches fused, block-diag weights) --
    # lanes [0:E] = branch 1 (frame 0 query), lanes [E:2E] = branch 2.
    # 'cross' swaps the K/V source frames: a half-width roll (direction-free).
    kv_src = xn if attn_type == "self" else pltpu.roll(xn, E, axis=1)
    q = _dot(xn, wq_ref[...]) + bq_ref[...]                      # (BC, 2E)
    kvp = _dot(kv_src, wkv_ref[...]) + bkv_ref[...]              # (BC, 4E)
    k = kvp[:, :E2]
    v = kvp[:, E2:]

    # ---------------- per-head XLU segmented reduce + softmax ----------------
    lane_mod = lax.broadcasted_iota(jnp.int32, (C, E2), 1) % hd
    steps = []
    s = 1
    while s < hd:
        steps.append((lane_mod >= s, s, (s - hd) % E2))
        s *= 2

    def head_sum(t):
        # Sum within each aligned hd-lane head segment; result broadcast to
        # every lane of its segment (log2(hd) masked roll+add steps on XLU).
        for mask, sh_in, sh_wrap in steps:
            t = t + jnp.where(mask,
                              pltpu.roll(t, sh_in, axis=1),
                              pltpu.roll(t, sh_wrap, axis=1))
        return t

    o_rows = []
    for i in range(L):
        qi = q[i * C:(i + 1) * C, :]
        # scores per (channel, head), already broadcast across head lanes;
        # 1/sqrt(hd) score scale was folded into Wq/bq by the wrapper.
        sc = [head_sum(qi * k[j * C:(j + 1) * C, :]) for j in range(L)]
        smax = sc[0]
        for j in range(1, L):
            smax = jnp.maximum(smax, sc[j])
        ex = [jnp.exp(s_j - smax) for s_j in sc]
        den = ex[0]
        for j in range(1, L):
            den = den + ex[j]
        inv = pl.reciprocal(den, approx=False)   # approx=True in production (EUP)
        oi = (ex[0] * inv) * v[0:C, :]
        for j in range(1, L):
            oi = oi + (ex[j] * inv) * v[j * C:(j + 1) * C, :]
        o_rows.append(oi)
    attn = jnp.concatenate(o_rows, axis=0)                       # (BC, 2E)
    attn = _dot(attn, wo_ref[...]) + bo_ref[...]                 # out-projection

    # ---------------- Dense over channels, batched over (batch, frame) lanes -
    A = jnp.concatenate([attn[b * C:(b + 1) * C, :] for b in range(B)], axis=1)
    Z = _dot(wd_ref[...], A) + bd_ref[...]                       # (C, B*2E)

    # ---------------- residual + 1/sqrt(2), written straight to out_ref ------
    for b in range(B):
        zb = Z[:, b * DHW:(b + 1) * DHW]
        out_ref[b * C:(b + 1) * C, :] = (
            (zb + x[b * C:(b + 1) * C, :]) * inv_sqrt2).astype(out_ref.dtype)


# ----------------------------------------------------------------------------
# Wrapper: weight prep + single VMEM-resident pallas_call.
# ----------------------------------------------------------------------------
def attn_block_forward(h_in, params, *, attn_type, num_heads):
    B, C, D, H, W = h_in.shape
    if attn_type not in ("self", "cross"):
        raise NotImplementedError(attn_type)
    assert D == 2, "AttnBlock.forward uses exactly frames 0 and 1"
    HW = H * W
    E = HW
    assert C % NUM_GROUPS == 0, "GroupNorm(32, C) requires C % 32 == 0"
    gs = C // NUM_GROUPS
    # TODO(synk): odd gs > 1 (C = 96, 160, ...) makes GroupNorm groups straddle
    # a frame half in the fused (B*C, D*HW) layout; not supported here.
    assert gs == 1 or gs % D == 0, "unsupported features / GroupNorm combination"
    assert E % num_heads == 0
    hd = E // num_heads
    assert hd & (hd - 1) == 0, "head_dim must be a power of two (roll-based reduce)"
    BC = B * C

    # Row-major flat view shared with the output: rows (b, c), lane halves = frames.
    x2 = h_in.reshape(BC, D * HW)

    # GroupNorm affine params per (row, frame): the module's flat reshape maps
    # element (b, c, d) to GN channel c' = (c*D + d) mod C.
    c_of_m = jnp.arange(BC, dtype=jnp.int32) % C
    gamma_cols = jnp.stack(
        [params["gn_w"][(c_of_m * D + d) % C] for d in range(D)], axis=1)
    beta_cols = jnp.stack(
        [params["gn_b"][(c_of_m * D + d) % C] for d in range(D)], axis=1)

    scale = 1.0 / math.sqrt(hd)

    def branch(w_in, b_in, w_out, b_out):
        # Pre-transpose so the kernel computes x @ W; fold the 1/sqrt(hd)
        # score scale into the Q projection.
        return (w_in[:E].T * scale, w_in[E:2 * E].T, w_in[2 * E:].T,
                b_in[:E] * scale, b_in[E:2 * E], b_in[2 * E:],
                w_out.T, b_out)

    wq1, wk1, wv1, bq1, bk1, bv1, wo1, bo1 = branch(
        params["in_w1"], params["in_b1"], params["out_w1"], params["out_b1"])
    wq2, wk2, wv2, bq2, bk2, bv2, wo2, bo2 = branch(
        params["in_w2"], params["in_b2"], params["out_w2"], params["out_b2"])

    def blkdiag(a, b):
        z = jnp.zeros((E, E), a.dtype)
        return jnp.concatenate(
            [jnp.concatenate([a, z], axis=1), jnp.concatenate([z, b], axis=1)],
            axis=0)

    wq = blkdiag(wq1, wq2)                                             # (2E, 2E)
    wkv = jnp.concatenate([blkdiag(wk1, wk2), blkdiag(wv1, wv2)], 1)   # (2E, 4E)
    wo = blkdiag(wo1, wo2)                                             # (2E, 2E)
    bq = jnp.concatenate([bq1, bq2]).reshape(1, 2 * E)
    bkv = jnp.concatenate([bk1, bk2, bv1, bv2]).reshape(1, 4 * E)
    bo = jnp.concatenate([bo1, bo2]).reshape(1, 2 * E)

    kernel = functools.partial(
        _attn_block_kernel, attn_type=attn_type, num_heads=num_heads,
        B=B, C=C, D=D, HW=HW, num_groups=NUM_GROUPS, eps=GN_EPS)

    out = pl.pallas_call(
        kernel,
        out_shape=jax.ShapeDtypeStruct((BC, D * HW), h_in.dtype),
        compiler_params=pltpu.CompilerParams(vmem_limit_bytes=32 * 1024 * 1024),
    )(x2, gamma_cols, beta_cols, wq, wkv, wo, bq, bkv, bo,
      params["dense_w"], params["dense_b"].reshape(C, 1))

    return out.reshape(B, C, D, H, W)


# ----------------------------------------------------------------------------
# Pure-JAX reference (mirrors the PyTorch module exactly) for verification.
# ----------------------------------------------------------------------------
def ref_forward(h_in, p, *, attn_type, num_heads):
    with jax.default_matmul_precision("highest"):
        B, C, D, H, W = h_in.shape
        HW = H * W
        G = NUM_GROUPS
        x = h_in.reshape(B * D, C, H, W)
        xg = x.reshape(B * D, G, (C // G) * H * W)
        mean = xg.mean(-1, keepdims=True)
        var = ((xg - mean) ** 2).mean(-1, keepdims=True)
        xn = (xg - mean) / jnp.sqrt(var + GN_EPS)
        xn = xn.reshape(B * D, C, H, W)
        xn = xn * p["gn_w"][None, :, None, None] + p["gn_b"][None, :, None, None]
        h = xn.reshape(B, C, D, H, W)
        h0 = h[:, :, 0].reshape(B, C, HW)
        h1 = h[:, :, 1].reshape(B, C, HW)

        def mha(q, kv, w_in, b_in, w_out, b_out):
            E = q.shape[-1]
            hdim = E // num_heads
            wq, wk, wv = w_in[:E], w_in[E:2 * E], w_in[2 * E:]
            bq, bk, bv = b_in[:E], b_in[E:2 * E], b_in[2 * E:]
            Q = q @ wq.T + bq
            K = kv @ wk.T + bk
            V = kv @ wv.T + bv
            Lq, N, _ = Q.shape
            Qh = Q.reshape(Lq, N, num_heads, hdim)
            Kh = K.reshape(Lq, N, num_heads, hdim)
            Vh = V.reshape(Lq, N, num_heads, hdim)
            s = jnp.einsum("inhd,jnhd->nhij", Qh, Kh) / math.sqrt(hdim)
            a = jax.nn.softmax(s, axis=-1)
            o = jnp.einsum("nhij,jnhd->inhd", a, Vh).reshape(Lq, N, E)
            return o @ w_out.T + b_out

        if attn_type == "self":
            a0 = mha(h0, h0, p["in_w1"], p["in_b1"], p["out_w1"], p["out_b1"])
            a1 = mha(h1, h1, p["in_w2"], p["in_b2"], p["out_w2"], p["out_b2"])
        elif attn_type == "cross":
            a0 = mha(h0, h1, p["in_w1"], p["in_b1"], p["out_w1"], p["out_b1"])
            a1 = mha(h1, h0, p["in_w2"], p["in_b2"], p["out_w2"], p["out_b2"])
        else:
            raise NotImplementedError(attn_type)

        hs = jnp.stack([a0, a1], axis=2).reshape(B, C, D, H, W)
        hp = jnp.transpose(hs, (0, 2, 3, 4, 1))
        hdout = hp @ p["dense_w"].T + p["dense_b"]
        hdout = jnp.transpose(hdout, (0, 4, 1, 2, 3))
        return (hdout + h_in) / math.sqrt(2.0)


def init_params(key, features, attn_dims):
    C, E = features, attn_dims
    ks = jax.random.split(key, 12)
    n = lambda k, shape, s: (jax.random.normal(k, shape, dtype=jnp.float32) * s)
    return {
        "gn_w": 1.0 + n(ks[0], (C,), 0.2),
        "gn_b": n(ks[1], (C,), 0.1),
        "in_w1": n(ks[2], (3 * E, E), 1.0 / math.sqrt(E)),
        "in_b1": n(ks[3], (3 * E,), 0.02),
        "out_w1": n(ks[4], (E, E), 1.0 / math.sqrt(E)),
        "out_b1": n(ks[5], (E,), 0.02),
        "in_w2": n(ks[6], (3 * E, E), 1.0 / math.sqrt(E)),
        "in_b2": n(ks[7], (3 * E,), 0.02),
        "out_w2": n(ks[8], (E, E), 1.0 / math.sqrt(E)),
        "out_b2": n(ks[9], (E,), 0.02),
        "dense_w": n(ks[10], (C, C), 1.0 / math.sqrt(C)),
        "dense_b": n(ks[11], (C,), 0.02),
    }


if __name__ == "__main__":
    # Three configs exercise: gs==1, even gs without pooling, even gs with the
    # row-group pooling matmuls, L=2 and L=4, and both attention types.
    configs = [
        dict(attn_type="cross", B=2, C=32, H=8, W=8, heads=4),
        dict(attn_type="self",  B=4, C=64, H=8, W=8, heads=4),
        dict(attn_type="cross", B=2, C=128, H=8, W=8, heads=4),
    ]
    key = jax.random.PRNGKey(0)
    for cfg in configs:
        key, kx, kp = jax.random.split(key, 3)
        B, C, H, W = cfg["B"], cfg["C"], cfg["H"], cfg["W"]
        D = 2
        attn_dims = H * W
        h_in = jax.random.normal(kx, (B, C, D, H, W), dtype=jnp.float32)
        params = init_params(kp, C, attn_dims)

        fwd = jax.jit(functools.partial(
            attn_block_forward, attn_type=cfg["attn_type"], num_heads=cfg["heads"]))
        out = jax.block_until_ready(fwd(h_in, params))

        ref = ref_forward(h_in, params, attn_type=cfg["attn_type"],
                          num_heads=cfg["heads"])
        assert out.shape == h_in.shape
        if not bool(jnp.allclose(out, ref, atol=1e-3, rtol=1e-3)):
            err = float(jnp.max(jnp.abs(out - ref)))
            raise AssertionError(
                f"Pallas output mismatch vs reference for {cfg}, max abs err = {err}")
    print("KERNEL_OK")
</pallas_src>

<mosaic_0001>
module attributes {stable_mosaic.version = 11 : i64} {
  func.func @_attn_block_kernel(%arg0: memref<64x128xf32, #tpu.memory_space<vmem>>, %arg1: memref<64x2xf32, #tpu.memory_space<vmem>>, %arg2: memref<64x2xf32, #tpu.memory_space<vmem>>, %arg3: memref<128x128xf32, #tpu.memory_space<vmem>>, %arg4: memref<128x256xf32, #tpu.memory_space<vmem>>, %arg5: memref<128x128xf32, #tpu.memory_space<vmem>>, %arg6: memref<1x128xf32, #tpu.memory_space<vmem>>, %arg7: memref<1x256xf32, #tpu.memory_space<vmem>>, %arg8: memref<1x128xf32, #tpu.memory_space<vmem>>, %arg9: memref<32x32xf32, #tpu.memory_space<vmem>>, %arg10: memref<32x1xf32, #tpu.memory_space<vmem>>, %arg11: memref<64x128xf32, #tpu.memory_space<vmem>>) attributes {dimension_semantics = [], scalar_prefetch = 0 : i64, scratch_operands = 0 : i64, tpu.core_type = #tpu.core_type<tc>} {
    %c0 = arith.constant 0 : index
    %c0_0 = arith.constant 0 : index
    %0 = vector.load %arg0[%c0, %c0_0] : memref<64x128xf32, #tpu.memory_space<vmem>>, vector<64x128xf32>
    %1 = vector.extract_strided_slice %0 {offsets = [0, 0], sizes = [64, 64], strides = [1, 1]} : vector<64x128xf32> to vector<64x64xf32>
    %cst = arith.constant dense<0.000000e+00> : vector<64xf32>
    %2 = vector.multi_reduction <add>, %1, %cst [1] : vector<64x64xf32> to vector<64xf32>
    %3 = vector.shape_cast %2 : vector<64xf32> to vector<64x1xf32>
    %cst_1 = arith.constant 1.562500e-02 : f32
    %4 = vector.broadcast %cst_1 : f32 to vector<64x1xf32>
    %5 = arith.mulf %3, %4 : vector<64x1xf32>
    %6 = vector.broadcast %5 : vector<64x1xf32> to vector<64x64xf32>
    %7 = arith.subf %1, %6 : vector<64x64xf32>
    %8 = arith.mulf %7, %7 : vector<64x64xf32>
    %cst_2 = arith.constant dense<0.000000e+00> : vector<64xf32>
    %9 = vector.multi_reduction <add>, %8, %cst_2 [1] : vector<64x64xf32> to vector<64xf32>
    %10 = vector.shape_cast %9 : vector<64xf32> to vector<64x1xf32>
    %cst_3 = arith.constant 1.562500e-02 : f32
    %11 = vector.broadcast %cst_3 : f32 to vector<64x1xf32>
    %12 = arith.mulf %10, %11 : vector<64x1xf32>
    %cst_4 = arith.constant 9.99999974E-6 : f32
    %13 = vector.broadcast %cst_4 : f32 to vector<64x1xf32>
    %14 = arith.addf %12, %13 : vector<64x1xf32>
    %15 = math.rsqrt %14 : vector<64x1xf32>
    %16 = vector.broadcast %15 : vector<64x1xf32> to vector<64x64xf32>
    %17 = arith.mulf %7, %16 : vector<64x64xf32>
    %c0_5 = arith.constant 0 : index
    %c0_6 = arith.constant 0 : index
    %18 = vector.load %arg1[%c0_5, %c0_6] : memref<64x2xf32, #tpu.memory_space<vmem>>, vector<64x1xf32>
    %19 = vector.broadcast %18 : vector<64x1xf32> to vector<64x64xf32>
    %20 = arith.mulf %17, %19 : vector<64x64xf32>
    %c0_7 = arith.constant 0 : index
    %c0_8 = arith.constant 0 : index
    %21 = vector.load %arg2[%c0_7, %c0_8] : memref<64x2xf32, #tpu.memory_space<vmem>>, vector<64x1xf32>
    %22 = vector.broadcast %21 : vector<64x1xf32> to vector<64x64xf32>
    %23 = arith.addf %20, %22 : vector<64x64xf32>
    %24 = vector.extract_strided_slice %0 {offsets = [0, 64], sizes = [64, 64], strides = [1, 1]} : vector<64x128xf32> to vector<64x64xf32>
    %cst_9 = arith.constant dense<0.000000e+00> : vector<64xf32>
    %25 = vector.multi_reduction <add>, %24, %cst_9 [1] : vector<64x64xf32> to vector<64xf32>
    %26 = vector.shape_cast %25 : vector<64xf32> to vector<64x1xf32>
    %cst_10 = arith.constant 1.562500e-02 : f32
    %27 = vector.broadcast %cst_10 : f32 to vector<64x1xf32>
    %28 = arith.mulf %26, %27 : vector<64x1xf32>
    %29 = vector.broadcast %28 : vector<64x1xf32> to vector<64x64xf32>
    %30 = arith.subf %24, %29 : vector<64x64xf32>
    %31 = arith.mulf %30, %30 : vector<64x64xf32>
    %cst_11 = arith.constant dense<0.000000e+00> : vector<64xf32>
    %32 = vector.multi_reduction <add>, %31, %cst_11 [1] : vector<64x64xf32> to vector<64xf32>
    %33 = vector.shape_cast %32 : vector<64xf32> to vector<64x1xf32>
    %cst_12 = arith.constant 1.562500e-02 : f32
    %34 = vector.broadcast %cst_12 : f32 to vector<64x1xf32>
    %35 = arith.mulf %33, %34 : vector<64x1xf32>
    %cst_13 = arith.constant 9.99999974E-6 : f32
    %36 = vector.broadcast %cst_13 : f32 to vector<64x1xf32>
    %37 = arith.addf %35, %36 : vector<64x1xf32>
    %38 = math.rsqrt %37 : vector<64x1xf32>
    %39 = vector.broadcast %38 : vector<64x1xf32> to vector<64x64xf32>
    %40 = arith.mulf %30, %39 : vector<64x64xf32>
    %c0_14 = arith.constant 0 : index
    %c1 = arith.constant 1 : index
    %41 = vector.load %arg1[%c0_14, %c1] : memref<64x2xf32, #tpu.memory_space<vmem>>, vector<64x1xf32>
    %42 = vector.broadcast %41 : vector<64x1xf32> to vector<64x64xf32>
    %43 = arith.mulf %40, %42 : vector<64x64xf32>
    %c0_15 = arith.constant 0 : index
    %c1_16 = arith.constant 1 : index
    %44 = vector.load %arg2[%c0_15, %c1_16] : memref<64x2xf32, #tpu.memory_space<vmem>>, vector<64x1xf32>
    %45 = vector.broadcast %44 : vector<64x1xf32> to vector<64x64xf32>
    %46 = arith.addf %43, %45 : vector<64x64xf32>
    %47 = tpu.concatenate %23, %46 in 1 : vector<64x64xf32>, vector<64x64xf32> -> vector<64x128xf32>
    %c64_i32 = arith.constant 64 : i32
    %48 = tpu.dynamic_rotate %47 by %c64_i32 dim 1 : vector<64x128xf32>, i32 -> vector<64x128xf32>
    %c0_17 = arith.constant 0 : index
    %c0_18 = arith.constant 0 : index
    %49 = vector.load %arg3[%c0_17, %c0_18] : memref<128x128xf32, #tpu.memory_space<vmem>>, vector<128x128xf32>
    %cst_19 = arith.constant dense<0.000000e+00> : vector<64x128xf32>
    %50 = tpu.matmul %47, %49, %cst_19 {dimension_numbers = #tpu.dot_dimension_numbers<[1], [0], [0], [1], [0, 0, 1, 1], [], []>, precision = #tpu.contract_precision<fp32>} : vector<64x128xf32>, vector<128x128xf32>, vector<64x128xf32> -> vector<64x128xf32>
    %c0_20 = arith.constant 0 : index
    %c0_21 = arith.constant 0 : index
    %51 = vector.load %arg6[%c0_20, %c0_21] : memref<1x128xf32, #tpu.memory_space<vmem>>, vector<1x128xf32>
    %52 = vector.broadcast %51 : vector<1x128xf32> to vector<64x128xf32>
    %53 = arith.addf %50, %52 : vector<64x128xf32>
    %c0_22 = arith.constant 0 : index
    %c0_23 = arith.constant 0 : index
    %54 = vector.load %arg4[%c0_22, %c0_23] : memref<128x256xf32, #tpu.memory_space<vmem>>, vector<128x256xf32>
    %cst_24 = arith.constant dense<0.000000e+00> : vector<64x256xf32>
    %55 = tpu.matmul %48, %54, %cst_24 {dimension_numbers = #tpu.dot_dimension_numbers<[1], [0], [0], [1], [0, 0, 1, 1], [], []>, precision = #tpu.contract_precision<fp32>} : vector<64x128xf32>, vector<128x256xf32>, vector<64x256xf32> -> vector<64x256xf32>
    %c0_25 = arith.constant 0 : index
    %c0_26 = arith.constant 0 : index
    %56 = vector.load %arg7[%c0_25, %c0_26] : memref<1x256xf32, #tpu.memory_space<vmem>>, vector<1x256xf32>
    %57 = vector.broadcast %56 : vector<1x256xf32> to vector<64x256xf32>
    %58 = arith.addf %55, %57 : vector<64x256xf32>
    %59 = vector.extract_strided_slice %58 {offsets = [0, 0], sizes = [64, 128], strides = [1, 1]} : vector<64x256xf32> to vector<64x128xf32>
    %60 = vector.extract_strided_slice %58 {offsets = [0, 128], sizes = [64, 128], strides = [1, 1]} : vector<64x256xf32> to vector<64x128xf32>
    %61 = tpu.iota {dimensions = array<i32: 1>} : vector<32x128xi32>
    %c16_i32 = arith.constant 16 : i32
    %c0_i32 = arith.constant 0 : i32
    %62 = arith.cmpi eq, %c16_i32, %c0_i32 : i32
    %c1_i32 = arith.constant 1 : i32
    %63 = arith.select %62, %c1_i32, %c16_i32 : i32
    %64 = vector.broadcast %63 : i32 to vector<32x128xi32>
    %65 = arith.remsi %61, %64 : vector<32x128xi32>
    %c0_i32_27 = arith.constant 0 : i32
    %66 = vector.broadcast %c0_i32_27 : i32 to vector<32x128xi32>
    %67 = arith.cmpi ne, %65, %66 : vector<32x128xi32>
    %c0_i32_28 = arith.constant 0 : i32
    %68 = vector.broadcast %c0_i32_28 : i32 to vector<32x128xi32>
    %69 = arith.cmpi slt, %65, %68 : vector<32x128xi32>
    %c0_i32_29 = arith.constant 0 : i32
    %70 = arith.cmpi slt, %63, %c0_i32_29 : i32
    %71 = vector.broadcast %70 : i1 to vector<32x128xi1>
    %72 = vector.broadcast %71 : vector<32x128xi1> to vector<32x128xi1>
    %73 = arith.xori %69, %72 : vector<32x128xi1>
    %74 = arith.andi %73, %67 : vector<32x128xi1>
    %75 = vector.broadcast %63 : i32 to vector<32x128xi32>
    %76 = arith.addi %65, %75 : vector<32x128xi32>
    %77 = arith.select %74, %76, %65 : vector<32x128xi1>, vector<32x128xi32>
    %c1_i32_30 = arith.constant 1 : i32
    %78 = vector.broadcast %c1_i32_30 : i32 to vector<32x128xi32>
    %79 = arith.cmpi sge, %77, %78 : vector<32x128xi32>
    %c2_i32 = arith.constant 2 : i32
    %80 = vector.broadcast %c2_i32 : i32 to vector<32x128xi32>
    %81 = arith.cmpi sge, %77, %80 : vector<32x128xi32>
    %c4_i32 = arith.constant 4 : i32
    %82 = vector.broadcast %c4_i32 : i32 to vector<32x128xi32>
    %83 = arith.cmpi sge, %77, %82 : vector<32x128xi32>
    %c8_i32 = arith.constant 8 : i32
    %84 = vector.broadcast %c8_i32 : i32 to vector<32x128xi32>
    %85 = arith.cmpi sge, %77, %84 : vector<32x128xi32>
    %86 = vector.extract_strided_slice %53 {offsets = [0, 0], sizes = [32, 128], strides = [1, 1]} : vector<64x128xf32> to vector<32x128xf32>
    %87 = vector.extract_strided_slice %59 {offsets = [0, 0], sizes = [32, 128], strides = [1, 1]} : vector<64x128xf32> to vector<32x128xf32>
    %88 = arith.mulf %86, %87 : vector<32x128xf32>
    %c1_i32_31 = arith.constant 1 : i32
    %89 = tpu.dynamic_rotate %88 by %c1_i32_31 dim 1 : vector<32x128xf32>, i32 -> vector<32x128xf32>
    %c113_i32 = arith.constant 113 : i32
    %90 = tpu.dynamic_rotate %88 by %c113_i32 dim 1 : vector<32x128xf32>, i32 -> vector<32x128xf32>
    %91 = arith.select %79, %89, %90 : vector<32x128xi1>, vector<32x128xf32>
    %92 = arith.addf %88, %91 : vector<32x128xf32>
    %c2_i32_32 = arith.constant 2 : i32
    %93 = tpu.dynamic_rotate %92 by %c2_i32_32 dim 1 : vector<32x128xf32>, i32 -> vector<32x128xf32>
    %c114_i32 = arith.constant 114 : i32
    %94 = tpu.dynamic_rotate %92 by %c114_i32 dim 1 : vector<32x128xf32>, i32 -> vector<32x128xf32>
    %95 = arith.select %81, %93, %94 : vector<32x128xi1>, vector<32x128xf32>
    %96 = arith.addf %92, %95 : vector<32x128xf32>
    %c4_i32_33 = arith.constant 4 : i32
    %97 = tpu.dynamic_rotate %96 by %c4_i32_33 dim 1 : vector<32x128xf32>, i32 -> vector<32x128xf32>
    %c116_i32 = arith.constant 116 : i32
    %98 = tpu.dynamic_rotate %96 by %c116_i32 dim 1 : vector<32x128xf32>, i32 -> vector<32x128xf32>
    %99 = arith.select %83, %97, %98 : vector<32x128xi1>, vector<32x128xf32>
    %100 = arith.addf %96, %99 : vector<32x128xf32>
    %c8_i32_34 = arith.constant 8 : i32
    %101 = tpu.dynamic_rotate %100 by %c8_i32_34 dim 1 : vector<32x128xf32>, i32 -> vector<32x128xf32>
    %c120_i32 = arith.constant 120 : i32
    %102 = tpu.dynamic_rotate %100 by %c120_i32 dim 1 : vector<32x128xf32>, i32 -> vector<32x128xf32>
    %103 = arith.select %85, %101, %102 : vector<32x128xi1>, vector<32x128xf32>
    %104 = arith.addf %100, %103 : vector<32x128xf32>
    %105 = vector.extract_strided_slice %59 {offsets = [32, 0], sizes = [32, 128], strides = [1, 1]} : vector<64x128xf32> to vector<32x128xf32>
    %106 = arith.mulf %86, %105 : vector<32x128xf32>
    %c1_i32_35 = arith.constant 1 : i32
    %107 = tpu.dynamic_rotate %106 by %c1_i32_35 dim 1 : vector<32x128xf32>, i32 -> vector<32x128xf32>
    %c113_i32_36 = arith.constant 113 : i32
    %108 = tpu.dynamic_rotate %106 by %c113_i32_36 dim 1 : vector<32x128xf32>, i32 -> vector<32x128xf32>
    %109 = arith.select %79, %107, %108 : vector<32x128xi1>, vector<32x128xf32>
    %110 = arith.addf %106, %109 : vector<32x128xf32>
    %c2_i32_37 = arith.constant 2 : i32
    %111 = tpu.dynamic_rotate %110 by %c2_i32_37 dim 1 : vector<32x128xf32>, i32 -> vector<32x128xf32>
    %c114_i32_38 = arith.constant 114 : i32
    %112 = tpu.dynamic_rotate %110 by %c114_i32_38 dim 1 : vector<32x128xf32>, i32 -> vector<32x128xf32>
    %113 = arith.select %81, %111, %112 : vector<32x128xi1>, vector<32x128xf32>
    %114 = arith.addf %110, %113 : vector<32x128xf32>
    %c4_i32_39 = arith.constant 4 : i32
    %115 = tpu.dynamic_rotate %114 by %c4_i32_39 dim 1 : vector<32x128xf32>, i32 -> vector<32x128xf32>
    %c116_i32_40 = arith.constant 116 : i32
    %116 = tpu.dynamic_rotate %114 by %c116_i32_40 dim 1 : vector<32x128xf32>, i32 -> vector<32x128xf32>
    %117 = arith.select %83, %115, %116 : vector<32x128xi1>, vector<32x128xf32>
    %118 = arith.addf %114, %117 : vector<32x128xf32>
    %c8_i32_41 = arith.constant 8 : i32
    %119 = tpu.dynamic_rotate %118 by %c8_i32_41 dim 1 : vector<32x128xf32>, i32 -> vector<32x128xf32>
    %c120_i32_42 = arith.constant 120 : i32
    %120 = tpu.dynamic_rotate %118 by %c120_i32_42 dim 1 : vector<32x128xf32>, i32 -> vector<32x128xf32>
    %121 = arith.select %85, %119, %120 : vector<32x128xi1>, vector<32x128xf32>
    %122 = arith.addf %118, %121 : vector<32x128xf32>
    %123 = arith.maximumf %104, %122 : vector<32x128xf32>
    %124 = arith.subf %104, %123 : vector<32x128xf32>
    %125 = math.exp %124 : vector<32x128xf32>
    %126 = arith.subf %122, %123 : vector<32x128xf32>
    %127 = math.exp %126 : vector<32x128xf32>
    %128 = arith.addf %125, %127 : vector<32x128xf32>
    %129 = tpu.reciprocal %128 : vector<32x128xf32> -> vector<32x128xf32>
    %130 = arith.mulf %125, %129 : vector<32x128xf32>
    %131 = vector.extract_strided_slice %60 {offsets = [0, 0], sizes = [32, 128], strides = [1, 1]} : vector<64x128xf32> to vector<32x128xf32>
    %132 = arith.mulf %130, %131 : vector<32x128xf32>
    %133 = arith.mulf %127, %129 : vector<32x128xf32>
    %134 = vector.extract_strided_slice %60 {offsets = [32, 0], sizes = [32, 128], strides = [1, 1]} : vector<64x128xf32> to vector<32x128xf32>
    %135 = arith.mulf %133, %134 : vector<32x128xf32>
    %136 = arith.addf %132, %135 : vector<32x128xf32>
    %137 = vector.extract_strided_slice %53 {offsets = [32, 0], sizes = [32, 128], strides = [1, 1]} : vector<64x128xf32> to vector<32x128xf32>
    %138 = vector.extract_strided_slice %59 {offsets = [0, 0], sizes = [32, 128], strides = [1, 1]} : vector<64x128xf32> to vector<32x128xf32>
    %139 = arith.mulf %137, %138 : vector<32x128xf32>
    %c1_i32_43 = arith.constant 1 : i32
    %140 = tpu.dynamic_rotate %139 by %c1_i32_43 dim 1 : vector<32x128xf32>, i32 -> vector<32x128xf32>
    %c113_i32_44 = arith.constant 113 : i32
    %141 = tpu.dynamic_rotate %139 by %c113_i32_44 dim 1 : vector<32x128xf32>, i32 -> vector<32x128xf32>
    %142 = arith.select %79, %140, %141 : vector<32x128xi1>, vector<32x128xf32>
    %143 = arith.addf %139, %142 : vector<32x128xf32>
    %c2_i32_45 = arith.constant 2 : i32
    %144 = tpu.dynamic_rotate %143 by %c2_i32_45 dim 1 : vector<32x128xf32>, i32 -> vector<32x128xf32>
    %c114_i32_46 = arith.constant 114 : i32
    %145 = tpu.dynamic_rotate %143 by %c114_i32_46 dim 1 : vector<32x128xf32>, i32 -> vector<32x128xf32>
    %146 = arith.select %81, %144, %145 : vector<32x128xi1>, vector<32x128xf32>
    %147 = arith.addf %143, %146 : vector<32x128xf32>
    %c4_i32_47 = arith.constant 4 : i32
    %148 = tpu.dynamic_rotate %147 by %c4_i32_47 dim 1 : vector<32x128xf32>, i32 -> vector<32x128xf32>
    %c116_i32_48 = arith.constant 116 : i32
    %149 = tpu.dynamic_rotate %147 by %c116_i32_48 dim 1 : vector<32x128xf32>, i32 -> vector<32x128xf32>
    %150 = arith.select %83, %148, %149 : vector<32x128xi1>, vector<32x128xf32>
    %151 = arith.addf %147, %150 : vector<32x128xf32>
    %c8_i32_49 = arith.constant 8 : i32
    %152 = tpu.dynamic_rotate %151 by %c8_i32_49 dim 1 : vector<32x128xf32>, i32 -> vector<32x128xf32>
    %c120_i32_50 = arith.constant 120 : i32
    %153 = tpu.dynamic_rotate %151 by %c120_i32_50 dim 1 : vector<32x128xf32>, i32 -> vector<32x128xf32>
    %154 = arith.select %85, %152, %153 : vector<32x128xi1>, vector<32x128xf32>
    %155 = arith.addf %151, %154 : vector<32x128xf32>
    %156 = vector.extract_strided_slice %59 {offsets = [32, 0], sizes = [32, 128], strides = [1, 1]} : vector<64x128xf32> to vector<32x128xf32>
    %157 = arith.mulf %137, %156 : vector<32x128xf32>
    %c1_i32_51 = arith.constant 1 : i32
    %158 = tpu.dynamic_rotate %157 by %c1_i32_51 dim 1 : vector<32x128xf32>, i32 -> vector<32x128xf32>
    %c113_i32_52 = arith.constant 113 : i32
    %159 = tpu.dynamic_rotate %157 by %c113_i32_52 dim 1 : vector<32x128xf32>, i32 -> vector<32x128xf32>
    %160 = arith.select %79, %158, %159 : vector<32x128xi1>, vector<32x128xf32>
    %161 = arith.addf %157, %160 : vector<32x128xf32>
    %c2_i32_53 = arith.constant 2 : i32
    %162 = tpu.dynamic_rotate %161 by %c2_i32_53 dim 1 : vector<32x128xf32>, i32 -> vector<32x128xf32>
    %c114_i32_54 = arith.constant 114 : i32
    %163 = tpu.dynamic_rotate %161 by %c114_i32_54 dim 1 : vector<32x128xf32>, i32 -> vector<32x128xf32>
    %164 = arith.select %81, %162, %163 : vector<32x128xi1>, vector<32x128xf32>
    %165 = arith.addf %161, %164 : vector<32x128xf32>
    %c4_i32_55 = arith.constant 4 : i32
    %166 = tpu.dynamic_rotate %165 by %c4_i32_55 dim 1 : vector<32x128xf32>, i32 -> vector<32x128xf32>
    %c116_i32_56 = arith.constant 116 : i32
    %167 = tpu.dynamic_rotate %165 by %c116_i32_56 dim 1 : vector<32x128xf32>, i32 -> vector<32x128xf32>
    %168 = arith.select %83, %166, %167 : vector<32x128xi1>, vector<32x128xf32>
    %169 = arith.addf %165, %168 : vector<32x128xf32>
    %c8_i32_57 = arith.constant 8 : i32
    %170 = tpu.dynamic_rotate %169 by %c8_i32_57 dim 1 : vector<32x128xf32>, i32 -> vector<32x128xf32>
    %c120_i32_58 = arith.constant 120 : i32
    %171 = tpu.dynamic_rotate %169 by %c120_i32_58 dim 1 : vector<32x128xf32>, i32 -> vector<32x128xf32>
    %172 = arith.select %85, %170, %171 : vector<32x128xi1>, vector<32x128xf32>
    %173 = arith.addf %169, %172 : vector<32x128xf32>
    %174 = arith.maximumf %155, %173 : vector<32x128xf32>
    %175 = arith.subf %155, %174 : vector<32x128xf32>
    %176 = math.exp %175 : vector<32x128xf32>
    %177 = arith.subf %173, %174 : vector<32x128xf32>
    %178 = math.exp %177 : vector<32x128xf32>
    %179 = arith.addf %176, %178 : vector<32x128xf32>
    %180 = tpu.reciprocal %179 : vector<32x128xf32> -> vector<32x128xf32>
    %181 = arith.mulf %176, %180 : vector<32x128xf32>
    %182 = vector.extract_strided_slice %60 {offsets = [0, 0], sizes = [32, 128], strides = [1, 1]} : vector<64x128xf32> to vector<32x128xf32>
    %183 = arith.mulf %181, %182 : vector<32x128xf32>
    %184 = arith.mulf %178, %180 : vector<32x128xf32>
    %185 = vector.extract_strided_slice %60 {offsets = [32, 0], sizes = [32, 128], strides = [1, 1]} : vector<64x128xf32> to vector<32x128xf32>
    %186 = arith.mulf %184, %185 : vector<32x128xf32>
    %187 = arith.addf %183, %186 : vector<32x128xf32>
    %188 = tpu.concatenate %136, %187 in 0 : vector<32x128xf32>, vector<32x128xf32> -> vector<64x128xf32>
    %c0_59 = arith.constant 0 : index
    %c0_60 = arith.constant 0 : index
    %189 = vector.load %arg5[%c0_59, %c0_60] : memref<128x128xf32, #tpu.memory_space<vmem>>, vector<128x128xf32>
    %cst_61 = arith.constant dense<0.000000e+00> : vector<64x128xf32>
    %190 = tpu.matmul %188, %189, %cst_61 {dimension_numbers = #tpu.dot_dimension_numbers<[1], [0], [0], [1], [0, 0, 1, 1], [], []>, precision = #tpu.contract_precision<fp32>} : vector<64x128xf32>, vector<128x128xf32>, vector<64x128xf32> -> vector<64x128xf32>
    %c0_62 = arith.constant 0 : index
    %c0_63 = arith.constant 0 : index
    %191 = vector.load %arg8[%c0_62, %c0_63] : memref<1x128xf32, #tpu.memory_space<vmem>>, vector<1x128xf32>
    %192 = vector.broadcast %191 : vector<1x128xf32> to vector<64x128xf32>
    %193 = arith.addf %190, %192 : vector<64x128xf32>
    %194 = vector.extract_strided_slice %193 {offsets = [0, 0], sizes = [32, 128], strides = [1, 1]} : vector<64x128xf32> to vector<32x128xf32>
    %195 = vector.extract_strided_slice %193 {offsets = [32, 0], sizes = [32, 128], strides = [1, 1]} : vector<64x128xf32> to vector<32x128xf32>
    %196 = tpu.concatenate %194, %195 in 1 : vector<32x128xf32>, vector<32x128xf32> -> vector<32x256xf32>
    %c0_64 = arith.constant 0 : index
    %c0_65 = arith.constant 0 : index
    %197 = vector.load %arg9[%c0_64, %c0_65] : memref<32x32xf32, #tpu.memory_space<vmem>>, vector<32x32xf32>
    %cst_66 = arith.constant dense<0.000000e+00> : vector<32x256xf32>
    %198 = tpu.matmul %197, %196, %cst_66 {dimension_numbers = #tpu.dot_dimension_numbers<[1], [0], [0], [1], [0, 0, 1, 1], [], []>, precision = #tpu.contract_precision<fp32>} : vector<32x32xf32>, vector<32x256xf32>, vector<32x256xf32> -> vector<32x256xf32>
    %c0_67 = arith.constant 0 : index
    %c0_68 = arith.constant 0 : index
    %199 = vector.load %arg10[%c0_67, %c0_68] : memref<32x1xf32, #tpu.memory_space<vmem>>, vector<32x1xf32>
    %200 = vector.broadcast %199 : vector<32x1xf32> to vector<32x256xf32>
    %201 = arith.addf %198, %200 : vector<32x256xf32>
    %202 = vector.extract_strided_slice %201 {offsets = [0, 0], sizes = [32, 128], strides = [1, 1]} : vector<32x256xf32> to vector<32x128xf32>
    %203 = vector.extract_strided_slice %0 {offsets = [0, 0], sizes = [32, 128], strides = [1, 1]} : vector<64x128xf32> to vector<32x128xf32>
    %204 = arith.addf %202, %203 : vector<32x128xf32>
    %cst_69 = arith.constant 0.707106769 : f32
    %205 = vector.broadcast %cst_69 : f32 to vector<32x128xf32>
    %206 = arith.mulf %204, %205 : vector<32x128xf32>
    %c0_70 = arith.constant 0 : index
    %c0_71 = arith.constant 0 : index
    %207 = vector.load %arg11[%c0_70, %c0_71] : memref<64x128xf32, #tpu.memory_space<vmem>>, vector<32x128xf32>
    tpu.vector_store %arg11[%c0_70, %c0_71], %206 {strides = array<i32>} : memref<64x128xf32, #tpu.memory_space<vmem>>, vector<32x128xf32>,
    %208 = vector.extract_strided_slice %201 {offsets = [0, 128], sizes = [32, 128], strides = [1, 1]} : vector<32x256xf32> to vector<32x128xf32>
    %209 = vector.extract_strided_slice %0 {offsets = [32, 0], sizes = [32, 128], strides = [1, 1]} : vector<64x128xf32> to vector<32x128xf32>
    %210 = arith.addf %208, %209 : vector<32x128xf32>
    %cst_72 = arith.constant 0.707106769 : f32
    %211 = vector.broadcast %cst_72 : f32 to vector<32x128xf32>
    %212 = arith.mulf %210, %211 : vector<32x128xf32>
    %c32 = arith.constant 32 : index
    %c0_73 = arith.constant 0 : index
    %213 = vector.load %arg11[%c32, %c0_73] : memref<64x128xf32, #tpu.memory_space<vmem>>, vector<32x128xf32>
    tpu.vector_store %arg11[%c32, %c0_73], %212 {strides = array<i32>} : memref<64x128xf32, #tpu.memory_space<vmem>>, vector<32x128xf32>,
    return
  }
}

</mosaic_0001>

<llo_original>
// kernel: attn_block_forward.1
$region0: #{attn_block_forward.1}
  #allocation0 [shape = 'u32[]', space=smem, size = 0x4, offset = 0x4, fixed_abs, tag = 'smem constant byte address 0x4 - core index']
  #allocation1 [shape = 'u32[144,128]{1,0:T(1,128)}', space=vmem, size = 0x12000, scoped, tag = 'internal scratch']
  %s0 = inlined_call_operand.vmem [shape: f32[64,128], index: 0, kind: input, shape index: {}]
  %s1 = inlined_call_operand.vmem [shape: f32[64,2], index: 1, kind: input, shape index: {}]
  %s2 = inlined_call_operand.vmem [shape: f32[64,2], index: 2, kind: input, shape index: {}]
  %s3 = inlined_call_operand.vmem [shape: f32[128,128], index: 3, kind: input, shape index: {}]
  %s4 = inlined_call_operand.vmem [shape: f32[128,256], index: 4, kind: input, shape index: {}]
  %s5 = inlined_call_operand.vmem [shape: f32[128,128], index: 5, kind: input, shape index: {}]
  %s6 = inlined_call_operand.vmem [shape: f32[1,128], index: 6, kind: input, shape index: {}]
  %s7 = inlined_call_operand.vmem [shape: f32[1,256], index: 7, kind: input, shape index: {}]
  %s8 = inlined_call_operand.vmem [shape: f32[1,128], index: 8, kind: input, shape index: {}]
  %s9 = inlined_call_operand.vmem [shape: f32[32,32], index: 9, kind: input, shape index: {}]
  %s10 = inlined_call_operand.vmem [shape: f32[32,1], index: 10, kind: input, shape index: {}]
  %s11 = inlined_call_operand.vmem [shape: f32[64,128], index: 11, kind: output, shape index: {}]
  %s12 = sld [smem:[#allocation0]]
  $region54: #{attn_block_forward.1} parent=0
    _
  %s14 = ssub.s32 1, %s12
  %s15 = scalar_select 0, %s14, %s12
  // Predicated region
  $region2: #{attn_block_forward.1} parent=0 // pred_check
    _
  $region3: #{attn_block_forward.1} parent=0 // pred_check_branch
    %17 = sbr.rel (0) target = $region5
  $region4: #{attn_block_forward.1} parent=0 // pred_region
    _
  $region5: #{attn_block_forward.1} parent=0 // pred_fallthru
    _
  // Predicated region
  $region6: #{attn_block_forward.1} parent=0 // pred_check
    _
  $region7: #{attn_block_forward.1} parent=0 // pred_check_branch
    %19 = sbr.rel (0) target = $region9
  $region8: #{attn_block_forward.1} parent=0 // pred_region
    _
  $region9: #{attn_block_forward.1} parent=0 // pred_fallthru
    _
  // Predicated region
  $region10: #{attn_block_forward.1} parent=0 // pred_check
    _
  $region11: #{attn_block_forward.1} parent=0 // pred_check_branch
    %21 = sbr.rel (0) target = $region13
  $region12: #{attn_block_forward.1} parent=0 // pred_region
    _
  $region13: #{attn_block_forward.1} parent=0 // pred_fallthru
    _
  // Predicated region
  $region14: #{attn_block_forward.1} parent=0 // pred_check
    _
  $region15: #{attn_block_forward.1} parent=0 // pred_check_branch
    %23 = sbr.rel (0) target = $region17
  $region16: #{attn_block_forward.1} parent=0 // pred_region
    _
  $region17: #{attn_block_forward.1} parent=0 // pred_fallthru
    _
  // Predicated region
  $region18: #{attn_block_forward.1} parent=0 // pred_check
    _
  $region19: #{attn_block_forward.1} parent=0 // pred_check_branch
    %25 = sbr.rel (0) target = $region21
  $region20: #{attn_block_forward.1} parent=0 // pred_region
    _
  $region21: #{attn_block_forward.1} parent=0 // pred_fallthru
    _
  // Predicated region
  $region22: #{attn_block_forward.1} parent=0 // pred_check
    _
  $region23: #{attn_block_forward.1} parent=0 // pred_check_branch
    %27 = sbr.rel (0) target = $region25
  $region24: #{attn_block_forward.1} parent=0 // pred_region
    _
  $region25: #{attn_block_forward.1} parent=0 // pred_fallthru
    _
  // Predicated region
  $region26: #{attn_block_forward.1} parent=0 // pred_check
    _
  $region27: #{attn_block_forward.1} parent=0 // pred_check_branch
    %29 = sbr.rel (0) target = $region29
  $region28: #{attn_block_forward.1} parent=0 // pred_region
    _
  $region29: #{attn_block_forward.1} parent=0 // pred_fallthru
    _
  // Predicated region
  $region30: #{attn_block_forward.1} parent=0 // pred_check
    _
  $region31: #{attn_block_forward.1} parent=0 // pred_check_branch
    %31 = sbr.rel (0) target = $region33
  $region32: #{attn_block_forward.1} parent=0 // pred_region
    _
  $region33: #{attn_block_forward.1} parent=0 // pred_fallthru
    _
  // Predicated region
  $region34: #{attn_block_forward.1} parent=0 // pred_check
    _
  $region35: #{attn_block_forward.1} parent=0 // pred_check_branch
    %33 = sbr.rel (0) target = $region37
  $region36: #{attn_block_forward.1} parent=0 // pred_region
    _
  $region37: #{attn_block_forward.1} parent=0 // pred_fallthru
    _
  // Predicated region
  $region38: #{attn_block_forward.1} parent=0 // pred_check
    _
  $region39: #{attn_block_forward.1} parent=0 // pred_check_branch
    %35 = sbr.rel (0) target = $region41
  $region40: #{attn_block_forward.1} parent=0 // pred_region
    _
  $region41: #{attn_block_forward.1} parent=0 // pred_fallthru
    _
  // Predicated region
  $region42: #{attn_block_forward.1} parent=0 // pred_check
    _
  $region43: #{attn_block_forward.1} parent=0 // pred_check_branch
    %37 = sbr.rel (0) target = $region45
  $region44: #{attn_block_forward.1} parent=0 // pred_region
    _
  $region45: #{attn_block_forward.1} parent=0 // pred_fallthru
    _
  %v38 = vld [vmem:[%s0] sm:$0xff]
  %v39 = vld [vmem:[%s0 + $0x8] sm:$0xff]
  %v40 = vld [vmem:[%s0 + $0x10] sm:$0xff]
  %v41 = vld [vmem:[%s0 + $0x18] sm:$0xff]
  %v42 = vld [vmem:[%s0 + $0x20] sm:$0xff]
  %v43 = vld [vmem:[%s0 + $0x28] sm:$0xff]
  %v44 = vld [vmem:[%s0 + $0x30] sm:$0xff]
  %v45 = vld [vmem:[%s0 + $0x38] sm:$0xff]
  %vm46 = vcmask 523264
  %v47 = vsel %vm46, %v38, 0.0
  %48 = vadd.xlane.f32.xlu0 %v47
  %v49 = vpop.xlane.xlu0 %48
  %v50 = vsel %vm46, %v39, 0.0
  %51 = vadd.xlane.f32.xlu0 %v50
  %v52 = vpop.xlane.xlu0 %51
  %v53 = vsel %vm46, %v40, 0.0
  %54 = vadd.xlane.f32.xlu0 %v53
  %v55 = vpop.xlane.xlu0 %54
  %v56 = vsel %vm46, %v41, 0.0
  %57 = vadd.xlane.f32.xlu0 %v56
  %v58 = vpop.xlane.xlu0 %57
  %v59 = vsel %vm46, %v42, 0.0
  %60 = vadd.xlane.f32.xlu0 %v59
  %v61 = vpop.xlane.xlu0 %60
  %v62 = vsel %vm46, %v43, 0.0
  %63 = vadd.xlane.f32.xlu0 %v62
  %v64 = vpop.xlane.xlu0 %63
  %v65 = vsel %vm46, %v44, 0.0
  %66 = vadd.xlane.f32.xlu0 %v65
  %v67 = vpop.xlane.xlu0 %66
  %v68 = vsel %vm46, %v45, 0.0
  %69 = vadd.xlane.f32.xlu0 %v68
  %v70 = vpop.xlane.xlu0 %69
  %v71 = vmul.f32 %v49, 0.015625
  %v72 = vmul.f32 %v52, 0.015625
  %v73 = vmul.f32 %v55, 0.015625
  %v74 = vmul.f32 %v58, 0.015625
  %v75 = vmul.f32 %v61, 0.015625
  %v76 = vmul.f32 %v64, 0.015625
  %v77 = vmul.f32 %v67, 0.015625
  %v78 = vmul.f32 %v70, 0.015625
  %v79 = vsub.f32 %v38, %v71
  %v80 = vsub.f32 %v39, %v72
  %v81 = vsub.f32 %v40, %v73
  %v82 = vsub.f32 %v41, %v74
  %v83 = vsub.f32 %v42, %v75
  %v84 = vsub.f32 %v43, %v76
  %v85 = vsub.f32 %v44, %v77
  %v86 = vsub.f32 %v45, %v78
  %v87 = vmul.f32 %v79, %v79
  %v88 = vmul.f32 %v80, %v80
  %v89 = vmul.f32 %v81, %v81
  %v90 = vmul.f32 %v82, %v82
  %v91 = vmul.f32 %v83, %v83
  %v92 = vmul.f32 %v84, %v84
  %v93 = vmul.f32 %v85, %v85
  %v94 = vmul.f32 %v86, %v86
  %v95 = vsel %vm46, %v87, 0.0
  %96 = vadd.xlane.f32.xlu0 %v95
  %v97 = vpop.xlane.xlu0 %96
  %v98 = vsel %vm46, %v88, 0.0
  %99 = vadd.xlane.f32.xlu0 %v98
  %v100 = vpop.xlane.xlu0 %99
  %v101 = vsel %vm46, %v89, 0.0
  %102 = vadd.xlane.f32.xlu0 %v101
  %v103 = vpop.xlane.xlu0 %102
  %v104 = vsel %vm46, %v90, 0.0
  %105 = vadd.xlane.f32.xlu0 %v104
  %v106 = vpop.xlane.xlu0 %105
  %v107 = vsel %vm46, %v91, 0.0
  %108 = vadd.xlane.f32.xlu0 %v107
  %v109 = vpop.xlane.xlu0 %108
  %v110 = vsel %vm46, %v92, 0.0
  %111 = vadd.xlane.f32.xlu0 %v110
  %v112 = vpop.xlane.xlu0 %111
  %v113 = vsel %vm46, %v93, 0.0
  %114 = vadd.xlane.f32.xlu0 %v113
  %v115 = vpop.xlane.xlu0 %114
  %v116 = vsel %vm46, %v94, 0.0
  %117 = vadd.xlane.f32.xlu0 %v116
  %v118 = vpop.xlane.xlu0 %117
  %v119 = vmul.f32 %v97, 0.015625
  %v120 = vmul.f32 %v100, 0.015625
  %v121 = vmul.f32 %v103, 0.015625
  %v122 = vmul.f32 %v106, 0.015625
  %v123 = vmul.f32 %v109, 0.015625
  %v124 = vmul.f32 %v112, 0.015625
  %v125 = vmul.f32 %v115, 0.015625
  %v126 = vmul.f32 %v118, 0.015625
  %v127 = vadd.f32 %v119, 1e-05
  %v128 = vadd.f32 %v120, 1e-05
  %v129 = vadd.f32 %v121, 1e-05
  %v130 = vadd.f32 %v122, 1e-05
  %v131 = vadd.f32 %v123, 1e-05
  %v132 = vadd.f32 %v124, 1e-05
  %v133 = vadd.f32 %v125, 1e-05
  %v134 = vadd.f32 %v126, 1e-05
  %v135 = vrsqrt.pop %v127
  %v136 = vrsqrt.pop %v128
  %v137 = vrsqrt.pop %v129
  %v138 = vrsqrt.pop %v130
  %v139 = vrsqrt.pop %v131
  %v140 = vrsqrt.pop %v132
  %v141 = vrsqrt.pop %v133
  %v142 = vrsqrt.pop %v134
  %v143 = vmul.f32 %v79, %v135
  %v144 = vmul.f32 %v80, %v136
  %v145 = vmul.f32 %v81, %v137
  %v146 = vmul.f32 %v82, %v138
  %v147 = vmul.f32 %v83, %v139
  %v148 = vmul.f32 %v84, %v140
  %v149 = vmul.f32 %v85, %v141
  %v150 = vmul.f32 %v86, %v142
  %v151 = vld [vmem:[%s1] sm:$0xff]
  %v152 = vld [vmem:[%s1 + $0x8] sm:$0xff]
  %v153 = vld [vmem:[%s1 + $0x10] sm:$0xff]
  %v154 = vld [vmem:[%s1 + $0x18] sm:$0xff]
  %v155 = vld [vmem:[%s1 + $0x20] sm:$0xff]
  %v156 = vld [vmem:[%s1 + $0x28] sm:$0xff]
  %v157 = vld [vmem:[%s1 + $0x30] sm:$0xff]
  %v158 = vld [vmem:[%s1 + $0x38] sm:$0xff]
  %160 = vset.pattern.permute.xlu0 0
  %161 = vperm.xlu0 %160, %v151
  %v162 = vpop.permute.xlu0 %161
  %165 = vset.pattern.permute.xlu0 0
  %166 = vperm.xlu0 %165, %v152
  %v167 = vpop.permute.xlu0 %166
  %170 = vset.pattern.permute.xlu0 0
  %171 = vperm.xlu0 %170, %v153
  %v172 = vpop.permute.xlu0 %171
  %175 = vset.pattern.permute.xlu0 0
  %176 = vperm.xlu0 %175, %v154
  %v177 = vpop.permute.xlu0 %176
  %180 = vset.pattern.permute.xlu0 0
  %181 = vperm.xlu0 %180, %v155
  %v182 = vpop.permute.xlu0 %181
  %185 = vset.pattern.permute.xlu0 0
  %186 = vperm.xlu0 %185, %v156
  %v187 = vpop.permute.xlu0 %186
  %190 = vset.pattern.permute.xlu0 0
  %191 = vperm.xlu0 %190, %v157
  %v192 = vpop.permute.xlu0 %191
  %195 = vset.pattern.permute.xlu0 0
  %196 = vperm.xlu0 %195, %v158
  %v197 = vpop.permute.xlu0 %196
  %v199 = vmul.f32 %v143, %v162
  %v200 = vmul.f32 %v144, %v167
  %v201 = vmul.f32 %v145, %v172
  %v202 = vmul.f32 %v146, %v177
  %v203 = vmul.f32 %v147, %v182
  %v204 = vmul.f32 %v148, %v187
  %v205 = vmul.f32 %v149, %v192
  %v206 = vmul.f32 %v150, %v197
  %v207 = vld [vmem:[%s2] sm:$0xff]
  %v208 = vld [vmem:[%s2 + $0x8] sm:$0xff]
  %v209 = vld [vmem:[%s2 + $0x10] sm:$0xff]
  %v210 = vld [vmem:[%s2 + $0x18] sm:$0xff]
  %v211 = vld [vmem:[%s2 + $0x20] sm:$0xff]
  %v212 = vld [vmem:[%s2 + $0x28] sm:$0xff]
  %v213 = vld [vmem:[%s2 + $0x30] sm:$0xff]
  %v214 = vld [vmem:[%s2 + $0x38] sm:$0xff]
  %216 = vset.pattern.permute.xlu0 0
  %217 = vperm.xlu0 %216, %v207
  %v218 = vpop.permute.xlu0 %217
  %221 = vset.pattern.permute.xlu0 0
  %222 = vperm.xlu0 %221, %v208
  %v223 = vpop.permute.xlu0 %222
  %226 = vset.pattern.permute.xlu0 0
  %227 = vperm.xlu0 %226, %v209
  %v228 = vpop.permute.xlu0 %227
  %231 = vset.pattern.permute.xlu0 0
  %232 = vperm.xlu0 %231, %v210
  %v233 = vpop.permute.xlu0 %232
  %236 = vset.pattern.permute.xlu0 0
  %237 = vperm.xlu0 %236, %v211
  %v238 = vpop.permute.xlu0 %237
  %241 = vset.pattern.permute.xlu0 0
  %242 = vperm.xlu0 %241, %v212
  %v243 = vpop.permute.xlu0 %242
  %246 = vset.pattern.permute.xlu0 0
  %247 = vperm.xlu0 %246, %v213
  %v248 = vpop.permute.xlu0 %247
  %251 = vset.pattern.permute.xlu0 0
  %252 = vperm.xlu0 %251, %v214
  %v253 = vpop.permute.xlu0 %252
  %v255 = vadd.f32 %v199, %v218
  %v256 = vadd.f32 %v200, %v223
  %v257 = vadd.f32 %v201, %v228
  %v258 = vadd.f32 %v202, %v233
  %v259 = vadd.f32 %v203, %v238
  %v260 = vadd.f32 %v204, %v243
  %v261 = vadd.f32 %v205, %v248
  %v262 = vadd.f32 %v206, %v253
  %271 = vrot.lane.b32.xlu0 %v38, 64
  %v272 = vpop.permute.xlu0 %271
  %273 = vrot.lane.b32.xlu0 %v39, 64
  %v274 = vpop.permute.xlu0 %273
  %275 = vrot.lane.b32.xlu0 %v40, 64
  %v276 = vpop.permute.xlu0 %275
  %277 = vrot.lane.b32.xlu0 %v41, 64
  %v278 = vpop.permute.xlu0 %277
  %279 = vrot.lane.b32.xlu0 %v42, 64
  %v280 = vpop.permute.xlu0 %279
  %281 = vrot.lane.b32.xlu0 %v43, 64
  %v282 = vpop.permute.xlu0 %281
  %283 = vrot.lane.b32.xlu0 %v44, 64
  %v284 = vpop.permute.xlu0 %283
  %285 = vrot.lane.b32.xlu0 %v45, 64
  %v286 = vpop.permute.xlu0 %285
  %v295 = vsel %vm46, %v272, 0.0
  %296 = vadd.xlane.f32.xlu0 %v295
  %v297 = vpop.xlane.xlu0 %296
  %v298 = vsel %vm46, %v274, 0.0
  %299 = vadd.xlane.f32.xlu0 %v298
  %v300 = vpop.xlane.xlu0 %299
  %v301 = vsel %vm46, %v276, 0.0
  %302 = vadd.xlane.f32.xlu0 %v301
  %v303 = vpop.xlane.xlu0 %302
  %v304 = vsel %vm46, %v278, 0.0
  %305 = vadd.xlane.f32.xlu0 %v304
  %v306 = vpop.xlane.xlu0 %305
  %v307 = vsel %vm46, %v280, 0.0
  %308 = vadd.xlane.f32.xlu0 %v307
  %v309 = vpop.xlane.xlu0 %308
  %v310 = vsel %vm46, %v282, 0.0
  %311 = vadd.xlane.f32.xlu0 %v310
  %v312 = vpop.xlane.xlu0 %311
  %v313 = vsel %vm46, %v284, 0.0
  %314 = vadd.xlane.f32.xlu0 %v313
  %v315 = vpop.xlane.xlu0 %314
  %v316 = vsel %vm46, %v286, 0.0
  %317 = vadd.xlane.f32.xlu0 %v316
  %v318 = vpop.xlane.xlu0 %317
  %v319 = vmul.f32 %v297, 0.015625
  %v320 = vmul.f32 %v300, 0.015625
  %v321 = vmul.f32 %v303, 0.015625
  %v322 = vmul.f32 %v306, 0.015625
  %v323 = vmul.f32 %v309, 0.015625
  %v324 = vmul.f32 %v312, 0.015625
  %v325 = vmul.f32 %v315, 0.015625
  %v326 = vmul.f32 %v318, 0.015625
  %v327 = vsub.f32 %v38, %v319
  %v328 = vsub.f32 %v39, %v320
  %v329 = vsub.f32 %v40, %v321
  %v330 = vsub.f32 %v41, %v322
  %v331 = vsub.f32 %v42, %v323
  %v332 = vsub.f32 %v43, %v324
  %v333 = vsub.f32 %v44, %v325
  %v334 = vsub.f32 %v45, %v326
  %v335 = vmul.f32 %v327, %v327
  %v336 = vmul.f32 %v328, %v328
  %v337 = vmul.f32 %v329, %v329
  %v338 = vmul.f32 %v330, %v330
  %v339 = vmul.f32 %v331, %v331
  %v340 = vmul.f32 %v332, %v332
  %v341 = vmul.f32 %v333, %v333
  %v342 = vmul.f32 %v334, %v334
  %351 = vrot.lane.b32.xlu0 %v335, 64
  %v352 = vpop.permute.xlu0 %351
  %353 = vrot.lane.b32.xlu0 %v336, 64
  %v354 = vpop.permute.xlu0 %353
  %355 = vrot.lane.b32.xlu0 %v337, 64
  %v356 = vpop.permute.xlu0 %355
  %357 = vrot.lane.b32.xlu0 %v338, 64
  %v358 = vpop.permute.xlu0 %357
  %359 = vrot.lane.b32.xlu0 %v339, 64
  %v360 = vpop.permute.xlu0 %359
  %361 = vrot.lane.b32.xlu0 %v340, 64
  %v362 = vpop.permute.xlu0 %361
  %363 = vrot.lane.b32.xlu0 %v341, 64
  %v364 = vpop.permute.xlu0 %363
  %365 = vrot.lane.b32.xlu0 %v342, 64
  %v366 = vpop.permute.xlu0 %365
  %v375 = vsel %vm46, %v352, 0.0
  %376 = vadd.xlane.f32.xlu0 %v375
  %v377 = vpop.xlane.xlu0 %376
  %v378 = vsel %vm46, %v354, 0.0
  %379 = vadd.xlane.f32.xlu0 %v378
  %v380 = vpop.xlane.xlu0 %379
  %v381 = vsel %vm46, %v356, 0.0
  %382 = vadd.xlane.f32.xlu0 %v381
  %v383 = vpop.xlane.xlu0 %382
  %v384 = vsel %vm46, %v358, 0.0
  %385 = vadd.xlane.f32.xlu0 %v384
  %v386 = vpop.xlane.xlu0 %385
  %v387 = vsel %vm46, %v360, 0.0
  %388 = vadd.xlane.f32.xlu0 %v387
  %v389 = vpop.xlane.xlu0 %388
  %v390 = vsel %vm46, %v362, 0.0
  %391 = vadd.xlane.f32.xlu0 %v390
  %v392 = vpop.xlane.xlu0 %391
  %v393 = vsel %vm46, %v364, 0.0
  %394 = vadd.xlane.f32.xlu0 %v393
  %v395 = vpop.xlane.xlu0 %394
  %v396 = vsel %vm46, %v366, 0.0
  %397 = vadd.xlane.f32.xlu0 %v396
  %v398 = vpop.xlane.xlu0 %397
  %v399 = vmul.f32 %v377, 0.015625
  %v400 = vmul.f32 %v380, 0.015625
  %v401 = vmul.f32 %v383, 0.015625
  %v402 = vmul.f32 %v386, 0.015625
  %v403 = vmul.f32 %v389, 0.015625
  %v404 = vmul.f32 %v392, 0.015625
  %v405 = vmul.f32 %v395, 0.015625
  %v406 = vmul.f32 %v398, 0.015625
  %v407 = vadd.f32 %v399, 1e-05
  %v408 = vadd.f32 %v400, 1e-05
  %v409 = vadd.f32 %v401, 1e-05
  %v410 = vadd.f32 %v402, 1e-05
  %v411 = vadd.f32 %v403, 1e-05
  %v412 = vadd.f32 %v404, 1e-05
  %v413 = vadd.f32 %v405, 1e-05
  %v414 = vadd.f32 %v406, 1e-05
  %v415 = vrsqrt.pop %v407
  %v416 = vrsqrt.pop %v408
  %v417 = vrsqrt.pop %v409
  %v418 = vrsqrt.pop %v410
  %v419 = vrsqrt.pop %v411
  %v420 = vrsqrt.pop %v412
  %v421 = vrsqrt.pop %v413
  %v422 = vrsqrt.pop %v414
  %v423 = vmul.f32 %v327, %v415
  %v424 = vmul.f32 %v328, %v416
  %v425 = vmul.f32 %v329, %v417
  %v426 = vmul.f32 %v330, %v418
  %v427 = vmul.f32 %v331, %v419
  %v428 = vmul.f32 %v332, %v420
  %v429 = vmul.f32 %v333, %v421
  %v430 = vmul.f32 %v334, %v422
  %431 = vset.pattern.permute.xlu0 1
  %432 = vperm.xlu0 %431, %v151
  %v433 = vpop.permute.xlu0 %432
  %435 = vset.pattern.permute.xlu0 1
  %436 = vperm.xlu0 %435, %v152
  %v437 = vpop.permute.xlu0 %436
  %439 = vset.pattern.permute.xlu0 1
  %440 = vperm.xlu0 %439, %v153
  %v441 = vpop.permute.xlu0 %440
  %443 = vset.pattern.permute.xlu0 1
  %444 = vperm.xlu0 %443, %v154
  %v445 = vpop.permute.xlu0 %444
  %447 = vset.pattern.permute.xlu0 1
  %448 = vperm.xlu0 %447, %v155
  %v449 = vpop.permute.xlu0 %448
  %451 = vset.pattern.permute.xlu0 1
  %452 = vperm.xlu0 %451, %v156
  %v453 = vpop.permute.xlu0 %452
  %455 = vset.pattern.permute.xlu0 1
  %456 = vperm.xlu0 %455, %v157
  %v457 = vpop.permute.xlu0 %456
  %459 = vset.pattern.permute.xlu0 1
  %460 = vperm.xlu0 %459, %v158
  %v461 = vpop.permute.xlu0 %460
  %v463 = vmul.f32 %v423, %v433
  %v464 = vmul.f32 %v424, %v437
  %v465 = vmul.f32 %v425, %v441
  %v466 = vmul.f32 %v426, %v445
  %v467 = vmul.f32 %v427, %v449
  %v468 = vmul.f32 %v428, %v453
  %v469 = vmul.f32 %v429, %v457
  %v470 = vmul.f32 %v430, %v461
  %471 = vset.pattern.permute.xlu0 1
  %472 = vperm.xlu0 %471, %v207
  %v473 = vpop.permute.xlu0 %472
  %475 = vset.pattern.permute.xlu0 1
  %476 = vperm.xlu0 %475, %v208
  %v477 = vpop.permute.xlu0 %476
  %479 = vset.pattern.permute.xlu0 1
  %480 = vperm.xlu0 %479, %v209
  %v481 = vpop.permute.xlu0 %480
  %483 = vset.pattern.permute.xlu0 1
  %484 = vperm.xlu0 %483, %v210
  %v485 = vpop.permute.xlu0 %484
  %487 = vset.pattern.permute.xlu0 1
  %488 = vperm.xlu0 %487, %v211
  %v489 = vpop.permute.xlu0 %488
  %491 = vset.pattern.permute.xlu0 1
  %492 = vperm.xlu0 %491, %v212
  %v493 = vpop.permute.xlu0 %492
  %495 = vset.pattern.permute.xlu0 1
  %496 = vperm.xlu0 %495, %v213
  %v497 = vpop.permute.xlu0 %496
  %499 = vset.pattern.permute.xlu0 1
  %500 = vperm.xlu0 %499, %v214
  %v501 = vpop.permute.xlu0 %500
  %v503 = vadd.f32 %v463, %v473
  %v504 = vadd.f32 %v464, %v477
  %v505 = vadd.f32 %v465, %v481
  %v506 = vadd.f32 %v466, %v485
  %v507 = vadd.f32 %v467, %v489
  %v508 = vadd.f32 %v468, %v493
  %v509 = vadd.f32 %v469, %v497
  %v510 = vadd.f32 %v470, %v501
  %v511 = vsel %vm46, %v255, %v503
  %v512 = vsel %vm46, %v256, %v504
  %v513 = vsel %vm46, %v257, %v505
  %v514 = vsel %vm46, %v258, %v506
  %v515 = vsel %vm46, %v259, %v507
  %v516 = vsel %vm46, %v260, %v508
  %v517 = vsel %vm46, %v261, %v509
  %v518 = vsel %vm46, %v262, %v510
  %519 = vrot.lane.b32.xlu0 %v511, 64
  %v520 = vpop.permute.xlu0 %519
  %521 = vrot.lane.b32.xlu0 %v512, 64
  %v522 = vpop.permute.xlu0 %521
  %523 = vrot.lane.b32.xlu0 %v513, 64
  %v524 = vpop.permute.xlu0 %523
  %525 = vrot.lane.b32.xlu0 %v514, 64
  %v526 = vpop.permute.xlu0 %525
  %527 = vrot.lane.b32.xlu0 %v515, 64
  %v528 = vpop.permute.xlu0 %527
  %529 = vrot.lane.b32.xlu0 %v516, 64
  %v530 = vpop.permute.xlu0 %529
  %531 = vrot.lane.b32.xlu0 %v517, 64
  %v532 = vpop.permute.xlu0 %531
  %533 = vrot.lane.b32.xlu0 %v518, 64
  %v534 = vpop.permute.xlu0 %533
  %v535 = vld [vmem:[%s3] sm:$0xff]
  %v536 = vld [vmem:[%s3 + $0x8] sm:$0xff]
  %v537 = vld [vmem:[%s3 + $0x10] sm:$0xff]
  %v538 = vld [vmem:[%s3 + $0x18] sm:$0xff]
  %v539 = vld [vmem:[%s3 + $0x20] sm:$0xff]
  %v540 = vld [vmem:[%s3 + $0x28] sm:$0xff]
  %v541 = vld [vmem:[%s3 + $0x30] sm:$0xff]
  %v542 = vld [vmem:[%s3 + $0x38] sm:$0xff]
  %v543 = vld [vmem:[%s3 + $0x40] sm:$0xff]
  %v544 = vld [vmem:[%s3 + $0x48] sm:$0xff]
  %v545 = vld [vmem:[%s3 + $0x50] sm:$0xff]
  %v546 = vld [vmem:[%s3 + $0x58] sm:$0xff]
  %v547 = vld [vmem:[%s3 + $0x60] sm:$0xff]
  %v548 = vld [vmem:[%s3 + $0x68] sm:$0xff]
  %v549 = vld [vmem:[%s3 + $0x70] sm:$0xff]
  %v550 = vld [vmem:[%s3 + $0x78] sm:$0xff]
  %v551 = vld [vmem:[%s6] sm:$0x1]
  %v553 = vlaneseq
  %v554 = vshrl.u32 %v553, 7
  %v555 = vsub.s32 0, %v554
  %v556 = vrot.slane %v551, %v555
  %558 = vmatprep.subr.mxu0 0.0
  %v559 = vand.u32 %v535, 4294901760
  %560 = vmatpush1.msra.mxu0 %v559
  %561 = vmatprep.subr.mxu0 0.0
  %v562 = vand.u32 %v536, 4294901760
  %563 = vmatpush1.msra.mxu0 %v562
  %564 = vmatprep.subr.mxu0 0.0
  %v565 = vand.u32 %v537, 4294901760
  %566 = vmatpush1.msra.mxu0 %v565
  %567 = vmatprep.subr.mxu0 0.0
  %v568 = vand.u32 %v538, 4294901760
  %569 = vmatpush1.msra.mxu0 %v568
  %570 = vmatprep.subr.mxu0 0.0
  %v571 = vand.u32 %v539, 4294901760
  %572 = vmatpush1.msra.mxu0 %v571
  %573 = vmatprep.subr.mxu0 0.0
  %v574 = vand.u32 %v540, 4294901760
  %575 = vmatpush1.msra.mxu0 %v574
  %576 = vmatprep.subr.mxu0 0.0
  %v577 = vand.u32 %v541, 4294901760
  %578 = vmatpush1.msra.mxu0 %v577
  %579 = vmatprep.subr.mxu0 0.0
  %v580 = vand.u32 %v542, 4294901760
  %581 = vmatpush1.msra.mxu0 %v580
  %582 = vmatprep.subr.mxu0 0.0
  %v583 = vand.u32 %v543, 4294901760
  %584 = vmatpush1.msra.mxu0 %v583
  %585 = vmatprep.subr.mxu0 0.0
  %v586 = vand.u32 %v544, 4294901760
  %587 = vmatpush1.msra.mxu0 %v586
  %588 = vmatprep.subr.mxu0 0.0
  %v589 = vand.u32 %v545, 4294901760
  %590 = vmatpush1.msra.mxu0 %v589
  %591 = vmatprep.subr.mxu0 0.0
  %v592 = vand.u32 %v546, 4294901760
  %593 = vmatpush1.msra.mxu0 %v592
  %594 = vmatprep.subr.mxu0 0.0
  %v595 = vand.u32 %v547, 4294901760
  %596 = vmatpush1.msra.mxu0 %v595
  %597 = vmatprep.subr.mxu0 0.0
  %v598 = vand.u32 %v548, 4294901760
  %599 = vmatpush1.msra.mxu0 %v598
  %600 = vmatprep.subr.mxu0 0.0
  %v601 = vand.u32 %v549, 4294901760
  %602 = vmatpush1.msra.mxu0 %v601
  %603 = vmatprep.subr.mxu0 0.0
  %v604 = vand.u32 %v550, 4294901760
  %605 = vmatpush1.msra.mxu0 %v604
  %606 = vmatprep.subr.mxu0 0.0
  %607 = vmatpush1.msra.mxu0 0.0
  %608 = vmatprep.subr.mxu0 0.0
  %609 = vmatpush1.msra.mxu0 0.0
  %610 = vmatprep.subr.mxu0 0.0
  %611 = vmatpush1.msra.mxu0 0.0
  %612 = vmatprep.subr.mxu0 0.0
  %613 = vmatpush1.msra.mxu0 0.0
  %614 = vmatprep.subr.mxu0 0.0
  %615 = vmatpush1.msra.mxu0 0.0
  %616 = vmatprep.subr.mxu0 0.0
  %617 = vmatpush1.msra.mxu0 0.0
  %618 = vmatprep.subr.mxu0 0.0
  %619 = vmatpush1.msra.mxu0 0.0
  %620 = vmatprep.subr.mxu0 0.0
  %621 = vmatpush1.msra.mxu0 0.0
  %622 = vmatprep.subr.mxu0 0.0
  %623 = vmatpush1.msra.mxu0 0.0
  %624 = vmatprep.subr.mxu0 0.0
  %625 = vmatpush1.msra.mxu0 0.0
  %626 = vmatprep.subr.mxu0 0.0
  %627 = vmatpush1.msra.mxu0 0.0
  %628 = vmatprep.subr.mxu0 0.0
  %629 = vmatpush1.msra.mxu0 0.0
  %630 = vmatprep.subr.mxu0 0.0
  %631 = vmatpush1.msra.mxu0 0.0
  %632 = vmatprep.subr.mxu0 0.0
  %633 = vmatpush1.msra.mxu0 0.0
  %634 = vmatprep.subr.mxu0 0.0
  %635 = vmatpush1.msra.mxu0 0.0
  %636 = vmatprep.subr.mxu0 0.0
  %637 = vmatpush1.msra.mxu0 0.0
  %638 = vmatprep.mubr.f32.mxu0 0.0
  %v639 = vand.u32 %v511, 4294901760
  %v640 = vsub.f32 %v511, %v639
  %v641 = vand.u32 %v640, 4294901760
  %v642 = vsub.f32 %v640, %v641
  %v643 = vand.u32 %v642, 4294901760
  %644 = vmatmul.mubr.f32.gmra.mrb[0].mxu0 %v643
  %v645 = vpop.f32.mrb[0].mxu0
  %v646 = vadd.f32 %v556, %v645
  %v647 = vpop.f32.mrb[0].mxu0
  %648 = vmatprep.mubr.f32.mxu0 0.0
  %v649 = vand.u32 %v512, 4294901760
  %v650 = vsub.f32 %v512, %v649
  %v651 = vand.u32 %v650, 4294901760
  %v652 = vsub.f32 %v650, %v651
  %v653 = vand.u32 %v652, 4294901760
  %654 = vmatmul.mubr.f32.gmra.mrb[0].mxu0 %v653
  %v655 = vpop.f32.mrb[0].mxu0
  %v656 = vadd.f32 %v556, %v655
  %v657 = vpop.f32.mrb[0].mxu0
  %658 = vmatprep.mubr.f32.mxu0 0.0
  %v659 = vand.u32 %v513, 4294901760
  %v660 = vsub.f32 %v513, %v659
  %v661 = vand.u32 %v660, 4294901760
  %v662 = vsub.f32 %v660, %v661
  %v663 = vand.u32 %v662, 4294901760
  %664 = vmatmul.mubr.f32.gmra.mrb[0].mxu0 %v663
  %v665 = vpop.f32.mrb[0].mxu0
  %v666 = vadd.f32 %v556, %v665
  %v667 = vpop.f32.mrb[0].mxu0
  %668 = vmatprep.mubr.f32.mxu0 0.0
  %v669 = vand.u32 %v514, 4294901760
  %v670 = vsub.f32 %v514, %v669
  %v671 = vand.u32 %v670, 4294901760
  %v672 = vsub.f32 %v670, %v671
  %v673 = vand.u32 %v672, 4294901760
  %674 = vmatmul.mubr.f32.gmra.mrb[0].mxu0 %v673
  %v675 = vpop.f32.mrb[0].mxu0
  %v676 = vadd.f32 %v556, %v675
  %v677 = vpop.f32.mrb[0].mxu0
  %678 = vmatprep.mubr.f32.mxu0 0.0
  %v679 = vand.u32 %v515, 4294901760
  %v680 = vsub.f32 %v515, %v679
  %v681 = vand.u32 %v680, 4294901760
  %v682 = vsub.f32 %v680, %v681
  %v683 = vand.u32 %v682, 4294901760
  %684 = vmatmul.mubr.f32.gmra.mrb[0].mxu0 %v683
  %v685 = vpop.f32.mrb[0].mxu0
  %v686 = vadd.f32 %v556, %v685
  %v687 = vpop.f32.mrb[0].mxu0
  %688 = vmatprep.mubr.f32.mxu0 0.0
  %v689 = vand.u32 %v516, 4294901760
  %v690 = vsub.f32 %v516, %v689
  %v691 = vand.u32 %v690, 4294901760
  %v692 = vsub.f32 %v690, %v691
  %v693 = vand.u32 %v692, 4294901760
  %694 = vmatmul.mubr.f32.gmra.mrb[0].mxu0 %v693
  %v695 = vpop.f32.mrb[0].mxu0
  %v696 = vadd.f32 %v556, %v695
  %v697 = vpop.f32.mrb[0].mxu0
  %698 = vmatprep.mubr.f32.mxu0 0.0
  %v699 = vand.u32 %v517, 4294901760
  %v700 = vsub.f32 %v517, %v699
  %v701 = vand.u32 %v700, 4294901760
  %v702 = vsub.f32 %v700, %v701
  %v703 = vand.u32 %v702, 4294901760
  %704 = vmatmul.mubr.f32.gmra.mrb[0].mxu0 %v703
  %v705 = vpop.f32.mrb[0].mxu0
  %v706 = vadd.f32 %v556, %v705
  %v707 = vpop.f32.mrb[0].mxu0
  %708 = vmatprep.mubr.f32.mxu0 0.0
  %v709 = vand.u32 %v518, 4294901760
  %v710 = vsub.f32 %v518, %v709
  %v711 = vand.u32 %v710, 4294901760
  %v712 = vsub.f32 %v710, %v711
  %v713 = vand.u32 %v712, 4294901760
  %714 = vmatmul.mubr.f32.gmra.mrb[0].mxu0 %v713
  %v715 = vpop.f32.mrb[0].mxu0
  %v716 = vadd.f32 %v556, %v715
  %v717 = vpop.f32.mrb[0].mxu0
  %718 = vdwg.mxu0
  %719 = vmatprep.subr.mxu0 0.0
  %v720 = vand.u32 %v535, 4294901760
  %v721 = vsub.f32 %v535, %v720
  %v722 = vand.u32 %v721, 4294901760
  %v723 = vsub.f32 %v721, %v722
  %v724 = vand.u32 %v723, 4294901760
  %725 = vmatpush1.msra.mxu0 %v724
  %726 = vmatprep.subr.mxu0 0.0
  %v727 = vand.u32 %v536, 4294901760
  %v728 = vsub.f32 %v536, %v727
  %v729 = vand.u32 %v728, 4294901760
  %v730 = vsub.f32 %v728, %v729
  %v731 = vand.u32 %v730, 4294901760
  %732 = vmatpush1.msra.mxu0 %v731
  %733 = vmatprep.subr.mxu0 0.0
  %v734 = vand.u32 %v537, 4294901760
  %v735 = vsub.f32 %v537, %v734
  %v736 = vand.u32 %v735, 4294901760
  %v737 = vsub.f32 %v735, %v736
  %v738 = vand.u32 %v737, 4294901760
  %739 = vmatpush1.msra.mxu0 %v738
  %740 = vmatprep.subr.mxu0 0.0
  %v741 = vand.u32 %v538, 4294901760
  %v742 = vsub.f32 %v538, %v741
  %v743 = vand.u32 %v742, 4294901760
  %v744 = vsub.f32 %v742, %v743
  %v745 = vand.u32 %v744, 4294901760
  %746 = vmatpush1.msra.mxu0 %v745
  %747 = vmatprep.subr.mxu0 0.0
  %v748 = vand.u32 %v539, 4294901760
  %v749 = vsub.f32 %v539, %v748
  %v750 = vand.u32 %v749, 4294901760
  %v751 = vsub.f32 %v749, %v750
  %v752 = vand.u32 %v751, 4294901760
  %753 = vmatpush1.msra.mxu0 %v752
  %754 = vmatprep.subr.mxu0 0.0
  %v755 = vand.u32 %v540, 4294901760
  %v756 = vsub.f32 %v540, %v755
  %v757 = vand.u32 %v756, 4294901760
  %v758 = vsub.f32 %v756, %v757
  %v759 = vand.u32 %v758, 4294901760
  %760 = vmatpush1.msra.mxu0 %v759
  %761 = vmatprep.subr.mxu0 0.0
  %v762 = vand.u32 %v541, 4294901760
  %v763 = vsub.f32 %v541, %v762
  %v764 = vand.u32 %v763, 4294901760
  %v765 = vsub.f32 %v763, %v764
  %v766 = vand.u32 %v765, 4294901760
  %767 = vmatpush1.msra.mxu0 %v766
  %768 = vmatprep.subr.mxu0 0.0
  %v769 = vand.u32 %v542, 4294901760
  %v770 = vsub.f32 %v542, %v769
  %v771 = vand.u32 %v770, 4294901760
  %v772 = vsub.f32 %v770, %v771
  %v773 = vand.u32 %v772, 4294901760
  %774 = vmatpush1.msra.mxu0 %v773
  %775 = vmatprep.subr.mxu0 0.0
  %v776 = vand.u32 %v543, 4294901760
  %v777 = vsub.f32 %v543, %v776
  %v778 = vand.u32 %v777, 4294901760
  %v779 = vsub.f32 %v777, %v778
  %v780 = vand.u32 %v779, 4294901760
  %781 = vmatpush1.msra.mxu0 %v780
  %782 = vmatprep.subr.mxu0 0.0
  %v783 = vand.u32 %v544, 4294901760
  %v784 = vsub.f32 %v544, %v783
  %v785 = vand.u32 %v784, 4294901760
  %v786 = vsub.f32 %v784, %v785
  %v787 = vand.u32 %v786, 4294901760
  %788 = vmatpush1.msra.mxu0 %v787
  %789 = vmatprep.subr.mxu0 0.0
  %v790 = vand.u32 %v545, 4294901760
  %v791 = vsub.f32 %v545, %v790
  %v792 = vand.u32 %v791, 4294901760
  %v793 = vsub.f32 %v791, %v792
  %v794 = vand.u32 %v793, 4294901760
  %795 = vmatpush1.msra.mxu0 %v794
  %796 = vmatprep.subr.mxu0 0.0
  %v797 = vand.u32 %v546, 4294901760
  %v798 = vsub.f32 %v546, %v797
  %v799 = vand.u32 %v798, 4294901760
  %v800 = vsub.f32 %v798, %v799
  %v801 = vand.u32 %v800, 4294901760
  %802 = vmatpush1.msra.mxu0 %v801
  %803 = vmatprep.subr.mxu0 0.0
  %v804 = vand.u32 %v547, 4294901760
  %v805 = vsub.f32 %v547, %v804
  %v806 = vand.u32 %v805, 4294901760
  %v807 = vsub.f32 %v805, %v806
  %v808 = vand.u32 %v807, 4294901760
  %809 = vmatpush1.msra.mxu0 %v808
  %810 = vmatprep.subr.mxu0 0.0
  %v811 = vand.u32 %v548, 4294901760
  %v812 = vsub.f32 %v548, %v811
  %v813 = vand.u32 %v812, 4294901760
  %v814 = vsub.f32 %v812, %v813
  %v815 = vand.u32 %v814, 4294901760
  %816 = vmatpush1.msra.mxu0 %v815
  %817 = vmatprep.subr.mxu0 0.0
  %v818 = vand.u32 %v549, 4294901760
  %v819 = vsub.f32 %v549, %v818
  %v820 = vand.u32 %v819, 4294901760
  %v821 = vsub.f32 %v819, %v820
  %v822 = vand.u32 %v821, 4294901760
  %823 = vmatpush1.msra.mxu0 %v822
  %824 = vmatprep.subr.mxu0 0.0
  %v825 = vand.u32 %v550, 4294901760
  %v826 = vsub.f32 %v550, %v825
  %v827 = vand.u32 %v826, 4294901760
  %v828 = vsub.f32 %v826, %v827
  %v829 = vand.u32 %v828, 4294901760
  %830 = vmatpush1.msra.mxu0 %v829
  %831 = vmatprep.subr.mxu0 0.0
  %832 = vmatpush1.msra.mxu0 0.0
  %833 = vmatprep.subr.mxu0 0.0
  %834 = vmatpush1.msra.mxu0 0.0
  %835 = vmatprep.subr.mxu0 0.0
  %836 = vmatpush1.msra.mxu0 0.0
  %837 = vmatprep.subr.mxu0 0.0
  %838 = vmatpush1.msra.mxu0 0.0
  %839 = vmatprep.subr.mxu0 0.0
  %840 = vmatpush1.msra.mxu0 0.0
  %841 = vmatprep.subr.mxu0 0.0
  %842 = vmatpush1.msra.mxu0 0.0
  %843 = vmatprep.subr.mxu0 0.0
  %844 = vmatpush1.msra.mxu0 0.0
  %845 = vmatprep.subr.mxu0 0.0
  %846 = vmatpush1.msra.mxu0 0.0
  %847 = vmatprep.subr.mxu0 0.0
  %848 = vmatpush1.msra.mxu0 0.0
  %849 = vmatprep.subr.mxu0 0.0
  %850 = vmatpush1.msra.mxu0 0.0
  %851 = vmatprep.subr.mxu0 0.0
  %852 = vmatpush1.msra.mxu0 0.0
  %853 = vmatprep.subr.mxu0 0.0
  %854 = vmatpush1.msra.mxu0 0.0
  %855 = vmatprep.subr.mxu0 0.0
  %856 = vmatpush1.msra.mxu0 0.0
  %857 = vmatprep.subr.mxu0 0.0
  %858 = vmatpush1.msra.mxu0 0.0
  %859 = vmatprep.subr.mxu0 0.0
  %860 = vmatpush1.msra.mxu0 0.0
  %861 = vmatprep.subr.mxu0 0.0
  %862 = vmatpush1.msra.mxu0 0.0
  %863 = vmatprep.mubr.f32.mxu0 0.0
  %v864 = vand.u32 %v511, 4294901760
  %865 = vmatmul.mubr.f32.gmra.mrb[0].mxu0 %v864
  %v866 = vpop.f32.mrb[0].mxu0
  %v867 = vadd.f32 %v646, %v866
  %v868 = vpop.f32.mrb[0].mxu0
  %869 = vmatprep.mubr.f32.mxu0 0.0
  %v870 = vand.u32 %v512, 4294901760
  %871 = vmatmul.mubr.f32.gmra.mrb[0].mxu0 %v870
  %v872 = vpop.f32.mrb[0].mxu0
  %v873 = vadd.f32 %v656, %v872
  %v874 = vpop.f32.mrb[0].mxu0
  %875 = vmatprep.mubr.f32.mxu0 0.0
  %v876 = vand.u32 %v513, 4294901760
  %877 = vmatmul.mubr.f32.gmra.mrb[0].mxu0 %v876
  %v878 = vpop.f32.mrb[0].mxu0
  %v879 = vadd.f32 %v666, %v878
  %v880 = vpop.f32.mrb[0].mxu0
  %881 = vmatprep.mubr.f32.mxu0 0.0
  %v882 = vand.u32 %v514, 4294901760
  %883 = vmatmul.mubr.f32.gmra.mrb[0].mxu0 %v882
  %v884 = vpop.f32.mrb[0].mxu0
  %v885 = vadd.f32 %v676, %v884
  %v886 = vpop.f32.mrb[0].mxu0
  %887 = vmatprep.mubr.f32.mxu0 0.0
  %v888 = vand.u32 %v515, 4294901760
  %889 = vmatmul.mubr.f32.gmra.mrb[0].mxu0 %v888
  %v890 = vpop.f32.mrb[0].mxu0
  %v891 = vadd.f32 %v686, %v890
  %v892 = vpop.f32.mrb[0].mxu0
  %893 = vmatprep.mubr.f32.mxu0 0.0
  %v894 = vand.u32 %v516, 4294901760
  %895 = vmatmul.mubr.f32.gmra.mrb[0].mxu0 %v894
  %v896 = vpop.f32.mrb[0].mxu0
  %v897 = vadd.f32 %v696, %v896
  %v898 = vpop.f32.mrb[0].mxu0
  %899 = vmatprep.mubr.f32.mxu0 0.0
  %v900 = vand.u32 %v517, 4294901760
  %901 = vmatmul.mubr.f32.gmra.mrb[0].mxu0 %v900
  %v902 = vpop.f32.mrb[0].mxu0
  %v903 = vadd.f32 %v706, %v902
  %v904 = vpop.f32.mrb[0].mxu0
  %905 = vmatprep.mubr.f32.mxu0 0.0
  %v906 = vand.u32 %v518, 4294901760
  %907 = vmatmul.mubr.f32.gmra.mrb[0].mxu0 %v906
  %v908 = vpop.f32.mrb[0].mxu0
  %v909 = vadd.f32 %v716, %v908
  %v910 = vpop.f32.mrb[0].mxu0
  %911 = vdwg.mxu0
  %912 = vmatprep.subr.mxu0 0.0
  %v913 = vand.u32 %v535, 4294901760
  %v914 = vsub.f32 %v535, %v913
  %915 = vmatpush1.msra.mxu0 %v914
  %916 = vmatprep.subr.mxu0 0.0
  %v917 = vand.u32 %v536, 4294901760
  %v918 = vsub.f32 %v536, %v917
  %919 = vmatpush1.msra.mxu0 %v918
  %920 = vmatprep.subr.mxu0 0.0
  %v921 = vand.u32 %v537, 4294901760
  %v922 = vsub.f32 %v537, %v921
  %923 = vmatpush1.msra.mxu0 %v922
  %924 = vmatprep.subr.mxu0 0.0
  %v925 = vand.u32 %v538, 4294901760
  %v926 = vsub.f32 %v538, %v925
  %927 = vmatpush1.msra.mxu0 %v926
  %928 = vmatprep.subr.mxu0 0.0
  %v929 = vand.u32 %v539, 4294901760
  %v930 = vsub.f32 %v539, %v929
  %931 = vmatpush1.msra.mxu0 %v930
  %932 = vmatprep.subr.mxu0 0.0
  %v933 = vand.u32 %v540, 4294901760
  %v934 = vsub.f32 %v540, %v933
  %935 = vmatpush1.msra.mxu0 %v934
  %936 = vmatprep.subr.mxu0 0.0
  %v937 = vand.u32 %v541, 4294901760
  %v938 = vsub.f32 %v541, %v937
  %939 = vmatpush1.msra.mxu0 %v938
  %940 = vmatprep.subr.mxu0 0.0
  %v941 = vand.u32 %v542, 4294901760
  %v942 = vsub.f32 %v542, %v941
  %943 = vmatpush1.msra.mxu0 %v942
  %944 = vmatprep.subr.mxu0 0.0
  %v945 = vand.u32 %v543, 4294901760
  %v946 = vsub.f32 %v543, %v945
  %947 = vmatpush1.msra.mxu0 %v946
  %948 = vmatprep.subr.mxu0 0.0
  %v949 = vand.u32 %v544, 4294901760
  %v950 = vsub.f32 %v544, %v949
  %951 = vmatpush1.msra.mxu0 %v950
  %952 = vmatprep.subr.mxu0 0.0
  %v953 = vand.u32 %v545, 4294901760
  %v954 = vsub.f32 %v545, %v953
  %955 = vmatpush1.msra.mxu0 %v954
  %956 = vmatprep.subr.mxu0 0.0
  %v957 = vand.u32 %v546, 4294901760
  %v958 = vsub.f32 %v546, %v957
  %959 = vmatpush1.msra.mxu0 %v958
  %960 = vmatprep.subr.mxu0 0.0
  %v961 = vand.u32 %v547, 4294901760
  %v962 = vsub.f32 %v547, %v961
  %963 = vmatpush1.msra.mxu0 %v962
  %964 = vmatprep.subr.mxu0 0.0
  %v965 = vand.u32 %v548, 4294901760
  %v966 = vsub.f32 %v548, %v965
  %967 = vmatpush1.msra.mxu0 %v966
  %968 = vmatprep.subr.mxu0 0.0
  %v969 = vand.u32 %v549, 4294901760
  %v970 = vsub.f32 %v549, %v969
  %971 = vmatpush1.msra.mxu0 %v970
  %972 = vmatprep.subr.mxu0 0.0
  %v973 = vand.u32 %v550, 4294901760
  %v974 = vsub.f32 %v550, %v973
  %975 = vmatpush1.msra.mxu0 %v974
  %976 = vmatprep.subr.mxu0 0.0
  %977 = vmatpush1.msra.mxu0 0.0
  %978 = vmatprep.subr.mxu0 0.0
  %979 = vmatpush1.msra.mxu0 0.0
  %980 = vmatprep.subr.mxu0 0.0
  %981 = vmatpush1.msra.mxu0 0.0
  %982 = vmatprep.subr.mxu0 0.0
  %983 = vmatpush1.msra.mxu0 0.0
  %984 = vmatprep.subr.mxu0 0.0
  %985 = vmatpush1.msra.mxu0 0.0
  %986 = vmatprep.subr.mxu0 0.0
  %987 = vmatpush1.msra.mxu0 0.0
  %988 = vmatprep.subr.mxu0 0.0
  %989 = vmatpush1.msra.mxu0 0.0
  %990 = vmatprep.subr.mxu0 0.0
  %991 = vmatpush1.msra.mxu0 0.0
  %992 = vmatprep.subr.mxu0 0.0
  %993 = vmatpush1.msra.mxu0 0.0
  %994 = vmatprep.subr.mxu0 0.0
  %995 = vmatpush1.msra.mxu0 0.0
  %996 = vmatprep.subr.mxu0 0.0
  %997 = vmatpush1.msra.mxu0 0.0
  %998 = vmatprep.subr.mxu0 0.0
  %999 = vmatpush1.msra.mxu0 0.0
  %1000 = vmatprep.subr.mxu0 0.0
  %1001 = vmatpush1.msra.mxu0 0.0
  %1002 = vmatprep.subr.mxu0 0.0
  %1003 = vmatpush1.msra.mxu0 0.0
  %1004 = vmatprep.subr.mxu0 0.0
  %1005 = vmatpush1.msra.mxu0 0.0
  %1006 = vmatprep.subr.mxu0 0.0
  %1007 = vmatpush1.msra.mxu0 0.0
  %1008 = vmatprep.mubr.f32.mxu0 0.0
  %v1009 = vand.u32 %v511, 4294901760
  %v1010 = vsub.f32 %v511, %v1009
  %1011 = vmatmul.mubr.f32.gmra.mrb[0].mxu0 %v1010
  %v1012 = vpop.f32.mrb[0].mxu0
  %v1013 = vadd.f32 %v867, %v1012
  %v1014 = vpop.f32.mrb[0].mxu0
  %1015 = vmatprep.mubr.f32.mxu0 0.0
  %v1016 = vand.u32 %v512, 4294901760
  %v1017 = vsub.f32 %v512, %v1016
  %1018 = vmatmul.mubr.f32.gmra.mrb[0].mxu0 %v1017
  %v1019 = vpop.f32.mrb[0].mxu0
  %v1020 = vadd.f32 %v873, %v1019
  %v1021 = vpop.f32.mrb[0].mxu0
  %1022 = vmatprep.mubr.f32.mxu0 0.0
  %v1023 = vand.u32 %v513, 4294901760
  %v1024 = vsub.f32 %v513, %v1023
  %1025 = vmatmul.mubr.f32.gmra.mrb[0].mxu0 %v1024
  %v1026 = vpop.f32.mrb[0].mxu0
  %v1027 = vadd.f32 %v879, %v1026
  %v1028 = vpop.f32.mrb[0].mxu0
  %1029 = vmatprep.mubr.f32.mxu0 0.0
  %v1030 = vand.u32 %v514, 4294901760
  %v1031 = vsub.f32 %v514, %v1030
  %1032 = vmatmul.mubr.f32.gmra.mrb[0].mxu0 %v1031
  %v1033 = vpop.f32.mrb[0].mxu0
  %v1034 = vadd.f32 %v885, %v1033
  %v1035 = vpop.f32.mrb[0].mxu0
  %1036 = vmatprep.mubr.f32.mxu0 0.0
  %v1037 = vand.u32 %v515, 4294901760
  %v1038 = vsub.f32 %v515, %v1037
  %1039 = vmatmul.mubr.f32.gmra.mrb[0].mxu0 %v1038
  %v1040 = vpop.f32.mrb[0].mxu0
  %v1041 = vadd.f32 %v891, %v1040
  %v1042 = vpop.f32.mrb[0].mxu0
  %1043 = vmatprep.mubr.f32.mxu0 0.0
  %v1044 = vand.u32 %v516, 4294901760
  %v1045 = vsub.f32 %v516, %v1044
  %1046 = vmatmul.mubr.f32.gmra.mrb[0].mxu0 %v1045
  %v1047 = vpop.f32.mrb[0].mxu0
  %v1048 = vadd.f32 %v897, %v1047
  %v1049 = vpop.f32.mrb[0].mxu0
  %1050 = vmatprep.mubr.f32.mxu0 0.0
  %v1051 = vand.u32 %v517, 4294901760
  %v1052 = vsub.f32 %v517, %v1051
  %1053 = vmatmul.mubr.f32.gmra.mrb[0].mxu0 %v1052
  %v1054 = vpop.f32.mrb[0].mxu0
  %v1055 = vadd.f32 %v903, %v1054
  %v1056 = vpop.f32.mrb[0].mxu0
  %1057 = vmatprep.mubr.f32.mxu0 0.0
  %v1058 = vand.u32 %v518, 4294901760
  %v1059 = vsub.f32 %v518, %v1058
  %1060 = vmatmul.mubr.f32.gmra.mrb[0].mxu0 %v1059
  %v1061 = vpop.f32.mrb[0].mxu0
  %v1062 = vadd.f32 %v909, %v1061
  %v1063 = vpop.f32.mrb[0].mxu0
  %1064 = vdwg.mxu0
  %1065 = vmatprep.subr.mxu0 0.0
  %v1066 = vand.u32 %v535, 4294901760
  %1067 = vmatpush1.msra.mxu0 %v1066
  %1068 = vmatprep.subr.mxu0 0.0
  %v1069 = vand.u32 %v536, 4294901760
  %1070 = vmatpush1.msra.mxu0 %v1069
  %1071 = vmatprep.subr.mxu0 0.0
  %v1072 = vand.u32 %v537, 4294901760
  %1073 = vmatpush1.msra.mxu0 %v1072
  %1074 = vmatprep.subr.mxu0 0.0
  %v1075 = vand.u32 %v538, 4294901760
  %1076 = vmatpush1.msra.mxu0 %v1075
  %1077 = vmatprep.subr.mxu0 0.0
  %v1078 = vand.u32 %v539, 4294901760
  %1079 = vmatpush1.msra.mxu0 %v1078
  %1080 = vmatprep.subr.mxu0 0.0
  %v1081 = vand.u32 %v540, 4294901760
  %1082 = vmatpush1.msra.mxu0 %v1081
  %1083 = vmatprep.subr.mxu0 0.0
  %v1084 = vand.u32 %v541, 4294901760
  %1085 = vmatpush1.msra.mxu0 %v1084
  %1086 = vmatprep.subr.mxu0 0.0
  %v1087 = vand.u32 %v542, 4294901760
  %1088 = vmatpush1.msra.mxu0 %v1087
  %1089 = vmatprep.subr.mxu0 0.0
  %v1090 = vand.u32 %v543, 4294901760
  %1091 = vmatpush1.msra.mxu0 %v1090
  %1092 = vmatprep.subr.mxu0 0.0
  %v1093 = vand.u32 %v544, 4294901760
  %1094 = vmatpush1.msra.mxu0 %v1093
  %1095 = vmatprep.subr.mxu0 0.0
  %v1096 = vand.u32 %v545, 4294901760
  %1097 = vmatpush1.msra.mxu0 %v1096
  %1098 = vmatprep.subr.mxu0 0.0
  %v1099 = vand.u32 %v546, 4294901760
  %1100 = vmatpush1.msra.mxu0 %v1099
  %1101 = vmatprep.subr.mxu0 0.0
  %v1102 = vand.u32 %v547, 4294901760
  %1103 = vmatpush1.msra.mxu0 %v1102
  %1104 = vmatprep.subr.mxu0 0.0
  %v1105 = vand.u32 %v548, 4294901760
  %1106 = vmatpush1.msra.mxu0 %v1105
  %1107 = vmatprep.subr.mxu0 0.0
  %v1108 = vand.u32 %v549, 4294901760
  %1109 = vmatpush1.msra.mxu0 %v1108
  %1110 = vmatprep.subr.mxu0 0.0
  %v1111 = vand.u32 %v550, 4294901760
  %1112 = vmatpush1.msra.mxu0 %v1111
  %1113 = vmatprep.subr.mxu0 0.0
  %1114 = vmatpush1.msra.mxu0 0.0
  %1115 = vmatprep.subr.mxu0 0.0
  %1116 = vmatpush1.msra.mxu0 0.0
  %1117 = vmatprep.subr.mxu0 0.0
  %1118 = vmatpush1.msra.mxu0 0.0
  %1119 = vmatprep.subr.mxu0 0.0
  %1120 = vmatpush1.msra.mxu0 0.0
  %1121 = vmatprep.subr.mxu0 0.0
  %1122 = vmatpush1.msra.mxu0 0.0
  %1123 = vmatprep.subr.mxu0 0.0
  %1124 = vmatpush1.msra.mxu0 0.0
  %1125 = vmatprep.subr.mxu0 0.0
  %1126 = vmatpush1.msra.mxu0 0.0
  %1127 = vmatprep.subr.mxu0 0.0
  %1128 = vmatpush1.msra.mxu0 0.0
  %1129 = vmatprep.subr.mxu0 0.0
  %1130 = vmatpush1.msra.mxu0 0.0
  %1131 = vmatprep.subr.mxu0 0.0
  %1132 = vmatpush1.msra.mxu0 0.0
  %1133 = vmatprep.subr.mxu0 0.0
  %1134 = vmatpush1.msra.mxu0 0.0
  %1135 = vmatprep.subr.mxu0 0.0
  %1136 = vmatpush1.msra.mxu0 0.0
  %1137 = vmatprep.subr.mxu0 0.0
  %1138 = vmatpush1.msra.mxu0 0.0
  %1139 = vmatprep.subr.mxu0 0.0
  %1140 = vmatpush1.msra.mxu0 0.0
  %1141 = vmatprep.subr.mxu0 0.0
  %1142 = vmatpush1.msra.mxu0 0.0
  %1143 = vmatprep.subr.mxu0 0.0
  %1144 = vmatpush1.msra.mxu0 0.0
  %1145 = vmatprep.mubr.f32.mxu0 0.0
  %v1146 = vand.u32 %v511, 4294901760
  %v1147 = vsub.f32 %v511, %v1146
  %v1148 = vand.u32 %v1147, 4294901760
  %1149 = vmatmul.mubr.f32.gmra.mrb[0].mxu0 %v1148
  %v1150 = vpop.f32.mrb[0].mxu0
  %v1151 = vadd.f32 %v1013, %v1150
  %v1152 = vpop.f32.mrb[0].mxu0
  %1153 = vmatprep.mubr.f32.mxu0 0.0
  %v1154 = vand.u32 %v512, 4294901760
  %v1155 = vsub.f32 %v512, %v1154
  %v1156 = vand.u32 %v1155, 4294901760
  %1157 = vmatmul.mubr.f32.gmra.mrb[0].mxu0 %v1156
  %v1158 = vpop.f32.mrb[0].mxu0
  %v1159 = vadd.f32 %v1020, %v1158
  %v1160 = vpop.f32.mrb[0].mxu0
  %1161 = vmatprep.mubr.f32.mxu0 0.0
  %v1162 = vand.u32 %v513, 4294901760
  %v1163 = vsub.f32 %v513, %v1162
  %v1164 = vand.u32 %v1163, 4294901760
  %1165 = vmatmul.mubr.f32.gmra.mrb[0].mxu0 %v1164
  %v1166 = vpop.f32.mrb[0].mxu0
  %v1167 = vadd.f32 %v1027, %v1166
  %v1168 = vpop.f32.mrb[0].mxu0
  %1169 = vmatprep.mubr.f32.mxu0 0.0
  %v1170 = vand.u32 %v514, 4294901760
  %v1171 = vsub.f32 %v514, %v1170
  %v1172 = vand.u32 %v1171, 4294901760
  %1173 = vmatmul.mubr.f32.gmra.mrb[0].mxu0 %v1172
  %v1174 = vpop.f32.mrb[0].mxu0
  %v1175 = vadd.f32 %v1034, %v1174
  %v1176 = vpop.f32.mrb[0].mxu0
  %1177 = vmatprep.mubr.f32.mxu0 0.0
  %v1178 = vand.u32 %v515, 4294901760
  %v1179 = vsub.f32 %v515, %v1178
  %v1180 = vand.u32 %v1179, 4294901760
  %1181 = vmatmul.mubr.f32.gmra.mrb[0].mxu0 %v1180
  %v1182 = vpop.f32.mrb[0].mxu0
  %v1183 = vadd.f32 %v1041, %v1182
  %v1184 = vpop.f32.mrb[0].mxu0
  %1185 = vmatprep.mubr.f32.mxu0 0.0
  %v1186 = vand.u32 %v516, 4294901760
  %v1187 = vsub.f32 %v516, %v1186
  %v1188 = vand.u32 %v1187, 4294901760
  %1189 = vmatmul.mubr.f32.gmra.mrb[0].mxu0 %v1188
  %v1190 = vpop.f32.mrb[0].mxu0
  %v1191 = vadd.f32 %v1048, %v1190
  %v1192 = vpop.f32.mrb[0].mxu0
  %1193 = vmatprep.mubr.f32.mxu0 0.0
  %v1194 = vand.u32 %v517, 4294901760
  %v1195 = vsub.f32 %v517, %v1194
  %v1196 = vand.u32 %v1195, 4294901760
  %1197 = vmatmul.mubr.f32.gmra.mrb[0].mxu0 %v1196
  %v1198 = vpop.f32.mrb[0].mxu0
  %v1199 = vadd.f32 %v1055, %v1198
  %v1200 = vpop.f32.mrb[0].mxu0
  %1201 = vmatprep.mubr.f32.mxu0 0.0
  %v1202 = vand.u32 %v518, 4294901760
  %v1203 = vsub.f32 %v518, %v1202
  %v1204 = vand.u32 %v1203, 4294901760
  %1205 = vmatmul.mubr.f32.gmra.mrb[0].mxu0 %v1204
  %v1206 = vpop.f32.mrb[0].mxu0
  %v1207 = vadd.f32 %v1062, %v1206
  %v1208 = vpop.f32.mrb[0].mxu0
  %1209 = vdwg.mxu0
  %1210 = vmatprep.subr.mxu0 0.0
  %v1211 = vand.u32 %v535, 4294901760
  %v1212 = vsub.f32 %v535, %v1211
  %v1213 = vand.u32 %v1212, 4294901760
  %1214 = vmatpush1.msra.mxu0 %v1213
  %1215 = vmatprep.subr.mxu0 0.0
  %v1216 = vand.u32 %v536, 4294901760
  %v1217 = vsub.f32 %v536, %v1216
  %v1218 = vand.u32 %v1217, 4294901760
  %1219 = vmatpush1.msra.mxu0 %v1218
  %1220 = vmatprep.subr.mxu0 0.0
  %v1221 = vand.u32 %v537, 4294901760
  %v1222 = vsub.f32 %v537, %v1221
  %v1223 = vand.u32 %v1222, 4294901760
  %1224 = vmatpush1.msra.mxu0 %v1223
  %1225 = vmatprep.subr.mxu0 0.0
  %v1226 = vand.u32 %v538, 4294901760
  %v1227 = vsub.f32 %v538, %v1226
  %v1228 = vand.u32 %v1227, 4294901760
  %1229 = vmatpush1.msra.mxu0 %v1228
  %1230 = vmatprep.subr.mxu0 0.0
  %v1231 = vand.u32 %v539, 4294901760
  %v1232 = vsub.f32 %v539, %v1231
  %v1233 = vand.u32 %v1232, 4294901760
  %1234 = vmatpush1.msra.mxu0 %v1233
  %1235 = vmatprep.subr.mxu0 0.0
  %v1236 = vand.u32 %v540, 4294901760
  %v1237 = vsub.f32 %v540, %v1236
  %v1238 = vand.u32 %v1237, 4294901760
  %1239 = vmatpush1.msra.mxu0 %v1238
  %1240 = vmatprep.subr.mxu0 0.0
  %v1241 = vand.u32 %v541, 4294901760
  %v1242 = vsub.f32 %v541, %v1241
  %v1243 = vand.u32 %v1242, 4294901760
  %1244 = vmatpush1.msra.mxu0 %v1243
  %1245 = vmatprep.subr.mxu0 0.0
  %v1246 = vand.u32 %v542, 4294901760
  %v1247 = vsub.f32 %v542, %v1246
  %v1248 = vand.u32 %v1247, 4294901760
  %1249 = vmatpush1.msra.mxu0 %v1248
  %1250 = vmatprep.subr.mxu0 0.0
  %v1251 = vand.u32 %v543, 4294901760
  %v1252 = vsub.f32 %v543, %v1251
  %v1253 = vand.u32 %v1252, 4294901760
  %1254 = vmatpush1.msra.mxu0 %v1253
  %1255 = vmatprep.subr.mxu0 0.0
  %v1256 = vand.u32 %v544, 4294901760
  %v1257 = vsub.f32 %v544, %v1256
  %v1258 = vand.u32 %v1257, 4294901760
  %1259 = vmatpush1.msra.mxu0 %v1258
  %1260 = vmatprep.subr.mxu0 0.0
  %v1261 = vand.u32 %v545, 4294901760
  %v1262 = vsub.f32 %v545, %v1261
  %v1263 = vand.u32 %v1262, 4294901760
  %1264 = vmatpush1.msra.mxu0 %v1263
  %1265 = vmatprep.subr.mxu0 0.0
  %v1266 = vand.u32 %v546, 4294901760
  %v1267 = vsub.f32 %v546, %v1266
  %v1268 = vand.u32 %v1267, 4294901760
  %1269 = vmatpush1.msra.mxu0 %v1268
  %1270 = vmatprep.subr.mxu0 0.0
  %v1271 = vand.u32 %v547, 4294901760
  %v1272 = vsub.f32 %v547, %v1271
  %v1273 = vand.u32 %v1272, 4294901760
  %1274 = vmatpush1.msra.mxu0 %v1273
  %1275 = vmatprep.subr.mxu0 0.0
  %v1276 = vand.u32 %v548, 4294901760
  %v1277 = vsub.f32 %v548, %v1276
  %v1278 = vand.u32 %v1277, 4294901760
  %1279 = vmatpush1.msra.mxu0 %v1278
  %1280 = vmatprep.subr.mxu0 0.0
  %v1281 = vand.u32 %v549, 4294901760
  %v1282 = vsub.f32 %v549, %v1281
  %v1283 = vand.u32 %v1282, 4294901760
  %1284 = vmatpush1.msra.mxu0 %v1283
  %1285 = vmatprep.subr.mxu0 0.0
  %v1286 = vand.u32 %v550, 4294901760
  %v1287 = vsub.f32 %v550, %v1286
  %v1288 = vand.u32 %v1287, 4294901760
  %1289 = vmatpush1.msra.mxu0 %v1288
  %1290 = vmatprep.subr.mxu0 0.0
  %1291 = vmatpush1.msra.mxu0 0.0
  %1292 = vmatprep.subr.mxu0 0.0
  %1293 = vmatpush1.msra.mxu0 0.0
  %1294 = vmatprep.subr.mxu0 0.0
  %1295 = vmatpush1.msra.mxu0 0.0
  %1296 = vmatprep.subr.mxu0 0.0
  %1297 = vmatpush1.msra.mxu0 0.0
  %1298 = vmatprep.subr.mxu0 0.0
  %1299 = vmatpush1.msra.mxu0 0.0
  %1300 = vmatprep.subr.mxu0 0.0
  %1301 = vmatpush1.msra.mxu0 0.0
  %1302 = vmatprep.subr.mxu0 0.0
  %1303 = vmatpush1.msra.mxu0 0.0
  %1304 = vmatprep.subr.mxu0 0.0
  %1305 = vmatpush1.msra.mxu0 0.0
  %1306 = vmatprep.subr.mxu0 0.0
  %1307 = vmatpush1.msra.mxu0 0.0
  %1308 = vmatprep.subr.mxu0 0.0
  %1309 = vmatpush1.msra.mxu0 0.0
  %1310 = vmatprep.subr.mxu0 0.0
  %1311 = vmatpush1.msra.mxu0 0.0
  %1312 = vmatprep.subr.mxu0 0.0
  %1313 = vmatpush1.msra.mxu0 0.0
  %1314 = vmatprep.subr.mxu0 0.0
  %1315 = vmatpush1.msra.mxu0 0.0
  %1316 = vmatprep.subr.mxu0 0.0
  %1317 = vmatpush1.msra.mxu0 0.0
  %1318 = vmatprep.subr.mxu0 0.0
  %1319 = vmatpush1.msra.mxu0 0.0
  %1320 = vmatprep.subr.mxu0 0.0
  %1321 = vmatpush1.msra.mxu0 0.0
  %1322 = vmatprep.mubr.f32.mxu0 0.0
  %v1323 = vand.u32 %v511, 4294901760
  %1324 = vmatmul.mubr.f32.gmra.mrb[0].mxu0 %v1323
  %v1325 = vpop.f32.mrb[0].mxu0
  %v1326 = vadd.f32 %v1151, %v1325
  %v1327 = vpop.f32.mrb[0].mxu0
  %1328 = vmatprep.mubr.f32.mxu0 0.0
  %v1329 = vand.u32 %v512, 4294901760
  %1330 = vmatmul.mubr.f32.gmra.mrb[0].mxu0 %v1329
  %v1331 = vpop.f32.mrb[0].mxu0
  %v1332 = vadd.f32 %v1159, %v1331
  %v1333 = vpop.f32.mrb[0].mxu0
  %1334 = vmatprep.mubr.f32.mxu0 0.0
  %v1335 = vand.u32 %v513, 4294901760
  %1336 = vmatmul.mubr.f32.gmra.mrb[0].mxu0 %v1335
  %v1337 = vpop.f32.mrb[0].mxu0
  %v1338 = vadd.f32 %v1167, %v1337
  %v1339 = vpop.f32.mrb[0].mxu0
  %1340 = vmatprep.mubr.f32.mxu0 0.0
  %v1341 = vand.u32 %v514, 4294901760
  %1342 = vmatmul.mubr.f32.gmra.mrb[0].mxu0 %v1341
  %v1343 = vpop.f32.mrb[0].mxu0
  %v1344 = vadd.f32 %v1175, %v1343
  %v1345 = vpop.f32.mrb[0].mxu0
  %1346 = vmatprep.mubr.f32.mxu0 0.0
  %v1347 = vand.u32 %v515, 4294901760
  %1348 = vmatmul.mubr.f32.gmra.mrb[0].mxu0 %v1347
  %v1349 = vpop.f32.mrb[0].mxu0
  %v1350 = vadd.f32 %v1183, %v1349
  %v1351 = vpop.f32.mrb[0].mxu0
  %1352 = vmatprep.mubr.f32.mxu0 0.0
  %v1353 = vand.u32 %v516, 4294901760
  %1354 = vmatmul.mubr.f32.gmra.mrb[0].mxu0 %v1353
  %v1355 = vpop.f32.mrb[0].mxu0
  %v1356 = vadd.f32 %v1191, %v1355
  %v1357 = vpop.f32.mrb[0].mxu0
  %1358 = vmatprep.mubr.f32.mxu0 0.0
  %v1359 = vand.u32 %v517, 4294901760
  %1360 = vmatmul.mubr.f32.gmra.mrb[0].mxu0 %v1359
  %v1361 = vpop.f32.mrb[0].mxu0
  %v1362 = vadd.f32 %v1199, %v1361
  %v1363 = vpop.f32.mrb[0].mxu0
  %1364 = vmatprep.mubr.f32.mxu0 0.0
  %v1365 = vand.u32 %v518, 4294901760
  %1366 = vmatmul.mubr.f32.gmra.mrb[0].mxu0 %v1365
  %v1367 = vpop.f32.mrb[0].mxu0
  %v1368 = vadd.f32 %v1207, %v1367
  %v1369 = vpop.f32.mrb[0].mxu0
  %1370 = vdwg.mxu0
  %1371 = vmatprep.subr.mxu0 0.0
  %v1372 = vand.u32 %v535, 4294901760
  %1373 = vmatpush1.msra.mxu0 %v1372
  %1374 = vmatprep.subr.mxu0 0.0
  %v1375 = vand.u32 %v536, 4294901760
  %1376 = vmatpush1.msra.mxu0 %v1375
  %1377 = vmatprep.subr.mxu0 0.0
  %v1378 = vand.u32 %v537, 4294901760
  %1379 = vmatpush1.msra.mxu0 %v1378
  %1380 = vmatprep.subr.mxu0 0.0
  %v1381 = vand.u32 %v538, 4294901760
  %1382 = vmatpush1.msra.mxu0 %v1381
  %1383 = vmatprep.subr.mxu0 0.0
  %v1384 = vand.u32 %v539, 4294901760
  %1385 = vmatpush1.msra.mxu0 %v1384
  %1386 = vmatprep.subr.mxu0 0.0
  %v1387 = vand.u32 %v540, 4294901760
  %1388 = vmatpush1.msra.mxu0 %v1387
  %1389 = vmatprep.subr.mxu0 0.0
  %v1390 = vand.u32 %v541, 4294901760
  %1391 = vmatpush1.msra.mxu0 %v1390
  %1392 = vmatprep.subr.mxu0 0.0
  %v1393 = vand.u32 %v542, 4294901760
  %1394 = vmatpush1.msra.mxu0 %v1393
  %1395 = vmatprep.subr.mxu0 0.0
  %v1396 = vand.u32 %v543, 4294901760
  %1397 = vmatpush1.msra.mxu0 %v1396
  %1398 = vmatprep.subr.mxu0 0.0
  %v1399 = vand.u32 %v544, 4294901760
  %1400 = vmatpush1.msra.mxu0 %v1399
  %1401 = vmatprep.subr.mxu0 0.0
  %v1402 = vand.u32 %v545, 4294901760
  %1403 = vmatpush1.msra.mxu0 %v1402
  %1404 = vmatprep.subr.mxu0 0.0
  %v1405 = vand.u32 %v546, 4294901760
  %1406 = vmatpush1.msra.mxu0 %v1405
  %1407 = vmatprep.subr.mxu0 0.0
  %v1408 = vand.u32 %v547, 4294901760
  %1409 = vmatpush1.msra.mxu0 %v1408
  %1410 = vmatprep.subr.mxu0 0.0
  %v1411 = vand.u32 %v548, 4294901760
  %1412 = vmatpush1.msra.mxu0 %v1411
  %1413 = vmatprep.subr.mxu0 0.0
  %v1414 = vand.u32 %v549, 4294901760
  %1415 = vmatpush1.msra.mxu0 %v1414
  %1416 = vmatprep.subr.mxu0 0.0
  %v1417 = vand.u32 %v550, 4294901760
  %1418 = vmatpush1.msra.mxu0 %v1417
  %1419 = vmatprep.subr.mxu0 0.0
  %1420 = vmatpush1.msra.mxu0 0.0
  %1421 = vmatprep.subr.mxu0 0.0
  %1422 = vmatpush1.msra.mxu0 0.0
  %1423 = vmatprep.subr.mxu0 0.0
  %1424 = vmatpush1.msra.mxu0 0.0
  %1425 = vmatprep.subr.mxu0 0.0
  %1426 = vmatpush1.msra.mxu0 0.0
  %1427 = vmatprep.subr.mxu0 0.0
  %1428 = vmatpush1.msra.mxu0 0.0
  %1429 = vmatprep.subr.mxu0 0.0
  %1430 = vmatpush1.msra.mxu0 0.0
  %1431 = vmatprep.subr.mxu0 0.0
  %1432 = vmatpush1.msra.mxu0 0.0
  %1433 = vmatprep.subr.mxu0 0.0
  %1434 = vmatpush1.msra.mxu0 0.0
  %1435 = vmatprep.subr.mxu0 0.0
  %1436 = vmatpush1.msra.mxu0 0.0
  %1437 = vmatprep.subr.mxu0 0.0
  %1438 = vmatpush1.msra.mxu0 0.0
  %1439 = vmatprep.subr.mxu0 0.0
  %1440 = vmatpush1.msra.mxu0 0.0
  %1441 = vmatprep.subr.mxu0 0.0
  %1442 = vmatpush1.msra.mxu0 0.0
  %1443 = vmatprep.subr.mxu0 0.0
  %1444 = vmatpush1.msra.mxu0 0.0
  %1445 = vmatprep.subr.mxu0 0.0
  %1446 = vmatpush1.msra.mxu0 0.0
  %1447 = vmatprep.subr.mxu0 0.0
  %1448 = vmatpush1.msra.mxu0 0.0
  %1449 = vmatprep.subr.mxu0 0.0
  %1450 = vmatpush1.msra.mxu0 0.0
  %1451 = vmatprep.mubr.f32.mxu0 0.0
  %v1452 = vand.u32 %v511, 4294901760
  %1453 = vmatmul.mubr.f32.gmra.mrb[0].mxu0 %v1452
  %v1454 = vpop.f32.mrb[0].mxu0
  %v1455 = vadd.f32 %v1326, %v1454
  %v1456 = vpop.f32.mrb[0].mxu0
  %1457 = vmatprep.mubr.f32.mxu0 0.0
  %v1458 = vand.u32 %v512, 4294901760
  %1459 = vmatmul.mubr.f32.gmra.mrb[0].mxu0 %v1458
  %v1460 = vpop.f32.mrb[0].mxu0
  %v1461 = vadd.f32 %v1332, %v1460
  %v1462 = vpop.f32.mrb[0].mxu0
  %1463 = vmatprep.mubr.f32.mxu0 0.0
  %v1464 = vand.u32 %v513, 4294901760
  %1465 = vmatmul.mubr.f32.gmra.mrb[0].mxu0 %v1464
  %v1466 = vpop.f32.mrb[0].mxu0
  %v1467 = vadd.f32 %v1338, %v1466
  %v1468 = vpop.f32.mrb[0].mxu0
  %1469 = vmatprep.mubr.f32.mxu0 0.0
  %v1470 = vand.u32 %v514, 4294901760
  %1471 = vmatmul.mubr.f32.gmra.mrb[0].mxu0 %v1470
  %v1472 = vpop.f32.mrb[0].mxu0
  %v1473 = vadd.f32 %v1344, %v1472
  %v1474 = vpop.f32.mrb[0].mxu0
  %1475 = vmatprep.mubr.f32.mxu0 0.0
  %v1476 = vand.u32 %v515, 4294901760
  %1477 = vmatmul.mubr.f32.gmra.mrb[0].mxu0 %v1476
  %v1478 = vpop.f32.mrb[0].mxu0
  %v1479 = vadd.f32 %v1350, %v1478
  %v1480 = vpop.f32.mrb[0].mxu0
  %1481 = vmatprep.mubr.f32.mxu0 0.0
  %v1482 = vand.u32 %v516, 4294901760
  %1483 = vmatmul.mubr.f32.gmra.mrb[0].mxu0 %v1482
  %v1484 = vpop.f32.mrb[0].mxu0
  %v1485 = vadd.f32 %v1356, %v1484
  %v1486 = vpop.f32.mrb[0].mxu0
  %1487 = vmatprep.mubr.f32.mxu0 0.0
  %v1488 = vand.u32 %v517, 4294901760
  %1489 = vmatmul.mubr.f32.gmra.mrb[0].mxu0 %v1488
  %v1490 = vpop.f32.mrb[0].mxu0
  %v1491 = vadd.f32 %v1362, %v1490
  %v1492 = vpop.f32.mrb[0].mxu0
  %1493 = vmatprep.mubr.f32.mxu0 0.0
  %v1494 = vand.u32 %v518, 4294901760
  %1495 = vmatmul.mubr.f32.gmra.mrb[0].mxu0 %v1494
  %v1496 = vpop.f32.mrb[0].mxu0
  %v1497 = vadd.f32 %v1368, %v1496
  %v1498 = vpop.f32.mrb[0].mxu0
  %1499 = vdwg.mxu0
  %v1500 = vld [vmem:[%s4] sm:$0xff]
  %v1501 = vld [vmem:[%s4 + $0x8] sm:$0xff]
  %v1502 = vld [vmem:[%s4 + $0x10] sm:$0xff]
  %v1503 = vld [vmem:[%s4 + $0x18] sm:$0xff]
  %v1504 = vld [vmem:[%s4 + $0x20] sm:$0xff]
  %v1505 = vld [vmem:[%s4 + $0x28] sm:$0xff]
  %v1506 = vld [vmem:[%s4 + $0x30] sm:$0xff]
  %v1507 = vld [vmem:[%s4 + $0x38] sm:$0xff]
  %v1508 = vld [vmem:[%s4 + $0x40] sm:$0xff]
  %v1509 = vld [vmem:[%s4 + $0x48] sm:$0xff]
  %v1510 = vld [vmem:[%s4 + $0x50] sm:$0xff]
  %v1511 = vld [vmem:[%s4 + $0x58] sm:$0xff]
  %v1512 = vld [vmem:[%s4 + $0x60] sm:$0xff]
  %v1513 = vld [vmem:[%s4 + $0x68] sm:$0xff]
  %v1514 = vld [vmem:[%s4 + $0x70] sm:$0xff]
  %v1515 = vld [vmem:[%s4 + $0x78] sm:$0xff]
  %v1516 = vld [vmem:[%s4 + $0x80] sm:$0xff]
  %v1517 = vld [vmem:[%s4 + $0x88] sm:$0xff]
  %v1518 = vld [vmem:[%s4 + $0x90] sm:$0xff]
  %v1519 = vld [vmem:[%s4 + $0x98] sm:$0xff]
  %v1520 = vld [vmem:[%s4 + $0xa0] sm:$0xff]
  %v1521 = vld [vmem:[%s4 + $0xa8] sm:$0xff]
  %v1522 = vld [vmem:[%s4 + $0xb0] sm:$0xff]
  %v1523 = vld [vmem:[%s4 + $0xb8] sm:$0xff]
  %v1524 = vld [vmem:[%s4 + $0xc0] sm:$0xff]
  %v1525 = vld [vmem:[%s4 + $0xc8] sm:$0xff]
  %v1526 = vld [vmem:[%s4 + $0xd0] sm:$0xff]
  %v1527 = vld [vmem:[%s4 + $0xd8] sm:$0xff]
  %v1528 = vld [vmem:[%s4 + $0xe0] sm:$0xff]
  %v1529 = vld [vmem:[%s4 + $0xe8] sm:$0xff]
  %v1530 = vld [vmem:[%s4 + $0xf0] sm:$0xff]
  %v1531 = vld [vmem:[%s4 + $0xf8] sm:$0xff]
  %v1532 = vld [vmem:[%s7] sm:$0x3]
  %v1534 = vlaneseq
  %v1535 = vshrl.u32 %v1534, 7
  %v1536 = vsub.s32 0, %v1535
  %v1537 = vrot.slane %v1532, %v1536
  %v1538 = vlaneseq
  %v1539 = vshrl.u32 %v1538, 7
  %v1540 = vsub.s32 1, %v1539
  %v1541 = vrot.slane %v1532, %v1540
  %v1544 = vand.u32 %v1501, 4294901760
  %1545 = vmatprep.subr.mxu0 %v1544
  %v1546 = vand.u32 %v1500, 4294901760
  %1547 = vmatpush1.msra.mxu0 %v1546
  %v1548 = vand.u32 %v1503, 4294901760
  %1549 = vmatprep.subr.mxu0 %v1548
  %v1550 = vand.u32 %v1502, 4294901760
  %1551 = vmatpush1.msra.mxu0 %v1550
  %v1552 = vand.u32 %v1505, 4294901760
  %1553 = vmatprep.subr.mxu0 %v1552
  %v1554 = vand.u32 %v1504, 4294901760
  %1555 = vmatpush1.msra.mxu0 %v1554
  %v1556 = vand.u32 %v1507, 4294901760
  %1557 = vmatprep.subr.mxu0 %v1556
  %v1558 = vand.u32 %v1506, 4294901760
  %1559 = vmatpush1.msra.mxu0 %v1558
  %v1560 = vand.u32 %v1509, 4294901760
  %1561 = vmatprep.subr.mxu0 %v1560
  %v1562 = vand.u32 %v1508, 4294901760
  %1563 = vmatpush1.msra.mxu0 %v1562
  %v1564 = vand.u32 %v1511, 4294901760
  %1565 = vmatprep.subr.mxu0 %v1564
  %v1566 = vand.u32 %v1510, 4294901760
  %1567 = vmatpush1.msra.mxu0 %v1566
  %v1568 = vand.u32 %v1513, 4294901760
  %1569 = vmatprep.subr.mxu0 %v1568
  %v1570 = vand.u32 %v1512, 4294901760
  %1571 = vmatpush1.msra.mxu0 %v1570
  %v1572 = vand.u32 %v1515, 4294901760
  %1573 = vmatprep.subr.mxu0 %v1572
  %v1574 = vand.u32 %v1514, 4294901760
  %1575 = vmatpush1.msra.mxu0 %v1574
  %v1576 = vand.u32 %v1517, 4294901760
  %1577 = vmatprep.subr.mxu0 %v1576
  %v1578 = vand.u32 %v1516, 4294901760
  %1579 = vmatpush1.msra.mxu0 %v1578
  %v1580 = vand.u32 %v1519, 4294901760
  %1581 = vmatprep.subr.mxu0 %v1580
  %v1582 = vand.u32 %v1518, 4294901760
  %1583 = vmatpush1.msra.mxu0 %v1582
  %v1584 = vand.u32 %v1521, 4294901760
  %1585 = vmatprep.subr.mxu0 %v1584
  %v1586 = vand.u32 %v1520, 4294901760
  %1587 = vmatpush1.msra.mxu0 %v1586
  %v1588 = vand.u32 %v1523, 4294901760
  %1589 = vmatprep.subr.mxu0 %v1588
  %v1590 = vand.u32 %v1522, 4294901760
  %1591 = vmatpush1.msra.mxu0 %v1590
  %v1592 = vand.u32 %v1525, 4294901760
  %1593 = vmatprep.subr.mxu0 %v1592
  %v1594 = vand.u32 %v1524, 4294901760
  %1595 = vmatpush1.msra.mxu0 %v1594
  %v1596 = vand.u32 %v1527, 4294901760
  %1597 = vmatprep.subr.mxu0 %v1596
  %v1598 = vand.u32 %v1526, 4294901760
  %1599 = vmatpush1.msra.mxu0 %v1598
  %v1600 = vand.u32 %v1529, 4294901760
  %1601 = vmatprep.subr.mxu0 %v1600
  %v1602 = vand.u32 %v1528, 4294901760
  %1603 = vmatpush1.msra.mxu0 %v1602
  %v1604 = vand.u32 %v1531, 4294901760
  %1605 = vmatprep.subr.mxu0 %v1604
  %v1606 = vand.u32 %v1530, 4294901760
  %1607 = vmatpush1.msra.mxu0 %v1606
  %1608 = vmatprep.subr.mxu0 0.0
  %1609 = vmatpush1.msra.mxu0 0.0
  %1610 = vmatprep.subr.mxu0 0.0
  %1611 = vmatpush1.msra.mxu0 0.0
  %1612 = vmatprep.subr.mxu0 0.0
  %1613 = vmatpush1.msra.mxu0 0.0
  %1614 = vmatprep.subr.mxu0 0.0
  %1615 = vmatpush1.msra.mxu0 0.0
  %1616 = vmatprep.subr.mxu0 0.0
  %1617 = vmatpush1.msra.mxu0 0.0
  %1618 = vmatprep.subr.mxu0 0.0
  %1619 = vmatpush1.msra.mxu0 0.0
  %1620 = vmatprep.subr.mxu0 0.0
  %1621 = vmatpush1.msra.mxu0 0.0
  %1622 = vmatprep.subr.mxu0 0.0
  %1623 = vmatpush1.msra.mxu0 0.0
  %1624 = vmatprep.subr.mxu0 0.0
  %1625 = vmatpush1.msra.mxu0 0.0
  %1626 = vmatprep.subr.mxu0 0.0
  %1627 = vmatpush1.msra.mxu0 0.0
  %1628 = vmatprep.subr.mxu0 0.0
  %1629 = vmatpush1.msra.mxu0 0.0
  %1630 = vmatprep.subr.mxu0 0.0
  %1631 = vmatpush1.msra.mxu0 0.0
  %1632 = vmatprep.subr.mxu0 0.0
  %1633 = vmatpush1.msra.mxu0 0.0
  %1634 = vmatprep.subr.mxu0 0.0
  %1635 = vmatpush1.msra.mxu0 0.0
  %1636 = vmatprep.subr.mxu0 0.0
  %1637 = vmatpush1.msra.mxu0 0.0
  %1638 = vmatprep.subr.mxu0 0.0
  %1639 = vmatpush1.msra.mxu0 0.0
  %1640 = vmatprep.mubr.f32.mxu0 0.0
  %v1641 = vand.u32 %v520, 4294901760
  %v1642 = vsub.f32 %v520, %v1641
  %v1643 = vand.u32 %v1642, 4294901760
  %v1644 = vsub.f32 %v1642, %v1643
  %v1645 = vand.u32 %v1644, 4294901760
  %1646 = vmatmul.mubr.f32.gmra.mrb[0].mxu0 %v1645
  %v1647 = vpop.f32.mrb[0].mxu0
  %v1648 = vadd.f32 %v1537, %v1647
  %v1649 = vpop.f32.mrb[0].mxu0
  %v1650 = vadd.f32 %v1541, %v1649
  %1651 = vmatprep.mubr.f32.mxu0 0.0
  %v1652 = vand.u32 %v522, 4294901760
  %v1653 = vsub.f32 %v522, %v1652
  %v1654 = vand.u32 %v1653, 4294901760
  %v1655 = vsub.f32 %v1653, %v1654
  %v1656 = vand.u32 %v1655, 4294901760
  %1657 = vmatmul.mubr.f32.gmra.mrb[0].mxu0 %v1656
  %v1658 = vpop.f32.mrb[0].mxu0
  %v1659 = vadd.f32 %v1537, %v1658
  %v1660 = vpop.f32.mrb[0].mxu0
  %v1661 = vadd.f32 %v1541, %v1660
  %1662 = vmatprep.mubr.f32.mxu0 0.0
  %v1663 = vand.u32 %v524, 4294901760
  %v1664 = vsub.f32 %v524, %v1663
  %v1665 = vand.u32 %v1664, 4294901760
  %v1666 = vsub.f32 %v1664, %v1665
  %v1667 = vand.u32 %v1666, 4294901760
  %1668 = vmatmul.mubr.f32.gmra.mrb[0].mxu0 %v1667
  %v1669 = vpop.f32.mrb[0].mxu0
  %v1670 = vadd.f32 %v1537, %v1669
  %v1671 = vpop.f32.mrb[0].mxu0
  %v1672 = vadd.f32 %v1541, %v1671
  %1673 = vmatprep.mubr.f32.mxu0 0.0
  %v1674 = vand.u32 %v526, 4294901760
  %v1675 = vsub.f32 %v526, %v1674
  %v1676 = vand.u32 %v1675, 4294901760
  %v1677 = vsub.f32 %v1675, %v1676
  %v1678 = vand.u32 %v1677, 4294901760
  %1679 = vmatmul.mubr.f32.gmra.mrb[0].mxu0 %v1678
  %v1680 = vpop.f32.mrb[0].mxu0
  %v1681 = vadd.f32 %v1537, %v1680
  %v1682 = vpop.f32.mrb[0].mxu0
  %v1683 = vadd.f32 %v1541, %v1682
  %1684 = vmatprep.mubr.f32.mxu0 0.0
  %v1685 = vand.u32 %v528, 4294901760
  %v1686 = vsub.f32 %v528, %v1685
  %v1687 = vand.u32 %v1686, 4294901760
  %v1688 = vsub.f32 %v1686, %v1687
  %v1689 = vand.u32 %v1688, 4294901760
  %1690 = vmatmul.mubr.f32.gmra.mrb[0].mxu0 %v1689
  %v1691 = vpop.f32.mrb[0].mxu0
  %v1692 = vadd.f32 %v1537, %v1691
  %v1693 = vpop.f32.mrb[0].mxu0
  %v1694 = vadd.f32 %v1541, %v1693
  %1695 = vmatprep.mubr.f32.mxu0 0.0
  %v1696 = vand.u32 %v530, 4294901760
  %v1697 = vsub.f32 %v530, %v1696
  %v1698 = vand.u32 %v1697, 4294901760
  %v1699 = vsub.f32 %v1697, %v1698
  %v1700 = vand.u32 %v1699, 4294901760
  %1701 = vmatmul.mubr.f32.gmra.mrb[0].mxu0 %v1700
  %v1702 = vpop.f32.mrb[0].mxu0
  %v1703 = vadd.f32 %v1537, %v1702
  %v1704 = vpop.f32.mrb[0].mxu0
  %v1705 = vadd.f32 %v1541, %v1704
  %1706 = vmatprep.mubr.f32.mxu0 0.0
  %v1707 = vand.u32 %v532, 4294901760
  %v1708 = vsub.f32 %v532, %v1707
  %v1709 = vand.u32 %v1708, 4294901760
  %v1710 = vsub.f32 %v1708, %v1709
  %v1711 = vand.u32 %v1710, 4294901760
  %1712 = vmatmul.mubr.f32.gmra.mrb[0].mxu0 %v1711
  %v1713 = vpop.f32.mrb[0].mxu0
  %v1714 = vadd.f32 %v1537, %v1713
  %v1715 = vpop.f32.mrb[0].mxu0
  %v1716 = vadd.f32 %v1541, %v1715
  %1717 = vmatprep.mubr.f32.mxu0 0.0
  %v1718 = vand.u32 %v534, 4294901760
  %v1719 = vsub.f32 %v534, %v1718
  %v1720 = vand.u32 %v1719, 4294901760
  %v1721 = vsub.f32 %v1719, %v1720
  %v1722 = vand.u32 %v1721, 4294901760
  %1723 = vmatmul.mubr.f32.gmra.mrb[0].mxu0 %v1722
  %v1724 = vpop.f32.mrb[0].mxu0
  %v1725 = vadd.f32 %v1537, %v1724
  %v1726 = vpop.f32.mrb[0].mxu0
  %v1727 = vadd.f32 %v1541, %v1726
  %1728 = vdwg.mxu0
  %v1729 = vand.u32 %v1501, 4294901760
  %v1730 = vsub.f32 %v1501, %v1729
  %v1731 = vand.u32 %v1730, 4294901760
  %v1732 = vsub.f32 %v1730, %v1731
  %v1733 = vand.u32 %v1732, 4294901760
  %1734 = vmatprep.subr.mxu0 %v1733
  %v1735 = vand.u32 %v1500, 4294901760
  %v1736 = vsub.f32 %v1500, %v1735
  %v1737 = vand.u32 %v1736, 4294901760
  %v1738 = vsub.f32 %v1736, %v1737
  %v1739 = vand.u32 %v1738, 4294901760
  %1740 = vmatpush1.msra.mxu0 %v1739
  %v1741 = vand.u32 %v1503, 4294901760
  %v1742 = vsub.f32 %v1503, %v1741
  %v1743 = vand.u32 %v1742, 4294901760
  %v1744 = vsub.f32 %v1742, %v1743
  %v1745 = vand.u32 %v1744, 4294901760
  %1746 = vmatprep.subr.mxu0 %v1745
  %v1747 = vand.u32 %v1502, 4294901760
  %v1748 = vsub.f32 %v1502, %v1747
  %v1749 = vand.u32 %v1748, 4294901760
  %v1750 = vsub.f32 %v1748, %v1749
  %v1751 = vand.u32 %v1750, 4294901760
  %1752 = vmatpush1.msra.mxu0 %v1751
  %v1753 = vand.u32 %v1505, 4294901760
  %v1754 = vsub.f32 %v1505, %v1753
  %v1755 = vand.u32 %v1754, 4294901760
  %v1756 = vsub.f32 %v1754, %v1755
  %v1757 = vand.u32 %v1756, 4294901760
  %1758 = vmatprep.subr.mxu0 %v1757
  %v1759 = vand.u32 %v1504, 4294901760
  %v1760 = vsub.f32 %v1504, %v1759
  %v1761 = vand.u32 %v1760, 4294901760
  %v1762 = vsub.f32 %v1760, %v1761
  %v1763 = vand.u32 %v1762, 4294901760
  %1764 = vmatpush1.msra.mxu0 %v1763
  %v1765 = vand.u32 %v1507, 4294901760
  %v1766 = vsub.f32 %v1507, %v1765
  %v1767 = vand.u32 %v1766, 4294901760
  %v1768 = vsub.f32 %v1766, %v1767
  %v1769 = vand.u32 %v1768, 4294901760
  %1770 = vmatprep.subr.mxu0 %v1769
  %v1771 = vand.u32 %v1506, 4294901760
  %v1772 = vsub.f32 %v1506, %v1771
  %v1773 = vand.u32 %v1772, 4294901760
  %v1774 = vsub.f32 %v1772, %v1773
  %v1775 = vand.u32 %v1774, 4294901760
  %1776 = vmatpush1.msra.mxu0 %v1775
  %v1777 = vand.u32 %v1509, 4294901760
  %v1778 = vsub.f32 %v1509, %v1777
  %v1779 = vand.u32 %v1778, 4294901760
  %v1780 = vsub.f32 %v1778, %v1779
  %v1781 = vand.u32 %v1780, 4294901760
  %1782 = vmatprep.subr.mxu0 %v1781
  %v1783 = vand.u32 %v1508, 4294901760
  %v1784 = vsub.f32 %v1508, %v1783
  %v1785 = vand.u32 %v1784, 4294901760
  %v1786 = vsub.f32 %v1784, %v1785
  %v1787 = vand.u32 %v1786, 4294901760
  %1788 = vmatpush1.msra.mxu0 %v1787
  %v1789 = vand.u32 %v1511, 4294901760
  %v1790 = vsub.f32 %v1511, %v1789
  %v1791 = vand.u32 %v1790, 4294901760
  %v1792 = vsub.f32 %v1790, %v1791
  %v1793 = vand.u32 %v1792, 4294901760
  %1794 = vmatprep.subr.mxu0 %v1793
  %v1795 = vand.u32 %v1510, 4294901760
  %v1796 = vsub.f32 %v1510, %v1795
  %v1797 = vand.u32 %v1796, 4294901760
  %v1798 = vsub.f32 %v1796, %v1797
  %v1799 = vand.u32 %v1798, 4294901760
  %1800 = vmatpush1.msra.mxu0 %v1799
  %v1801 = vand.u32 %v1513, 4294901760
  %v1802 = vsub.f32 %v1513, %v1801
  %v1803 = vand.u32 %v1802, 4294901760
  %v1804 = vsub.f32 %v1802, %v1803
  %v1805 = vand.u32 %v1804, 4294901760
  %1806 = vmatprep.subr.mxu0 %v1805
  %v1807 = vand.u32 %v1512, 4294901760
  %v1808 = vsub.f32 %v1512, %v1807
  %v1809 = vand.u32 %v1808, 4294901760
  %v1810 = vsub.f32 %v1808, %v1809
  %v1811 = vand.u32 %v1810, 4294901760
  %1812 = vmatpush1.msra.mxu0 %v1811
  %v1813 = vand.u32 %v1515, 4294901760
  %v1814 = vsub.f32 %v1515, %v1813
  %v1815 = vand.u32 %v1814, 4294901760
  %v1816 = vsub.f32 %v1814, %v1815
  %v1817 = vand.u32 %v1816, 4294901760
  %1818 = vmatprep.subr.mxu0 %v1817
  %v1819 = vand.u32 %v1514, 4294901760
  %v1820 = vsub.f32 %v1514, %v1819
  %v1821 = vand.u32 %v1820, 4294901760
  %v1822 = vsub.f32 %v1820, %v1821
  %v1823 = vand.u32 %v1822, 4294901760
  %1824 = vmatpush1.msra.mxu0 %v1823
  %v1825 = vand.u32 %v1517, 4294901760
  %v1826 = vsub.f32 %v1517, %v1825
  %v1827 = vand.u32 %v1826, 4294901760
  %v1828 = vsub.f32 %v1826, %v1827
  %v1829 = vand.u32 %v1828, 4294901760
  %1830 = vmatprep.subr.mxu0 %v1829
  %v1831 = vand.u32 %v1516, 4294901760
  %v1832 = vsub.f32 %v1516, %v1831
  %v1833 = vand.u32 %v1832, 4294901760
  %v1834 = vsub.f32 %v1832, %v1833
  %v1835 = vand.u32 %v1834, 4294901760
  %1836 = vmatpush1.msra.mxu0 %v1835
  %v1837 = vand.u32 %v1519, 4294901760
  %v1838 = vsub.f32 %v1519, %v1837
  %v1839 = vand.u32 %v1838, 4294901760
  %v1840 = vsub.f32 %v1838, %v1839
  %v1841 = vand.u32 %v1840, 4294901760
  %1842 = vmatprep.subr.mxu0 %v1841
  %v1843 = vand.u32 %v1518, 4294901760
  %v1844 = vsub.f32 %v1518, %v1843
  %v1845 = vand.u32 %v1844, 4294901760
  %v1846 = vsub.f32 %v1844, %v1845
  %v1847 = vand.u32 %v1846, 4294901760
  %1848 = vmatpush1.msra.mxu0 %v1847
  %v1849 = vand.u32 %v1521, 4294901760
  %v1850 = vsub.f32 %v1521, %v1849
  %v1851 = vand.u32 %v1850, 4294901760
  %v1852 = vsub.f32 %v1850, %v1851
  %v1853 = vand.u32 %v1852, 4294901760
  %1854 = vmatprep.subr.mxu0 %v1853
  %v1855 = vand.u32 %v1520, 4294901760
  %v1856 = vsub.f32 %v1520, %v1855
  %v1857 = vand.u32 %v1856, 4294901760
  %v1858 = vsub.f32 %v1856, %v1857
  %v1859 = vand.u32 %v1858, 4294901760
  %1860 = vmatpush1.msra.mxu0 %v1859
  %v1861 = vand.u32 %v1523, 4294901760
  %v1862 = vsub.f32 %v1523, %v1861
  %v1863 = vand.u32 %v1862, 4294901760
  %v1864 = vsub.f32 %v1862, %v1863
  %v1865 = vand.u32 %v1864, 4294901760
  %1866 = vmatprep.subr.mxu0 %v1865
  %v1867 = vand.u32 %v1522, 4294901760
  %v1868 = vsub.f32 %v1522, %v1867
  %v1869 = vand.u32 %v1868, 4294901760
  %v1870 = vsub.f32 %v1868, %v1869
  %v1871 = vand.u32 %v1870, 4294901760
  %1872 = vmatpush1.msra.mxu0 %v1871
  %v1873 = vand.u32 %v1525, 4294901760
  %v1874 = vsub.f32 %v1525, %v1873
  %v1875 = vand.u32 %v1874, 4294901760
  %v1876 = vsub.f32 %v1874, %v1875
  %v1877 = vand.u32 %v1876, 4294901760
  %1878 = vmatprep.subr.mxu0 %v1877
  %v1879 = vand.u32 %v1524, 4294901760
  %v1880 = vsub.f32 %v1524, %v1879
  %v1881 = vand.u32 %v1880, 4294901760
  %v1882 = vsub.f32 %v1880, %v1881
  %v1883 = vand.u32 %v1882, 4294901760
  %1884 = vmatpush1.msra.mxu0 %v1883
  %v1885 = vand.u32 %v1527, 4294901760
  %v1886 = vsub.f32 %v1527, %v1885
  %v1887 = vand.u32 %v1886, 4294901760
  %v1888 = vsub.f32 %v1886, %v1887
  %v1889 = vand.u32 %v1888, 4294901760
  %1890 = vmatprep.subr.mxu0 %v1889
  %v1891 = vand.u32 %v1526, 4294901760
  %v1892 = vsub.f32 %v1526, %v1891
  %v1893 = vand.u32 %v1892, 4294901760
  %v1894 = vsub.f32 %v1892, %v1893
  %v1895 = vand.u32 %v1894, 4294901760
  %1896 = vmatpush1.msra.mxu0 %v1895
  %v1897 = vand.u32 %v1529, 4294901760
  %v1898 = vsub.f32 %v1529, %v1897
  %v1899 = vand.u32 %v1898, 4294901760
  %v1900 = vsub.f32 %v1898, %v1899
  %v1901 = vand.u32 %v1900, 4294901760
  %1902 = vmatprep.subr.mxu0 %v1901
  %v1903 = vand.u32 %v1528, 4294901760
  %v1904 = vsub.f32 %v1528, %v1903
  %v1905 = vand.u32 %v1904, 4294901760
  %v1906 = vsub.f32 %v1904, %v1905
  %v1907 = vand.u32 %v1906, 4294901760
  %1908 = vmatpush1.msra.mxu0 %v1907
  %v1909 = vand.u32 %v1531, 4294901760
  %v1910 = vsub.f32 %v1531, %v1909
  %v1911 = vand.u32 %v1910, 4294901760
  %v1912 = vsub.f32 %v1910, %v1911
  %v1913 = vand.u32 %v1912, 4294901760
  %1914 = vmatprep.subr.mxu0 %v1913
  %v1915 = vand.u32 %v1530, 4294901760
  %v1916 = vsub.f32 %v1530, %v1915
  %v1917 = vand.u32 %v1916, 4294901760
  %v1918 = vsub.f32 %v1916, %v1917
  %v1919 = vand.u32 %v1918, 4294901760
  %1920 = vmatpush1.msra.mxu0 %v1919
  %1921 = vmatprep.subr.mxu0 0.0
  %1922 = vmatpush1.msra.mxu0 0.0
  %1923 = vmatprep.subr.mxu0 0.0
  %1924 = vmatpush1.msra.mxu0 0.0
  %1925 = vmatprep.subr.mxu0 0.0
  %1926 = vmatpush1.msra.mxu0 0.0
  %1927 = vmatprep.subr.mxu0 0.0
  %1928 = vmatpush1.msra.mxu0 0.0
  %1929 = vmatprep.subr.mxu0 0.0
  %1930 = vmatpush1.msra.mxu0 0.0
  %1931 = vmatprep.subr.mxu0 0.0
  %1932 = vmatpush1.msra.mxu0 0.0
  %1933 = vmatprep.subr.mxu0 0.0
  %1934 = vmatpush1.msra.mxu0 0.0
  %1935 = vmatprep.subr.mxu0 0.0
  %1936 = vmatpush1.msra.mxu0 0.0
  %1937 = vmatprep.subr.mxu0 0.0
  %1938 = vmatpush1.msra.mxu0 0.0
  %1939 = vmatprep.subr.mxu0 0.0
  %1940 = vmatpush1.msra.mxu0 0.0
  %1941 = vmatprep.subr.mxu0 0.0
  %1942 = vmatpush1.msra.mxu0 0.0
  %1943 = vmatprep.subr.mxu0 0.0
  %1944 = vmatpush1.msra.mxu0 0.0
  %1945 = vmatprep.subr.mxu0 0.0
  %1946 = vmatpush1.msra.mxu0 0.0
  %1947 = vmatprep.subr.mxu0 0.0
  %1948 = vmatpush1.msra.mxu0 0.0
  %1949 = vmatprep.subr.mxu0 0.0
  %1950 = vmatpush1.msra.mxu0 0.0
  %1951 = vmatprep.subr.mxu0 0.0
  %1952 = vmatpush1.msra.mxu0 0.0
  %1953 = vmatprep.mubr.f32.mxu0 0.0
  %v1954 = vand.u32 %v520, 4294901760
  %1955 = vmatmul.mubr.f32.gmra.mrb[0].mxu0 %v1954
  %v1956 = vpop.f32.mrb[0].mxu0
  %v1957 = vadd.f32 %v1648, %v1956
  %v1958 = vpop.f32.mrb[0].mxu0
  %v1959 = vadd.f32 %v1650, %v1958
  %1960 = vmatprep.mubr.f32.mxu0 0.0
  %v1961 = vand.u32 %v522, 4294901760
  %1962 = vmatmul.mubr.f32.gmra.mrb[0].mxu0 %v1961
  %v1963 = vpop.f32.mrb[0].mxu0
  %v1964 = vadd.f32 %v1659, %v1963
  %v1965 = vpop.f32.mrb[0].mxu0
  %v1966 = vadd.f32 %v1661, %v1965
  %1967 = vmatprep.mubr.f32.mxu0 0.0
  %v1968 = vand.u32 %v524, 4294901760
  %1969 = vmatmul.mubr.f32.gmra.mrb[0].mxu0 %v1968
  %v1970 = vpop.f32.mrb[0].mxu0
  %v1971 = vadd.f32 %v1670, %v1970
  %v1972 = vpop.f32.mrb[0].mxu0
  %v1973 = vadd.f32 %v1672, %v1972
  %1974 = vmatprep.mubr.f32.mxu0 0.0
  %v1975 = vand.u32 %v526, 4294901760
  %1976 = vmatmul.mubr.f32.gmra.mrb[0].mxu0 %v1975
  %v1977 = vpop.f32.mrb[0].mxu0
  %v1978 = vadd.f32 %v1681, %v1977
  %v1979 = vpop.f32.mrb[0].mxu0
  %v1980 = vadd.f32 %v1683, %v1979
  %1981 = vmatprep.mubr.f32.mxu0 0.0
  %v1982 = vand.u32 %v528, 4294901760
  %1983 = vmatmul.mubr.f32.gmra.mrb[0].mxu0 %v1982
  %v1984 = vpop.f32.mrb[0].mxu0
  %v1985 = vadd.f32 %v1692, %v1984
  %v1986 = vpop.f32.mrb[0].mxu0
  %v1987 = vadd.f32 %v1694, %v1986
  %1988 = vmatprep.mubr.f32.mxu0 0.0
  %v1989 = vand.u32 %v530, 4294901760
  %1990 = vmatmul.mubr.f32.gmra.mrb[0].mxu0 %v1989
  %v1991 = vpop.f32.mrb[0].mxu0
  %v1992 = vadd.f32 %v1703, %v1991
  %v1993 = vpop.f32.mrb[0].mxu0
  %v1994 = vadd.f32 %v1705, %v1993
  %1995 = vmatprep.mubr.f32.mxu0 0.0
  %v1996 = vand.u32 %v532, 4294901760
  %1997 = vmatmul.mubr.f32.gmra.mrb[0].mxu0 %v1996
  %v1998 = vpop.f32.mrb[0].mxu0
  %v1999 = vadd.f32 %v1714, %v1998
  %v2000 = vpop.f32.mrb[0].mxu0
  %v2001 = vadd.f32 %v1716, %v2000
  %2002 = vmatprep.mubr.f32.mxu0 0.0
  %v2003 = vand.u32 %v534, 4294901760
  %2004 = vmatmul.mubr.f32.gmra.mrb[0].mxu0 %v2003
  %v2005 = vpop.f32.mrb[0].mxu0
  %v2006 = vadd.f32 %v1725, %v2005
  %v2007 = vpop.f32.mrb[0].mxu0
  %v2008 = vadd.f32 %v1727, %v2007
  %2009 = vdwg.mxu0
  %v2010 = vand.u32 %v1501, 4294901760
  %v2011 = vsub.f32 %v1501, %v2010
  %2012 = vmatprep.subr.mxu0 %v2011
  %v2013 = vand.u32 %v1500, 4294901760
  %v2014 = vsub.f32 %v1500, %v2013
  %2015 = vmatpush1.msra.mxu0 %v2014
  %v2016 = vand.u32 %v1503, 4294901760
  %v2017 = vsub.f32 %v1503, %v2016
  %2018 = vmatprep.subr.mxu0 %v2017
  %v2019 = vand.u32 %v1502, 4294901760
  %v2020 = vsub.f32 %v1502, %v2019
  %2021 = vmatpush1.msra.mxu0 %v2020
  %v2022 = vand.u32 %v1505, 4294901760
  %v2023 = vsub.f32 %v1505, %v2022
  %2024 = vmatprep.subr.mxu0 %v2023
  %v2025 = vand.u32 %v1504, 4294901760
  %v2026 = vsub.f32 %v1504, %v2025
  %2027 = vmatpush1.msra.mxu0 %v2026
  %v2028 = vand.u32 %v1507, 4294901760
  %v2029 = vsub.f32 %v1507, %v2028
  %2030 = vmatprep.subr.mxu0 %v2029
  %v2031 = vand.u32 %v1506, 4294901760
  %v2032 = vsub.f32 %v1506, %v2031
  %2033 = vmatpush1.msra.mxu0 %v2032
  %v2034 = vand.u32 %v1509, 4294901760
  %v2035 = vsub.f32 %v1509, %v2034
  %2036 = vmatprep.subr.mxu0 %v2035
  %v2037 = vand.u32 %v1508, 4294901760
  %v2038 = vsub.f32 %v1508, %v2037
  %2039 = vmatpush1.msra.mxu0 %v2038
  %v2040 = vand.u32 %v1511, 4294901760
  %v2041 = vsub.f32 %v1511, %v2040
  %2042 = vmatprep.subr.mxu0 %v2041
  %v2043 = vand.u32 %v1510, 4294901760
  %v2044 = vsub.f32 %v1510, %v2043
  %2045 = vmatpush1.msra.mxu0 %v2044
  %v2046 = vand.u32 %v1513, 4294901760
  %v2047 = vsub.f32 %v1513, %v2046
  %2048 = vmatprep.subr.mxu0 %v2047
  %v2049 = vand.u32 %v1512, 4294901760
  %v2050 = vsub.f32 %v1512, %v2049
  %2051 = vmatpush1.msra.mxu0 %v2050
  %v2052 = vand.u32 %v1515, 4294901760
  %v2053 = vsub.f32 %v1515, %v2052
  %2054 = vmatprep.subr.mxu0 %v2053
  %v2055 = vand.u32 %v1514, 4294901760
  %v2056 = vsub.f32 %v1514, %v2055
  %2057 = vmatpush1.msra.mxu0 %v2056
  %v2058 = vand.u32 %v1517, 4294901760
  %v2059 = vsub.f32 %v1517, %v2058
  %2060 = vmatprep.subr.mxu0 %v2059
  %v2061 = vand.u32 %v1516, 4294901760
  %v2062 = vsub.f32 %v1516, %v2061
  %2063 = vmatpush1.msra.mxu0 %v2062
  %v2064 = vand.u32 %v1519, 4294901760
  %v2065 = vsub.f32 %v1519, %v2064
  %2066 = vmatprep.subr.mxu0 %v2065
  %v2067 = vand.u32 %v1518, 4294901760
  %v2068 = vsub.f32 %v1518, %v2067
  %2069 = vmatpush1.msra.mxu0 %v2068
  %v2070 = vand.u32 %v1521, 4294901760
  %v2071 = vsub.f32 %v1521, %v2070
  %2072 = vmatprep.subr.mxu0 %v2071
  %v2073 = vand.u32 %v1520, 4294901760
  %v2074 = vsub.f32 %v1520, %v2073
  %2075 = vmatpush1.msra.mxu0 %v2074
  %v2076 = vand.u32 %v1523, 4294901760
  %v2077 = vsub.f32 %v1523, %v2076
  %2078 = vmatprep.subr.mxu0 %v2077
  %v2079 = vand.u32 %v1522, 4294901760
  %v2080 = vsub.f32 %v1522, %v2079
  %2081 = vmatpush1.msra.mxu0 %v2080
  %v2082 = vand.u32 %v1525, 4294901760
  %v2083 = vsub.f32 %v1525, %v2082
  %2084 = vmatprep.subr.mxu0 %v2083
  %v2085 = vand.u32 %v1524, 4294901760
  %v2086 = vsub.f32 %v1524, %v2085
  %2087 = vmatpush1.msra.mxu0 %v2086
  %v2088 = vand.u32 %v1527, 4294901760
  %v2089 = vsub.f32 %v1527, %v2088
  %2090 = vmatprep.subr.mxu0 %v2089
  %v2091 = vand.u32 %v1526, 4294901760
  %v2092 = vsub.f32 %v1526, %v2091
  %2093 = vmatpush1.msra.mxu0 %v2092
  %v2094 = vand.u32 %v1529, 4294901760
  %v2095 = vsub.f32 %v1529, %v2094
  %2096 = vmatprep.subr.mxu0 %v2095
  %v2097 = vand.u32 %v1528, 4294901760
  %v2098 = vsub.f32 %v1528, %v2097
  %2099 = vmatpush1.msra.mxu0 %v2098
  %v2100 = vand.u32 %v1531, 4294901760
  %v2101 = vsub.f32 %v1531, %v2100
  %2102 = vmatprep.subr.mxu0 %v2101
  %v2103 = vand.u32 %v1530, 4294901760
  %v2104 = vsub.f32 %v1530, %v2103
  %2105 = vmatpush1.msra.mxu0 %v2104
  %2106 = vmatprep.subr.mxu0 0.0
  %2107 = vmatpush1.msra.mxu0 0.0
  %2108 = vmatprep.subr.mxu0 0.0
  %2109 = vmatpush1.msra.mxu0 0.0
  %2110 = vmatprep.subr.mxu0 0.0
  %2111 = vmatpush1.msra.mxu0 0.0
  %2112 = vmatprep.subr.mxu0 0.0
  %2113 = vmatpush1.msra.mxu0 0.0
  %2114 = vmatprep.subr.mxu0 0.0
  %2115 = vmatpush1.msra.mxu0 0.0
  %2116 = vmatprep.subr.mxu0 0.0
  %2117 = vmatpush1.msra.mxu0 0.0
  %2118 = vmatprep.subr.mxu0 0.0
  %2119 = vmatpush1.msra.mxu0 0.0
  %2120 = vmatprep.subr.mxu0 0.0
  %2121 = vmatpush1.msra.mxu0 0.0
  %2122 = vmatprep.subr.mxu0 0.0
  %2123 = vmatpush1.msra.mxu0 0.0
  %2124 = vmatprep.subr.mxu0 0.0
  %2125 = vmatpush1.msra.mxu0 0.0
  %2126 = vmatprep.subr.mxu0 0.0
  %2127 = vmatpush1.msra.mxu0 0.0
  %2128 = vmatprep.subr.mxu0 0.0
  %2129 = vmatpush1.msra.mxu0 0.0
  %2130 = vmatprep.subr.mxu0 0.0
  %2131 = vmatpush1.msra.mxu0 0.0
  %2132 = vmatprep.subr.mxu0 0.0
  %2133 = vmatpush1.msra.mxu0 0.0
  %2134 = vmatprep.subr.mxu0 0.0
  %2135 = vmatpush1.msra.mxu0 0.0
  %2136 = vmatprep.subr.mxu0 0.0
  %2137 = vmatpush1.msra.mxu0 0.0
  %2138 = vmatprep.mubr.f32.mxu0 0.0
  %v2139 = vand.u32 %v520, 4294901760
  %v2140 = vsub.f32 %v520, %v2139
  %2141 = vmatmul.mubr.f32.gmra.mrb[0].mxu0 %v2140
  %v2142 = vpop.f32.mrb[0].mxu0
  %v2143 = vadd.f32 %v1957, %v2142
  %v2144 = vpop.f32.mrb[0].mxu0
  %v2145 = vadd.f32 %v1959, %v2144
  %2146 = vmatprep.mubr.f32.mxu0 0.0
  %v2147 = vand.u32 %v522, 4294901760
  %v2148 = vsub.f32 %v522, %v2147
  %2149 = vmatmul.mubr.f32.gmra.mrb[0].mxu0 %v2148
  %v2150 = vpop.f32.mrb[0].mxu0
  %v2151 = vadd.f32 %v1964, %v2150
  %v2152 = vpop.f32.mrb[0].mxu0
  %v2153 = vadd.f32 %v1966, %v2152
  %2154 = vmatprep.mubr.f32.mxu0 0.0
  %v2155 = vand.u32 %v524, 4294901760
  %v2156 = vsub.f32 %v524, %v2155
  %2157 = vmatmul.mubr.f32.gmra.mrb[0].mxu0 %v2156
  %v2158 = vpop.f32.mrb[0].mxu0
  %v2159 = vadd.f32 %v1971, %v2158
  %v2160 = vpop.f32.mrb[0].mxu0
  %v2161 = vadd.f32 %v1973, %v2160
  %2162 = vmatprep.mubr.f32.mxu0 0.0
  %v2163 = vand.u32 %v526, 4294901760
  %v2164 = vsub.f32 %v526, %v2163
  %2165 = vmatmul.mubr.f32.gmra.mrb[0].mxu0 %v2164
  %v2166 = vpop.f32.mrb[0].mxu0
  %v2167 = vadd.f32 %v1978, %v2166
  %v2168 = vpop.f32.mrb[0].mxu0
  %v2169 = vadd.f32 %v1980, %v2168
  %2170 = vmatprep.mubr.f32.mxu0 0.0
  %v2171 = vand.u32 %v528, 4294901760
  %v2172 = vsub.f32 %v528, %v2171
  %2173 = vmatmul.mubr.f32.gmra.mrb[0].mxu0 %v2172
  %v2174 = vpop.f32.mrb[0].mxu0
  %v2175 = vadd.f32 %v1985, %v2174
  %v2176 = vpop.f32.mrb[0].mxu0
  %v2177 = vadd.f32 %v1987, %v2176
  %2178 = vmatprep.mubr.f32.mxu0 0.0
  %v2179 = vand.u32 %v530, 4294901760
  %v2180 = vsub.f32 %v530, %v2179
  %2181 = vmatmul.mubr.f32.gmra.mrb[0].mxu0 %v2180
  %v2182 = vpop.f32.mrb[0].mxu0
  %v2183 = vadd.f32 %v1992, %v2182
  %v2184 = vpop.f32.mrb[0].mxu0
  %v2185 = vadd.f32 %v1994, %v2184
  %2186 = vmatprep.mubr.f32.mxu0 0.0
  %v2187 = vand.u32 %v532, 4294901760
  %v2188 = vsub.f32 %v532, %v2187
  %2189 = vmatmul.mubr.f32.gmra.mrb[0].mxu0 %v2188
  %v2190 = vpop.f32.mrb[0].mxu0
  %v2191 = vadd.f32 %v1999, %v2190
  %v2192 = vpop.f32.mrb[0].mxu0
  %v2193 = vadd.f32 %v2001, %v2192
  %2194 = vmatprep.mubr.f32.mxu0 0.0
  %v2195 = vand.u32 %v534, 4294901760
  %v2196 = vsub.f32 %v534, %v2195
  %2197 = vmatmul.mubr.f32.gmra.mrb[0].mxu0 %v2196
  %v2198 = vpop.f32.mrb[0].mxu0
  %v2199 = vadd.f32 %v2006, %v2198
  %v2200 = vpop.f32.mrb[0].mxu0
  %v2201 = vadd.f32 %v2008, %v2200
  %2202 = vdwg.mxu0
  %v2203 = vand.u32 %v1501, 4294901760
  %2204 = vmatprep.subr.mxu0 %v2203
  %v2205 = vand.u32 %v1500, 4294901760
  %2206 = vmatpush1.msra.mxu0 %v2205
  %v2207 = vand.u32 %v1503, 4294901760
  %2208 = vmatprep.subr.mxu0 %v2207
  %v2209 = vand.u32 %v1502, 4294901760
  %2210 = vmatpush1.msra.mxu0 %v2209
  %v2211 = vand.u32 %v1505, 4294901760
  %2212 = vmatprep.subr.mxu0 %v2211
  %v2213 = vand.u32 %v1504, 4294901760
  %2214 = vmatpush1.msra.mxu0 %v2213
  %v2215 = vand.u32 %v1507, 4294901760
  %2216 = vmatprep.subr.mxu0 %v2215
  %v2217 = vand.u32 %v1506, 4294901760
  %2218 = vmatpush1.msra.mxu0 %v2217
  %v2219 = vand.u32 %v1509, 4294901760
  %2220 = vmatprep.subr.mxu0 %v2219
  %v2221 = vand.u32 %v1508, 4294901760
  %2222 = vmatpush1.msra.mxu0 %v2221
  %v2223 = vand.u32 %v1511, 4294901760
  %2224 = vmatprep.subr.mxu0 %v2223
  %v2225 = vand.u32 %v1510, 4294901760
  %2226 = vmatpush1.msra.mxu0 %v2225
  %v2227 = vand.u32 %v1513, 4294901760
  %2228 = vmatprep.subr.mxu0 %v2227
  %v2229 = vand.u32 %v1512, 4294901760
  %2230 = vmatpush1.msra.mxu0 %v2229
  %v2231 = vand.u32 %v1515, 4294901760
  %2232 = vmatprep.subr.mxu0 %v2231
  %v2233 = vand.u32 %v1514, 4294901760
  %2234 = vmatpush1.msra.mxu0 %v2233
  %v2235 = vand.u32 %v1517, 4294901760
  %2236 = vmatprep.subr.mxu0 %v2235
  %v2237 = vand.u32 %v1516, 4294901760
  %2238 = vmatpush1.msra.mxu0 %v2237
  %v2239 = vand.u32 %v1519, 4294901760
  %2240 = vmatprep.subr.mxu0 %v2239
  %v2241 = vand.u32 %v1518, 4294901760
  %2242 = vmatpush1.msra.mxu0 %v2241
  %v2243 = vand.u32 %v1521, 4294901760
  %2244 = vmatprep.subr.mxu0 %v2243
  %v2245 = vand.u32 %v1520, 4294901760
  %2246 = vmatpush1.msra.mxu0 %v2245
  %v2247 = vand.u32 %v1523, 4294901760
  %2248 = vmatprep.subr.mxu0 %v2247
  %v2249 = vand.u32 %v1522, 4294901760
  %2250 = vmatpush1.msra.mxu0 %v2249
  %v2251 = vand.u32 %v1525, 4294901760
  %2252 = vmatprep.subr.mxu0 %v2251
  %v2253 = vand.u32 %v1524, 4294901760
  %2254 = vmatpush1.msra.mxu0 %v2253
  %v2255 = vand.u32 %v1527, 4294901760
  %2256 = vmatprep.subr.mxu0 %v2255
  %v2257 = vand.u32 %v1526, 4294901760
  %2258 = vmatpush1.msra.mxu0 %v2257
  %v2259 = vand.u32 %v1529, 4294901760
  %2260 = vmatprep.subr.mxu0 %v2259
  %v2261 = vand.u32 %v1528, 4294901760
  %2262 = vmatpush1.msra.mxu0 %v2261
  %v2263 = vand.u32 %v1531, 4294901760
  %2264 = vmatprep.subr.mxu0 %v2263
  %v2265 = vand.u32 %v1530, 4294901760
  %2266 = vmatpush1.msra.mxu0 %v2265
  %2267 = vmatprep.subr.mxu0 0.0
  %2268 = vmatpush1.msra.mxu0 0.0
  %2269 = vmatprep.subr.mxu0 0.0
  %2270 = vmatpush1.msra.mxu0 0.0
  %2271 = vmatprep.subr.mxu0 0.0
  %2272 = vmatpush1.msra.mxu0 0.0
  %2273 = vmatprep.subr.mxu0 0.0
  %2274 = vmatpush1.msra.mxu0 0.0
  %2275 = vmatprep.subr.mxu0 0.0
  %2276 = vmatpush1.msra.mxu0 0.0
  %2277 = vmatprep.subr.mxu0 0.0
  %2278 = vmatpush1.msra.mxu0 0.0
  %2279 = vmatprep.subr.mxu0 0.0
  %2280 = vmatpush1.msra.mxu0 0.0
  %2281 = vmatprep.subr.mxu0 0.0
  %2282 = vmatpush1.msra.mxu0 0.0
  %2283 = vmatprep.subr.mxu0 0.0
  %2284 = vmatpush1.msra.mxu0 0.0
  %2285 = vmatprep.subr.mxu0 0.0
  %2286 = vmatpush1.msra.mxu0 0.0
  %2287 = vmatprep.subr.mxu0 0.0
  %2288 = vmatpush1.msra.mxu0 0.0
  %2289 = vmatprep.subr.mxu0 0.0
  %2290 = vmatpush1.msra.mxu0 0.0
  %2291 = vmatprep.subr.mxu0 0.0
  %2292 = vmatpush1.msra.mxu0 0.0
  %2293 = vmatprep.subr.mxu0 0.0
  %2294 = vmatpush1.msra.mxu0 0.0
  %2295 = vmatprep.subr.mxu0 0.0
  %2296 = vmatpush1.msra.mxu0 0.0
  %2297 = vmatprep.subr.mxu0 0.0
  %2298 = vmatpush1.msra.mxu0 0.0
  %2299 = vmatprep.mubr.f32.mxu0 0.0
  %v2300 = vand.u32 %v520, 4294901760
  %v2301 = vsub.f32 %v520, %v2300
  %v2302 = vand.u32 %v2301, 4294901760
  %2303 = vmatmul.mubr.f32.gmra.mrb[0].mxu0 %v2302
  %v2304 = vpop.f32.mrb[0].mxu0
  %v2305 = vadd.f32 %v2143, %v2304
  %v2306 = vpop.f32.mrb[0].mxu0
  %v2307 = vadd.f32 %v2145, %v2306
  %2308 = vmatprep.mubr.f32.mxu0 0.0
  %v2309 = vand.u32 %v522, 4294901760
  %v2310 = vsub.f32 %v522, %v2309
  %v2311 = vand.u32 %v2310, 4294901760
  %2312 = vmatmul.mubr.f32.gmra.mrb[0].mxu0 %v2311
  %v2313 = vpop.f32.mrb[0].mxu0
  %v2314 = vadd.f32 %v2151, %v2313
  %v2315 = vpop.f32.mrb[0].mxu0
  %v2316 = vadd.f32 %v2153, %v2315
  %2317 = vmatprep.mubr.f32.mxu0 0.0
  %v2318 = vand.u32 %v524, 4294901760
  %v2319 = vsub.f32 %v524, %v2318
  %v2320 = vand.u32 %v2319, 4294901760
  %2321 = vmatmul.mubr.f32.gmra.mrb[0].mxu0 %v2320
  %v2322 = vpop.f32.mrb[0].mxu0
  %v2323 = vadd.f32 %v2159, %v2322
  %v2324 = vpop.f32.mrb[0].mxu0
  %v2325 = vadd.f32 %v2161, %v2324
  %2326 = vmatprep.mubr.f32.mxu0 0.0
  %v2327 = vand.u32 %v526, 4294901760
  %v2328 = vsub.f32 %v526, %v2327
  %v2329 = vand.u32 %v2328, 4294901760
  %2330 = vmatmul.mubr.f32.gmra.mrb[0].mxu0 %v2329
  %v2331 = vpop.f32.mrb[0].mxu0
  %v2332 = vadd.f32 %v2167, %v2331
  %v2333 = vpop.f32.mrb[0].mxu0
  %v2334 = vadd.f32 %v2169, %v2333
  %2335 = vmatprep.mubr.f32.mxu0 0.0
  %v2336 = vand.u32 %v528, 4294901760
  %v2337 = vsub.f32 %v528, %v2336
  %v2338 = vand.u32 %v2337, 4294901760
  %2339 = vmatmul.mubr.f32.gmra.mrb[0].mxu0 %v2338
  %v2340 = vpop.f32.mrb[0].mxu0
  %v2341 = vadd.f32 %v2175, %v2340
  %v2342 = vpop.f32.mrb[0].mxu0
  %v2343 = vadd.f32 %v2177, %v2342
  %2344 = vmatprep.mubr.f32.mxu0 0.0
  %v2345 = vand.u32 %v530, 4294901760
  %v2346 = vsub.f32 %v530, %v2345
  %v2347 = vand.u32 %v2346, 4294901760
  %2348 = vmatmul.mubr.f32.gmra.mrb[0].mxu0 %v2347
  %v2349 = vpop.f32.mrb[0].mxu0
  %v2350 = vadd.f32 %v2183, %v2349
  %v2351 = vpop.f32.mrb[0].mxu0
  %v2352 = vadd.f32 %v2185, %v2351
  %2353 = vmatprep.mubr.f32.mxu0 0.0
  %v2354 = vand.u32 %v532, 4294901760
  %v2355 = vsub.f32 %v532, %v2354
  %v2356 = vand.u32 %v2355, 4294901760
  %2357 = vmatmul.mubr.f32.gmra.mrb[0].mxu0 %v2356
  %v2358 = vpop.f32.mrb[0].mxu0
  %v2359 = vadd.f32 %v2191, %v2358
  %v2360 = vpop.f32.mrb[0].mxu0
  %v2361 = vadd.f32 %v2193, %v2360
  %2362 = vmatprep.mubr.f32.mxu0 0.0
  %v2363 = vand.u32 %v534, 4294901760
  %v2364 = vsub.f32 %v534, %v2363
  %v2365 = vand.u32 %v2364, 4294901760
  %2366 = vmatmul.mubr.f32.gmra.mrb[0].mxu0 %v2365
  %v2367 = vpop.f32.mrb[0].mxu0
  %v2368 = vadd.f32 %v2199, %v2367
  %v2369 = vpop.f32.mrb[0].mxu0
  %v2370 = vadd.f32 %v2201, %v2369
  %2371 = vdwg.mxu0
  %v2372 = vand.u32 %v1501, 4294901760
  %v2373 = vsub.f32 %v1501, %v2372
  %v2374 = vand.u32 %v2373, 4294901760
  %2375 = vmatprep.subr.mxu0 %v2374
  %v2376 = vand.u32 %v1500, 4294901760
  %v2377 = vsub.f32 %v1500, %v2376
  %v2378 = vand.u32 %v2377, 4294901760
  %2379 = vmatpush1.msra.mxu0 %v2378
  %v2380 = vand.u32 %v1503, 4294901760
  %v2381 = vsub.f32 %v1503, %v2380
  %v2382 = vand.u32 %v2381, 4294901760
  %2383 = vmatprep.subr.mxu0 %v2382
  %v2384 = vand.u32 %v1502, 4294901760
  %v2385 = vsub.f32 %v1502, %v2384
  %v2386 = vand.u32 %v2385, 4294901760
  %2387 = vmatpush1.msra.mxu0 %v2386
  %v2388 = vand.u32 %v1505, 4294901760
  %v2389 = vsub.f32 %v1505, %v2388
  %v2390 = vand.u32 %v2389, 4294901760
  %2391 = vmatprep.subr.mxu0 %v2390
  %v2392 = vand.u32 %v1504, 4294901760
  %v2393 = vsub.f32 %v1504, %v2392
  %v2394 = vand.u32 %v2393, 4294901760
  %2395 = vmatpush1.msra.mxu0 %v2394
  %v2396 = vand.u32 %v1507, 4294901760
  %v2397 = vsub.f32 %v1507, %v2396
  %v2398 = vand.u32 %v2397, 4294901760
  %2399 = vmatprep.subr.mxu0 %v2398
  %v2400 = vand.u32 %v1506, 4294901760
  %v2401 = vsub.f32 %v1506, %v2400
  %v2402 = vand.u32 %v2401, 4294901760
  %2403 = vmatpush1.msra.mxu0 %v2402
  %v2404 = vand.u32 %v1509, 4294901760
  %v2405 = vsub.f32 %v1509, %v2404
  %v2406 = vand.u32 %v2405, 4294901760
  %2407 = vmatprep.subr.mxu0 %v2406
  %v2408 = vand.u32 %v1508, 4294901760
  %v2409 = vsub.f32 %v1508, %v2408
  %v2410 = vand.u32 %v2409, 4294901760
  %2411 = vmatpush1.msra.mxu0 %v2410
  %v2412 = vand.u32 %v1511, 4294901760
  %v2413 = vsub.f32 %v1511, %v2412
  %v2414 = vand.u32 %v2413, 4294901760
  %2415 = vmatprep.subr.mxu0 %v2414
  %v2416 = vand.u32 %v1510, 4294901760
  %v2417 = vsub.f32 %v1510, %v2416
  %v2418 = vand.u32 %v2417, 4294901760
  %2419 = vmatpush1.msra.mxu0 %v2418
  %v2420 = vand.u32 %v1513, 4294901760
  %v2421 = vsub.f32 %v1513, %v2420
  %v2422 = vand.u32 %v2421, 4294901760
  %2423 = vmatprep.subr.mxu0 %v2422
  %v2424 = vand.u32 %v1512, 4294901760
  %v2425 = vsub.f32 %v1512, %v2424
  %v2426 = vand.u32 %v2425, 4294901760
  %2427 = vmatpush1.msra.mxu0 %v2426
  %v2428 = vand.u32 %v1515, 4294901760
  %v2429 = vsub.f32 %v1515, %v2428
  %v2430 = vand.u32 %v2429, 4294901760
  %2431 = vmatprep.subr.mxu0 %v2430
  %v2432 = vand.u32 %v1514, 4294901760
  %v2433 = vsub.f32 %v1514, %v2432
  %v2434 = vand.u32 %v2433, 4294901760
  %2435 = vmatpush1.msra.mxu0 %v2434
  %v2436 = vand.u32 %v1517, 4294901760
  %v2437 = vsub.f32 %v1517, %v2436
  %v2438 = vand.u32 %v2437, 4294901760
  %2439 = vmatprep.subr.mxu0 %v2438
  %v2440 = vand.u32 %v1516, 4294901760
  %v2441 = vsub.f32 %v1516, %v2440
  %v2442 = vand.u32 %v2441, 4294901760
  %2443 = vmatpush1.msra.mxu0 %v2442
  %v2444 = vand.u32 %v1519, 4294901760
  %v2445 = vsub.f32 %v1519, %v2444
  %v2446 = vand.u32 %v2445, 4294901760
  %2447 = vmatprep.subr.mxu0 %v2446
  %v2448 = vand.u32 %v1518, 4294901760
  %v2449 = vsub.f32 %v1518, %v2448
  %v2450 = vand.u32 %v2449, 4294901760
  %2451 = vmatpush1.msra.mxu0 %v2450
  %v2452 = vand.u32 %v1521, 4294901760
  %v2453 = vsub.f32 %v1521, %v2452
  %v2454 = vand.u32 %v2453, 4294901760
  %2455 = vmatprep.subr.mxu0 %v2454
  %v2456 = vand.u32 %v1520, 4294901760
  %v2457 = vsub.f32 %v1520, %v2456
  %v2458 = vand.u32 %v2457, 4294901760
  %2459 = vmatpush1.msra.mxu0 %v2458
  %v2460 = vand.u32 %v1523, 4294901760
  %v2461 = vsub.f32 %v1523, %v2460
  %v2462 = vand.u32 %v2461, 4294901760
  %2463 = vmatprep.subr.mxu0 %v2462
  %v2464 = vand.u32 %v1522, 4294901760
  %v2465 = vsub.f32 %v1522, %v2464
  %v2466 = vand.u32 %v2465, 4294901760
  %2467 = vmatpush1.msra.mxu0 %v2466
  %v2468 = vand.u32 %v1525, 4294901760
  %v2469 = vsub.f32 %v1525, %v2468
  %v2470 = vand.u32 %v2469, 4294901760
  %2471 = vmatprep.subr.mxu0 %v2470
  %v2472 = vand.u32 %v1524, 4294901760
  %v2473 = vsub.f32 %v1524, %v2472
  %v2474 = vand.u32 %v2473, 4294901760
  %2475 = vmatpush1.msra.mxu0 %v2474
  %v2476 = vand.u32 %v1527, 4294901760
  %v2477 = vsub.f32 %v1527, %v2476
  %v2478 = vand.u32 %v2477, 4294901760
  %2479 = vmatprep.subr.mxu0 %v2478
  %v2480 = vand.u32 %v1526, 4294901760
  %v2481 = vsub.f32 %v1526, %v2480
  %v2482 = vand.u32 %v2481, 4294901760
  %2483 = vmatpush1.msra.mxu0 %v2482
  %v2484 = vand.u32 %v1529, 4294901760
  %v2485 = vsub.f32 %v1529, %v2484
  %v2486 = vand.u32 %v2485, 4294901760
  %2487 = vmatprep.subr.mxu0 %v2486
  %v2488 = vand.u32 %v1528, 4294901760
  %v2489 = vsub.f32 %v1528, %v2488
  %v2490 = vand.u32 %v2489, 4294901760
  %2491 = vmatpush1.msra.mxu0 %v2490
  %v2492 = vand.u32 %v1531, 4294901760
  %v2493 = vsub.f32 %v1531, %v2492
  %v2494 = vand.u32 %v2493, 4294901760
  %2495 = vmatprep.subr.mxu0 %v2494
  %v2496 = vand.u32 %v1530, 4294901760
  %v2497 = vsub.f32 %v1530, %v2496
  %v2498 = vand.u32 %v2497, 4294901760
  %2499 = vmatpush1.msra.mxu0 %v2498
  %2500 = vmatprep.subr.mxu0 0.0
  %2501 = vmatpush1.msra.mxu0 0.0
  %2502 = vmatprep.subr.mxu0 0.0
  %2503 = vmatpush1.msra.mxu0 0.0
  %2504 = vmatprep.subr.mxu0 0.0
  %2505 = vmatpush1.msra.mxu0 0.0
  %2506 = vmatprep.subr.mxu0 0.0
  %2507 = vmatpush1.msra.mxu0 0.0
  %2508 = vmatprep.subr.mxu0 0.0
  %2509 = vmatpush1.msra.mxu0 0.0
  %2510 = vmatprep.subr.mxu0 0.0
  %2511 = vmatpush1.msra.mxu0 0.0
  %2512 = vmatprep.subr.mxu0 0.0
  %2513 = vmatpush1.msra.mxu0 0.0
  %2514 = vmatprep.subr.mxu0 0.0
  %2515 = vmatpush1.msra.mxu0 0.0
  %2516 = vmatprep.subr.mxu0 0.0
  %2517 = vmatpush1.msra.mxu0 0.0
  %2518 = vmatprep.subr.mxu0 0.0
  %2519 = vmatpush1.msra.mxu0 0.0
  %2520 = vmatprep.subr.mxu0 0.0
  %2521 = vmatpush1.msra.mxu0 0.0
  %2522 = vmatprep.subr.mxu0 0.0
  %2523 = vmatpush1.msra.mxu0 0.0
  %2524 = vmatprep.subr.mxu0 0.0
  %2525 = vmatpush1.msra.mxu0 0.0
  %2526 = vmatprep.subr.mxu0 0.0
  %2527 = vmatpush1.msra.mxu0 0.0
  %2528 = vmatprep.subr.mxu0 0.0
  %2529 = vmatpush1.msra.mxu0 0.0
  %2530 = vmatprep.subr.mxu0 0.0
  %2531 = vmatpush1.msra.mxu0 0.0
  %2532 = vmatprep.mubr.f32.mxu0 0.0
  %v2533 = vand.u32 %v520, 4294901760
  %2534 = vmatmul.mubr.f32.gmra.mrb[0].mxu0 %v2533
  %v2535 = vpop.f32.mrb[0].mxu0
  %v2536 = vadd.f32 %v2305, %v2535
  %v2537 = vpop.f32.mrb[0].mxu0
  %v2538 = vadd.f32 %v2307, %v2537
  %2539 = vmatprep.mubr.f32.mxu0 0.0
  %v2540 = vand.u32 %v522, 4294901760
  %2541 = vmatmul.mubr.f32.gmra.mrb[0].mxu0 %v2540
  %v2542 = vpop.f32.mrb[0].mxu0
  %v2543 = vadd.f32 %v2314, %v2542
  %v2544 = vpop.f32.mrb[0].mxu0
  %v2545 = vadd.f32 %v2316, %v2544
  %2546 = vmatprep.mubr.f32.mxu0 0.0
  %v2547 = vand.u32 %v524, 4294901760
  %2548 = vmatmul.mubr.f32.gmra.mrb[0].mxu0 %v2547
  %v2549 = vpop.f32.mrb[0].mxu0
  %v2550 = vadd.f32 %v2323, %v2549
  %v2551 = vpop.f32.mrb[0].mxu0
  %v2552 = vadd.f32 %v2325, %v2551
  %2553 = vmatprep.mubr.f32.mxu0 0.0
  %v2554 = vand.u32 %v526, 4294901760
  %2555 = vmatmul.mubr.f32.gmra.mrb[0].mxu0 %v2554
  %v2556 = vpop.f32.mrb[0].mxu0
  %v2557 = vadd.f32 %v2332, %v2556
  %v2558 = vpop.f32.mrb[0].mxu0
  %v2559 = vadd.f32 %v2334, %v2558
  %2560 = vmatprep.mubr.f32.mxu0 0.0
  %v2561 = vand.u32 %v528, 4294901760
  %2562 = vmatmul.mubr.f32.gmra.mrb[0].mxu0 %v2561
  %v2563 = vpop.f32.mrb[0].mxu0
  %v2564 = vadd.f32 %v2341, %v2563
  %v2565 = vpop.f32.mrb[0].mxu0
  %v2566 = vadd.f32 %v2343, %v2565
  %2567 = vmatprep.mubr.f32.mxu0 0.0
  %v2568 = vand.u32 %v530, 4294901760
  %2569 = vmatmul.mubr.f32.gmra.mrb[0].mxu0 %v2568
  %v2570 = vpop.f32.mrb[0].mxu0
  %v2571 = vadd.f32 %v2350, %v2570
  %v2572 = vpop.f32.mrb[0].mxu0
  %v2573 = vadd.f32 %v2352, %v2572
  %2574 = vmatprep.mubr.f32.mxu0 0.0
  %v2575 = vand.u32 %v532, 4294901760
  %2576 = vmatmul.mubr.f32.gmra.mrb[0].mxu0 %v2575
  %v2577 = vpop.f32.mrb[0].mxu0
  %v2578 = vadd.f32 %v2359, %v2577
  %v2579 = vpop.f32.mrb[0].mxu0
  %v2580 = vadd.f32 %v2361, %v2579
  %2581 = vmatprep.mubr.f32.mxu0 0.0
  %v2582 = vand.u32 %v534, 4294901760
  %2583 = vmatmul.mubr.f32.gmra.mrb[0].mxu0 %v2582
  %v2584 = vpop.f32.mrb[0].mxu0
  %v2585 = vadd.f32 %v2368, %v2584
  %v2586 = vpop.f32.mrb[0].mxu0
  %v2587 = vadd.f32 %v2370, %v2586
  %2588 = vdwg.mxu0
  %v2589 = vand.u32 %v1501, 4294901760
  %2590 = vmatprep.subr.mxu0 %v2589
  %v2591 = vand.u32 %v1500, 4294901760
  %2592 = vmatpush1.msra.mxu0 %v2591
  %v2593 = vand.u32 %v1503, 4294901760
  %2594 = vmatprep.subr.mxu0 %v2593
  %v2595 = vand.u32 %v1502, 4294901760
  %2596 = vmatpush1.msra.mxu0 %v2595
  %v2597 = vand.u32 %v1505, 4294901760
  %2598 = vmatprep.subr.mxu0 %v2597
  %v2599 = vand.u32 %v1504, 4294901760
  %2600 = vmatpush1.msra.mxu0 %v2599
  %v2601 = vand.u32 %v1507, 4294901760
  %2602 = vmatprep.subr.mxu0 %v2601
  %v2603 = vand.u32 %v1506, 4294901760
  %2604 = vmatpush1.msra.mxu0 %v2603
  %v2605 = vand.u32 %v1509, 4294901760
  %2606 = vmatprep.subr.mxu0 %v2605
  %v2607 = vand.u32 %v1508, 4294901760
  %2608 = vmatpush1.msra.mxu0 %v2607
  %v2609 = vand.u32 %v1511, 4294901760
  %2610 = vmatprep.subr.mxu0 %v2609
  %v2611 = vand.u32 %v1510, 4294901760
  %2612 = vmatpush1.msra.mxu0 %v2611
  %v2613 = vand.u32 %v1513, 4294901760
  %2614 = vmatprep.subr.mxu0 %v2613
  %v2615 = vand.u32 %v1512, 4294901760
  %2616 = vmatpush1.msra.mxu0 %v2615
  %v2617 = vand.u32 %v1515, 4294901760
  %2618 = vmatprep.subr.mxu0 %v2617
  %v2619 = vand.u32 %v1514, 4294901760
  %2620 = vmatpush1.msra.mxu0 %v2619
  %v2621 = vand.u32 %v1517, 4294901760
  %2622 = vmatprep.subr.mxu0 %v2621
  %v2623 = vand.u32 %v1516, 4294901760
  %2624 = vmatpush1.msra.mxu0 %v2623
  %v2625 = vand.u32 %v1519, 4294901760
  %2626 = vmatprep.subr.mxu0 %v2625
  %v2627 = vand.u32 %v1518, 4294901760
  %2628 = vmatpush1.msra.mxu0 %v2627
  %v2629 = vand.u32 %v1521, 4294901760
  %2630 = vmatprep.subr.mxu0 %v2629
  %v2631 = vand.u32 %v1520, 4294901760
  %2632 = vmatpush1.msra.mxu0 %v2631
  %v2633 = vand.u32 %v1523, 4294901760
  %2634 = vmatprep.subr.mxu0 %v2633
  %v2635 = vand.u32 %v1522, 4294901760
  %2636 = vmatpush1.msra.mxu0 %v2635
  %v2637 = vand.u32 %v1525, 4294901760
  %2638 = vmatprep.subr.mxu0 %v2637
  %v2639 = vand.u32 %v1524, 4294901760
  %2640 = vmatpush1.msra.mxu0 %v2639
  %v2641 = vand.u32 %v1527, 4294901760
  %2642 = vmatprep.subr.mxu0 %v2641
  %v2643 = vand.u32 %v1526, 4294901760
  %2644 = vmatpush1.msra.mxu0 %v2643
  %v2645 = vand.u32 %v1529, 4294901760
  %2646 = vmatprep.subr.mxu0 %v2645
  %v2647 = vand.u32 %v1528, 4294901760
  %2648 = vmatpush1.msra.mxu0 %v2647
  %v2649 = vand.u32 %v1531, 4294901760
  %2650 = vmatprep.subr.mxu0 %v2649
  %v2651 = vand.u32 %v1530, 4294901760
  %2652 = vmatpush1.msra.mxu0 %v2651
  %2653 = vmatprep.subr.mxu0 0.0
  %2654 = vmatpush1.msra.mxu0 0.0
  %2655 = vmatprep.subr.mxu0 0.0
  %2656 = vmatpush1.msra.mxu0 0.0
  %2657 = vmatprep.subr.mxu0 0.0
  %2658 = vmatpush1.msra.mxu0 0.0
  %2659 = vmatprep.subr.mxu0 0.0
  %2660 = vmatpush1.msra.mxu0 0.0
  %2661 = vmatprep.subr.mxu0 0.0
  %2662 = vmatpush1.msra.mxu0 0.0
  %2663 = vmatprep.subr.mxu0 0.0
  %2664 = vmatpush1.msra.mxu0 0.0
  %2665 = vmatprep.subr.mxu0 0.0
  %2666 = vmatpush1.msra.mxu0 0.0
  %2667 = vmatprep.subr.mxu0 0.0
  %2668 = vmatpush1.msra.mxu0 0.0
  %2669 = vmatprep.subr.mxu0 0.0
  %2670 = vmatpush1.msra.mxu0 0.0
  %2671 = vmatprep.subr.mxu0 0.0
  %2672 = vmatpush1.msra.mxu0 0.0
  %2673 = vmatprep.subr.mxu0 0.0
  %2674 = vmatpush1.msra.mxu0 0.0
  %2675 = vmatprep.subr.mxu0 0.0
  %2676 = vmatpush1.msra.mxu0 0.0
  %2677 = vmatprep.subr.mxu0 0.0
  %2678 = vmatpush1.msra.mxu0 0.0
  %2679 = vmatprep.subr.mxu0 0.0
  %2680 = vmatpush1.msra.mxu0 0.0
  %2681 = vmatprep.subr.mxu0 0.0
  %2682 = vmatpush1.msra.mxu0 0.0
  %2683 = vmatprep.subr.mxu0 0.0
  %2684 = vmatpush1.msra.mxu0 0.0
  %2685 = vmatprep.mubr.f32.mxu0 0.0
  %v2686 = vand.u32 %v520, 4294901760
  %2687 = vmatmul.mubr.f32.gmra.mrb[0].mxu0 %v2686
  %v2688 = vpop.f32.mrb[0].mxu0
  %v2689 = vadd.f32 %v2536, %v2688
  %v2690 = vpop.f32.mrb[0].mxu0
  %v2691 = vadd.f32 %v2538, %v2690
  %2692 = vmatprep.mubr.f32.mxu0 0.0
  %v2693 = vand.u32 %v522, 4294901760
  %2694 = vmatmul.mubr.f32.gmra.mrb[0].mxu0 %v2693
  %v2695 = vpop.f32.mrb[0].mxu0
  %v2696 = vadd.f32 %v2543, %v2695
  %v2697 = vpop.f32.mrb[0].mxu0
  %v2698 = vadd.f32 %v2545, %v2697
  %2699 = vmatprep.mubr.f32.mxu0 0.0
  %v2700 = vand.u32 %v524, 4294901760
  %2701 = vmatmul.mubr.f32.gmra.mrb[0].mxu0 %v2700
  %v2702 = vpop.f32.mrb[0].mxu0
  %v2703 = vadd.f32 %v2550, %v2702
  %v2704 = vpop.f32.mrb[0].mxu0
  %v2705 = vadd.f32 %v2552, %v2704
  %2706 = vmatprep.mubr.f32.mxu0 0.0
  %v2707 = vand.u32 %v526, 4294901760
  %2708 = vmatmul.mubr.f32.gmra.mrb[0].mxu0 %v2707
  %v2709 = vpop.f32.mrb[0].mxu0
  %v2710 = vadd.f32 %v2557, %v2709
  %v2711 = vpop.f32.mrb[0].mxu0
  %v2712 = vadd.f32 %v2559, %v2711
  %2713 = vmatprep.mubr.f32.mxu0 0.0
  %v2714 = vand.u32 %v528, 4294901760
  %2715 = vmatmul.mubr.f32.gmra.mrb[0].mxu0 %v2714
  %v2716 = vpop.f32.mrb[0].mxu0
  %v2717 = vadd.f32 %v2564, %v2716
  %v2718 = vpop.f32.mrb[0].mxu0
  %v2719 = vadd.f32 %v2566, %v2718
  %2720 = vmatprep.mubr.f32.mxu0 0.0
  %v2721 = vand.u32 %v530, 4294901760
  %2722 = vmatmul.mubr.f32.gmra.mrb[0].mxu0 %v2721
  %v2723 = vpop.f32.mrb[0].mxu0
  %v2724 = vadd.f32 %v2571, %v2723
  %v2725 = vpop.f32.mrb[0].mxu0
  %v2726 = vadd.f32 %v2573, %v2725
  %2727 = vmatprep.mubr.f32.mxu0 0.0
  %v2728 = vand.u32 %v532, 4294901760
  %2729 = vmatmul.mubr.f32.gmra.mrb[0].mxu0 %v2728
  %v2730 = vpop.f32.mrb[0].mxu0
  %v2731 = vadd.f32 %v2578, %v2730
  %v2732 = vpop.f32.mrb[0].mxu0
  %v2733 = vadd.f32 %v2580, %v2732
  %2734 = vmatprep.mubr.f32.mxu0 0.0
  %v2735 = vand.u32 %v534, 4294901760
  %2736 = vmatmul.mubr.f32.gmra.mrb[0].mxu0 %v2735
  %v2737 = vpop.f32.mrb[0].mxu0
  %v2738 = vadd.f32 %v2585, %v2737
  %v2739 = vpop.f32.mrb[0].mxu0
  %v2740 = vadd.f32 %v2587, %v2739
  %2741 = vdwg.mxu0
  %v2742 = vlaneseq
  %v2743 = vand.u32 %v2742, 127
  %vm2744 = vcmp.lt.s32.totalorder %v2743, 0
  %v2745 = vsub.s32 0, %v2743
  %v2746 = vsel %vm2744, %v2745, %v2743
  %v2747 = vshrl.u32 %v2746, 4
  %v2748 = vand.u32 %v2746, 15
  %v2749 = vsub.s32 0, %v2748
  %v2750 = vsel %vm2744, %v2749, %v2748
  %vm2751 = vcmp.ne.s32.totalorder %v2750, 0
  %vm2752 = vcmp.lt.s32.totalorder %v2750, 0
  %vm2753 = vmand %vm2752, %vm2751
  %v2754 = vadd.s32 %v2750, 16
  %v2755 = vsel %vm2753, %v2754, %v2750
  %vm2756 = vcmp.ge.s32.totalorder %v2755, 1
  %vm2757 = vcmp.ge.s32.totalorder %v2755, 2
  %vm2758 = vcmp.ge.s32.totalorder %v2755, 4
  %vm2759 = vcmp.ge.s32.totalorder %v2755, 8
  %v2760 = vmul.f32 %v1455, %v2689
  %v2761 = vmul.f32 %v1461, %v2696
  %v2762 = vmul.f32 %v1467, %v2703
  %v2763 = vmul.f32 %v1473, %v2710
  %2764 = vrot.lane.b32.xlu0 %v2760, 1
  %v2765 = vpop.permute.xlu0 %2764
  %2766 = vrot.lane.b32.xlu0 %v2761, 1
  %v2767 = vpop.permute.xlu0 %2766
  %2768 = vrot.lane.b32.xlu0 %v2762, 1
  %v2769 = vpop.permute.xlu0 %2768
  %2770 = vrot.lane.b32.xlu0 %v2763, 1
  %v2771 = vpop.permute.xlu0 %2770
  %2772 = vrot.lane.b32.xlu0 %v2760, 113
  %v2773 = vpop.permute.xlu0 %2772
  %2774 = vrot.lane.b32.xlu0 %v2761, 113
  %v2775 = vpop.permute.xlu0 %2774
  %2776 = vrot.lane.b32.xlu0 %v2762, 113
  %v2777 = vpop.permute.xlu0 %2776
  %2778 = vrot.lane.b32.xlu0 %v2763, 113
  %v2779 = vpop.permute.xlu0 %2778
  %v2780 = vsel %vm2756, %v2765, %v2773
  %v2781 = vsel %vm2756, %v2767, %v2775
  %v2782 = vsel %vm2756, %v2769, %v2777
  %v2783 = vsel %vm2756, %v2771, %v2779
  %v2784 = vadd.f32 %v2760, %v2780
  %v2785 = vadd.f32 %v2761, %v2781
  %v2786 = vadd.f32 %v2762, %v2782
  %v2787 = vadd.f32 %v2763, %v2783
  %2788 = vrot.lane.b32.xlu0 %v2784, 2
  %v2789 = vpop.permute.xlu0 %2788
  %2790 = vrot.lane.b32.xlu0 %v2785, 2
  %v2791 = vpop.permute.xlu0 %2790
  %2792 = vrot.lane.b32.xlu0 %v2786, 2
  %v2793 = vpop.permute.xlu0 %2792
  %2794 = vrot.lane.b32.xlu0 %v2787, 2
  %v2795 = vpop.permute.xlu0 %2794
  %2796 = vrot.lane.b32.xlu0 %v2784, 114
  %v2797 = vpop.permute.xlu0 %2796
  %2798 = vrot.lane.b32.xlu0 %v2785, 114
  %v2799 = vpop.permute.xlu0 %2798
  %2800 = vrot.lane.b32.xlu0 %v2786, 114
  %v2801 = vpop.permute.xlu0 %2800
  %2802 = vrot.lane.b32.xlu0 %v2787, 114
  %v2803 = vpop.permute.xlu0 %2802
  %v2804 = vsel %vm2757, %v2789, %v2797
  %v2805 = vsel %vm2757, %v2791, %v2799
  %v2806 = vsel %vm2757, %v2793, %v2801
  %v2807 = vsel %vm2757, %v2795, %v2803
  %v2808 = vadd.f32 %v2784, %v2804
  %v2809 = vadd.f32 %v2785, %v2805
  %v2810 = vadd.f32 %v2786, %v2806
  %v2811 = vadd.f32 %v2787, %v2807
  %2812 = vrot.lane.b32.xlu0 %v2808, 4
  %v2813 = vpop.permute.xlu0 %2812
  %2814 = vrot.lane.b32.xlu0 %v2809, 4
  %v2815 = vpop.permute.xlu0 %2814
  %2816 = vrot.lane.b32.xlu0 %v2810, 4
  %v2817 = vpop.permute.xlu0 %2816
  %2818 = vrot.lane.b32.xlu0 %v2811, 4
  %v2819 = vpop.permute.xlu0 %2818
  %2820 = vrot.lane.b32.xlu0 %v2808, 116
  %v2821 = vpop.permute.xlu0 %2820
  %2822 = vrot.lane.b32.xlu0 %v2809, 116
  %v2823 = vpop.permute.xlu0 %2822
  %2824 = vrot.lane.b32.xlu0 %v2810, 116
  %v2825 = vpop.permute.xlu0 %2824
  %2826 = vrot.lane.b32.xlu0 %v2811, 116
  %v2827 = vpop.permute.xlu0 %2826
  %v2828 = vsel %vm2758, %v2813, %v2821
  %v2829 = vsel %vm2758, %v2815, %v2823
  %v2830 = vsel %vm2758, %v2817, %v2825
  %v2831 = vsel %vm2758, %v2819, %v2827
  %v2832 = vadd.f32 %v2808, %v2828
  %v2833 = vadd.f32 %v2809, %v2829
  %v2834 = vadd.f32 %v2810, %v2830
  %v2835 = vadd.f32 %v2811, %v2831
  %2836 = vrot.lane.b32.xlu0 %v2832, 8
  %v2837 = vpop.permute.xlu0 %2836
  %2838 = vrot.lane.b32.xlu0 %v2833, 8
  %v2839 = vpop.permute.xlu0 %2838
  %2840 = vrot.lane.b32.xlu0 %v2834, 8
  %v2841 = vpop.permute.xlu0 %2840
  %2842 = vrot.lane.b32.xlu0 %v2835, 8
  %v2843 = vpop.permute.xlu0 %2842
  %2844 = vrot.lane.b32.xlu0 %v2832, 120
  %v2845 = vpop.permute.xlu0 %2844
  %2846 = vrot.lane.b32.xlu0 %v2833, 120
  %v2847 = vpop.permute.xlu0 %2846
  %2848 = vrot.lane.b32.xlu0 %v2834, 120
  %v2849 = vpop.permute.xlu0 %2848
  %2850 = vrot.lane.b32.xlu0 %v2835, 120
  %v2851 = vpop.permute.xlu0 %2850
  %v2852 = vsel %vm2759, %v2837, %v2845
  %v2853 = vsel %vm2759, %v2839, %v2847
  %v2854 = vsel %vm2759, %v2841, %v2849
  %v2855 = vsel %vm2759, %v2843, %v2851
  %v2856 = vadd.f32 %v2832, %v2852
  %v2857 = vadd.f32 %v2833, %v2853
  %v2858 = vadd.f32 %v2834, %v2854
  %v2859 = vadd.f32 %v2835, %v2855
  %v2860 = vmul.f32 %v1455, %v2717
  %v2861 = vmul.f32 %v1461, %v2724
  %v2862 = vmul.f32 %v1467, %v2731
  %v2863 = vmul.f32 %v1473, %v2738
  %2864 = vrot.lane.b32.xlu0 %v2860, 1
  %v2865 = vpop.permute.xlu0 %2864
  %2866 = vrot.lane.b32.xlu0 %v2861, 1
  %v2867 = vpop.permute.xlu0 %2866
  %2868 = vrot.lane.b32.xlu0 %v2862, 1
  %v2869 = vpop.permute.xlu0 %2868
  %2870 = vrot.lane.b32.xlu0 %v2863, 1
  %v2871 = vpop.permute.xlu0 %2870
  %2872 = vrot.lane.b32.xlu0 %v2860, 113
  %v2873 = vpop.permute.xlu0 %2872
  %2874 = vrot.lane.b32.xlu0 %v2861, 113
  %v2875 = vpop.permute.xlu0 %2874
  %2876 = vrot.lane.b32.xlu0 %v2862, 113
  %v2877 = vpop.permute.xlu0 %2876
  %2878 = vrot.lane.b32.xlu0 %v2863, 113
  %v2879 = vpop.permute.xlu0 %2878
  %v2880 = vsel %vm2756, %v2865, %v2873
  %v2881 = vsel %vm2756, %v2867, %v2875
  %v2882 = vsel %vm2756, %v2869, %v2877
  %v2883 = vsel %vm2756, %v2871, %v2879
  %v2884 = vadd.f32 %v2860, %v2880
  %v2885 = vadd.f32 %v2861, %v2881
  %v2886 = vadd.f32 %v2862, %v2882
  %v2887 = vadd.f32 %v2863, %v2883
  %2888 = vrot.lane.b32.xlu0 %v2884, 2
  %v2889 = vpop.permute.xlu0 %2888
  %2890 = vrot.lane.b32.xlu0 %v2885, 2
  %v2891 = vpop.permute.xlu0 %2890
  %2892 = vrot.lane.b32.xlu0 %v2886, 2
  %v2893 = vpop.permute.xlu0 %2892
  %2894 = vrot.lane.b32.xlu0 %v2887, 2
  %v2895 = vpop.permute.xlu0 %2894
  %2896 = vrot.lane.b32.xlu0 %v2884, 114
  %v2897 = vpop.permute.xlu0 %2896
  %2898 = vrot.lane.b32.xlu0 %v2885, 114
  %v2899 = vpop.permute.xlu0 %2898
  %2900 = vrot.lane.b32.xlu0 %v2886, 114
  %v2901 = vpop.permute.xlu0 %2900
  %2902 = vrot.lane.b32.xlu0 %v2887, 114
  %v2903 = vpop.permute.xlu0 %2902
  %v2904 = vsel %vm2757, %v2889, %v2897
  %v2905 = vsel %vm2757, %v2891, %v2899
  %v2906 = vsel %vm2757, %v2893, %v2901
  %v2907 = vsel %vm2757, %v2895, %v2903
  %v2908 = vadd.f32 %v2884, %v2904
  %v2909 = vadd.f32 %v2885, %v2905
  %v2910 = vadd.f32 %v2886, %v2906
  %v2911 = vadd.f32 %v2887, %v2907
  %2912 = vrot.lane.b32.xlu0 %v2908, 4
  %v2913 = vpop.permute.xlu0 %2912
  %2914 = vrot.lane.b32.xlu0 %v2909, 4
  %v2915 = vpop.permute.xlu0 %2914
  %2916 = vrot.lane.b32.xlu0 %v2910, 4
  %v2917 = vpop.permute.xlu0 %2916
  %2918 = vrot.lane.b32.xlu0 %v2911, 4
  %v2919 = vpop.permute.xlu0 %2918
  %2920 = vrot.lane.b32.xlu0 %v2908, 116
  %v2921 = vpop.permute.xlu0 %2920
  %2922 = vrot.lane.b32.xlu0 %v2909, 116
  %v2923 = vpop.permute.xlu0 %2922
  %2924 = vrot.lane.b32.xlu0 %v2910, 116
  %v2925 = vpop.permute.xlu0 %2924
  %2926 = vrot.lane.b32.xlu0 %v2911, 116
  %v2927 = vpop.permute.xlu0 %2926
  %v2928 = vsel %vm2758, %v2913, %v2921
  %v2929 = vsel %vm2758, %v2915, %v2923
  %v2930 = vsel %vm2758, %v2917, %v2925
  %v2931 = vsel %vm2758, %v2919, %v2927
  %v2932 = vadd.f32 %v2908, %v2928
  %v2933 = vadd.f32 %v2909, %v2929
  %v2934 = vadd.f32 %v2910, %v2930
  %v2935 = vadd.f32 %v2911, %v2931
  %2936 = vrot.lane.b32.xlu0 %v2932, 8
  %v2937 = vpop.permute.xlu0 %2936
  %2938 = vrot.lane.b32.xlu0 %v2933, 8
  %v2939 = vpop.permute.xlu0 %2938
  %2940 = vrot.lane.b32.xlu0 %v2934, 8
  %v2941 = vpop.permute.xlu0 %2940
  %2942 = vrot.lane.b32.xlu0 %v2935, 8
  %v2943 = vpop.permute.xlu0 %2942
  %2944 = vrot.lane.b32.xlu0 %v2932, 120
  %v2945 = vpop.permute.xlu0 %2944
  %2946 = vrot.lane.b32.xlu0 %v2933, 120
  %v2947 = vpop.permute.xlu0 %2946
  %2948 = vrot.lane.b32.xlu0 %v2934, 120
  %v2949 = vpop.permute.xlu0 %2948
  %2950 = vrot.lane.b32.xlu0 %v2935, 120
  %v2951 = vpop.permute.xlu0 %2950
  %v2952 = vsel %vm2759, %v2937, %v2945
  %v2953 = vsel %vm2759, %v2939, %v2947
  %v2954 = vsel %vm2759, %v2941, %v2949
  %v2955 = vsel %vm2759, %v2943, %v2951
  %v2956 = vadd.f32 %v2932, %v2952
  %v2957 = vadd.f32 %v2933, %v2953
  %v2958 = vadd.f32 %v2934, %v2954
  %v2959 = vadd.f32 %v2935, %v2955
  %v2960 = vmax.f32 %v2856, %v2956
  %v2961 = vmax.f32 %v2857, %v2957
  %v2962 = vmax.f32 %v2858, %v2958
  %v2963 = vmax.f32 %v2859, %v2959
  %v2964 = vsub.f32 %v2856, %v2960
  %v2965 = vsub.f32 %v2857, %v2961
  %v2966 = vsub.f32 %v2858, %v2962
  %v2967 = vsub.f32 %v2859, %v2963
  %v2968 = vmul.f32 %v2964, 1.442695
  %v2969 = vpow.pop %v2968
  %v2970 = vmul.f32 %v2965, 1.442695
  %v2971 = vpow.pop %v2970
  %v2972 = vmul.f32 %v2966, 1.442695
  %v2973 = vpow.pop %v2972
  %v2974 = vmul.f32 %v2967, 1.442695
  %v2975 = vpow.pop %v2974
  %v2976 = vsub.f32 %v2956, %v2960
  %v2977 = vsub.f32 %v2957, %v2961
  %v2978 = vsub.f32 %v2958, %v2962
  %v2979 = vsub.f32 %v2959, %v2963
  %v2980 = vmul.f32 %v2976, 1.442695
  %v2981 = vpow.pop %v2980
  %v2982 = vmul.f32 %v2977, 1.442695
  %v2983 = vpow.pop %v2982
  %v2984 = vmul.f32 %v2978, 1.442695
  %v2985 = vpow.pop %v2984
  %v2986 = vmul.f32 %v2979, 1.442695
  %v2987 = vpow.pop %v2986
  %v2988 = vadd.f32 %v2969, %v2981
  %v2989 = vadd.f32 %v2971, %v2983
  %v2990 = vadd.f32 %v2973, %v2985
  %v2991 = vadd.f32 %v2975, %v2987
  %v2992 = vrcp.pop %v2988
  %v2993 = vrcp.pop %v2989
  %v2994 = vrcp.pop %v2990
  %v2995 = vrcp.pop %v2991
  %v2996 = vmul.f32 %v2969, %v2992
  %v2997 = vmul.f32 %v2971, %v2993
  %v2998 = vmul.f32 %v2973, %v2994
  %v2999 = vmul.f32 %v2975, %v2995
  %v3000 = vmul.f32 %v2996, %v2691
  %v3001 = vmul.f32 %v2997, %v2698
  %v3002 = vmul.f32 %v2998, %v2705
  %v3003 = vmul.f32 %v2999, %v2712
  %v3004 = vmul.f32 %v2981, %v2992
  %v3005 = vmul.f32 %v2983, %v2993
  %v3006 = vmul.f32 %v2985, %v2994
  %v3007 = vmul.f32 %v2987, %v2995
  %v3008 = vmul.f32 %v3004, %v2719
  %v3009 = vmul.f32 %v3005, %v2726
  %v3010 = vmul.f32 %v3006, %v2733
  %v3011 = vmul.f32 %v3007, %v2740
  %v3012 = vadd.f32 %v3000, %v3008
  %v3013 = vadd.f32 %v3001, %v3009
  %v3014 = vadd.f32 %v3002, %v3010
  %v3015 = vadd.f32 %v3003, %v3011
  %v3016 = vmul.f32 %v1479, %v2689
  %v3017 = vmul.f32 %v1485, %v2696
  %v3018 = vmul.f32 %v1491, %v2703
  %v3019 = vmul.f32 %v1497, %v2710
  %3020 = vrot.lane.b32.xlu0 %v3016, 1
  %v3021 = vpop.permute.xlu0 %3020
  %3022 = vrot.lane.b32.xlu0 %v3017, 1
  %v3023 = vpop.permute.xlu0 %3022
  %3024 = vrot.lane.b32.xlu0 %v3018, 1
  %v3025 = vpop.permute.xlu0 %3024
  %3026 = vrot.lane.b32.xlu0 %v3019, 1
  %v3027 = vpop.permute.xlu0 %3026
  %3028 = vrot.lane.b32.xlu0 %v3016, 113
  %v3029 = vpop.permute.xlu0 %3028
  %3030 = vrot.lane.b32.xlu0 %v3017, 113
  %v3031 = vpop.permute.xlu0 %3030
  %3032 = vrot.lane.b32.xlu0 %v3018, 113
  %v3033 = vpop.permute.xlu0 %3032
  %3034 = vrot.lane.b32.xlu0 %v3019, 113
  %v3035 = vpop.permute.xlu0 %3034
  %v3036 = vsel %vm2756, %v3021, %v3029
  %v3037 = vsel %vm2756, %v3023, %v3031
  %v3038 = vsel %vm2756, %v3025, %v3033
  %v3039 = vsel %vm2756, %v3027, %v3035
  %v3040 = vadd.f32 %v3016, %v3036
  %v3041 = vadd.f32 %v3017, %v3037
  %v3042 = vadd.f32 %v3018, %v3038
  %v3043 = vadd.f32 %v3019, %v3039
  %3044 = vrot.lane.b32.xlu0 %v3040, 2
  %v3045 = vpop.permute.xlu0 %3044
  %3046 = vrot.lane.b32.xlu0 %v3041, 2
  %v3047 = vpop.permute.xlu0 %3046
  %3048 = vrot.lane.b32.xlu0 %v3042, 2
  %v3049 = vpop.permute.xlu0 %3048
  %3050 = vrot.lane.b32.xlu0 %v3043, 2
  %v3051 = vpop.permute.xlu0 %3050
  %3052 = vrot.lane.b32.xlu0 %v3040, 114
  %v3053 = vpop.permute.xlu0 %3052
  %3054 = vrot.lane.b32.xlu0 %v3041, 114
  %v3055 = vpop.permute.xlu0 %3054
  %3056 = vrot.lane.b32.xlu0 %v3042, 114
  %v3057 = vpop.permute.xlu0 %3056
  %3058 = vrot.lane.b32.xlu0 %v3043, 114
  %v3059 = vpop.permute.xlu0 %3058
  %v3060 = vsel %vm2757, %v3045, %v3053
  %v3061 = vsel %vm2757, %v3047, %v3055
  %v3062 = vsel %vm2757, %v3049, %v3057
  %v3063 = vsel %vm2757, %v3051, %v3059
  %v3064 = vadd.f32 %v3040, %v3060
  %v3065 = vadd.f32 %v3041, %v3061
  %v3066 = vadd.f32 %v3042, %v3062
  %v3067 = vadd.f32 %v3043, %v3063
  %3068 = vrot.lane.b32.xlu0 %v3064, 4
  %v3069 = vpop.permute.xlu0 %3068
  %3070 = vrot.lane.b32.xlu0 %v3065, 4
  %v3071 = vpop.permute.xlu0 %3070
  %3072 = vrot.lane.b32.xlu0 %v3066, 4
  %v3073 = vpop.permute.xlu0 %3072
  %3074 = vrot.lane.b32.xlu0 %v3067, 4
  %v3075 = vpop.permute.xlu0 %3074
  %3076 = vrot.lane.b32.xlu0 %v3064, 116
  %v3077 = vpop.permute.xlu0 %3076
  %3078 = vrot.lane.b32.xlu0 %v3065, 116
  %v3079 = vpop.permute.xlu0 %3078
  %3080 = vrot.lane.b32.xlu0 %v3066, 116
  %v3081 = vpop.permute.xlu0 %3080
  %3082 = vrot.lane.b32.xlu0 %v3067, 116
  %v3083 = vpop.permute.xlu0 %3082
  %v3084 = vsel %vm2758, %v3069, %v3077
  %v3085 = vsel %vm2758, %v3071, %v3079
  %v3086 = vsel %vm2758, %v3073, %v3081
  %v3087 = vsel %vm2758, %v3075, %v3083
  %v3088 = vadd.f32 %v3064, %v3084
  %v3089 = vadd.f32 %v3065, %v3085
  %v3090 = vadd.f32 %v3066, %v3086
  %v3091 = vadd.f32 %v3067, %v3087
  %3092 = vrot.lane.b32.xlu0 %v3088, 8
  %v3093 = vpop.permute.xlu0 %3092
  %3094 = vrot.lane.b32.xlu0 %v3089, 8
  %v3095 = vpop.permute.xlu0 %3094
  %3096 = vrot.lane.b32.xlu0 %v3090, 8
  %v3097 = vpop.permute.xlu0 %3096
  %3098 = vrot.lane.b32.xlu0 %v3091, 8
  %v3099 = vpop.permute.xlu0 %3098
  %3100 = vrot.lane.b32.xlu0 %v3088, 120
  %v3101 = vpop.permute.xlu0 %3100
  %3102 = vrot.lane.b32.xlu0 %v3089, 120
  %v3103 = vpop.permute.xlu0 %3102
  %3104 = vrot.lane.b32.xlu0 %v3090, 120
  %v3105 = vpop.permute.xlu0 %3104
  %3106 = vrot.lane.b32.xlu0 %v3091, 120
  %v3107 = vpop.permute.xlu0 %3106
  %v3108 = vsel %vm2759, %v3093, %v3101
  %v3109 = vsel %vm2759, %v3095, %v3103
  %v3110 = vsel %vm2759, %v3097, %v3105
  %v3111 = vsel %vm2759, %v3099, %v3107
  %v3112 = vadd.f32 %v3088, %v3108
  %v3113 = vadd.f32 %v3089, %v3109
  %v3114 = vadd.f32 %v3090, %v3110
  %v3115 = vadd.f32 %v3091, %v3111
  %v3116 = vmul.f32 %v1479, %v2717
  %v3117 = vmul.f32 %v1485, %v2724
  %v3118 = vmul.f32 %v1491, %v2731
  %v3119 = vmul.f32 %v1497, %v2738
  %3120 = vrot.lane.b32.xlu0 %v3116, 1
  %v3121 = vpop.permute.xlu0 %3120
  %3122 = vrot.lane.b32.xlu0 %v3117, 1
  %v3123 = vpop.permute.xlu0 %3122
  %3124 = vrot.lane.b32.xlu0 %v3118, 1
  %v3125 = vpop.permute.xlu0 %3124
  %3126 = vrot.lane.b32.xlu0 %v3119, 1
  %v3127 = vpop.permute.xlu0 %3126
  %3128 = vrot.lane.b32.xlu0 %v3116, 113
  %v3129 = vpop.permute.xlu0 %3128
  %3130 = vrot.lane.b32.xlu0 %v3117, 113
  %v3131 = vpop.permute.xlu0 %3130
  %3132 = vrot.lane.b32.xlu0 %v3118, 113
  %v3133 = vpop.permute.xlu0 %3132
  %3134 = vrot.lane.b32.xlu0 %v3119, 113
  %v3135 = vpop.permute.xlu0 %3134
  %v3136 = vsel %vm2756, %v3121, %v3129
  %v3137 = vsel %vm2756, %v3123, %v3131
  %v3138 = vsel %vm2756, %v3125, %v3133
  %v3139 = vsel %vm2756, %v3127, %v3135
  %v3140 = vadd.f32 %v3116, %v3136
  %v3141 = vadd.f32 %v3117, %v3137
  %v3142 = vadd.f32 %v3118, %v3138
  %v3143 = vadd.f32 %v3119, %v3139
  %3144 = vrot.lane.b32.xlu0 %v3140, 2
  %v3145 = vpop.permute.xlu0 %3144
  %3146 = vrot.lane.b32.xlu0 %v3141, 2
  %v3147 = vpop.permute.xlu0 %3146
  %3148 = vrot.lane.b32.xlu0 %v3142, 2
  %v3149 = vpop.permute.xlu0 %3148
  %3150 = vrot.lane.b32.xlu0 %v3143, 2
  %v3151 = vpop.permute.xlu0 %3150
  %3152 = vrot.lane.b32.xlu0 %v3140, 114
  %v3153 = vpop.permute.xlu0 %3152
  %3154 = vrot.lane.b32.xlu0 %v3141, 114
  %v3155 = vpop.permute.xlu0 %3154
  %3156 = vrot.lane.b32.xlu0 %v3142, 114
  %v3157 = vpop.permute.xlu0 %3156
  %3158 = vrot.lane.b32.xlu0 %v3143, 114
  %v3159 = vpop.permute.xlu0 %3158
  %v3160 = vsel %vm2757, %v3145, %v3153
  %v3161 = vsel %vm2757, %v3147, %v3155
  %v3162 = vsel %vm2757, %v3149, %v3157
  %v3163 = vsel %vm2757, %v3151, %v3159
  %v3164 = vadd.f32 %v3140, %v3160
  %v3165 = vadd.f32 %v3141, %v3161
  %v3166 = vadd.f32 %v3142, %v3162
  %v3167 = vadd.f32 %v3143, %v3163
  %3168 = vrot.lane.b32.xlu0 %v3164, 4
  %v3169 = vpop.permute.xlu0 %3168
  %3170 = vrot.lane.b32.xlu0 %v3165, 4
  %v3171 = vpop.permute.xlu0 %3170
  %3172 = vrot.lane.b32.xlu0 %v3166, 4
  %v3173 = vpop.permute.xlu0 %3172
  %3174 = vrot.lane.b32.xlu0 %v3167, 4
  %v3175 = vpop.permute.xlu0 %3174
  %3176 = vrot.lane.b32.xlu0 %v3164, 116
  %v3177 = vpop.permute.xlu0 %3176
  %3178 = vrot.lane.b32.xlu0 %v3165, 116
  %v3179 = vpop.permute.xlu0 %3178
  %3180 = vrot.lane.b32.xlu0 %v3166, 116
  %v3181 = vpop.permute.xlu0 %3180
  %3182 = vrot.lane.b32.xlu0 %v3167, 116
  %v3183 = vpop.permute.xlu0 %3182
  %v3184 = vsel %vm2758, %v3169, %v3177
  %v3185 = vsel %vm2758, %v3171, %v3179
  %v3186 = vsel %vm2758, %v3173, %v3181
  %v3187 = vsel %vm2758, %v3175, %v3183
  %v3188 = vadd.f32 %v3164, %v3184
  %v3189 = vadd.f32 %v3165, %v3185
  %v3190 = vadd.f32 %v3166, %v3186
  %v3191 = vadd.f32 %v3167, %v3187
  %3192 = vrot.lane.b32.xlu0 %v3188, 8
  %v3193 = vpop.permute.xlu0 %3192
  %3194 = vrot.lane.b32.xlu0 %v3189, 8
  %v3195 = vpop.permute.xlu0 %3194
  %3196 = vrot.lane.b32.xlu0 %v3190, 8
  %v3197 = vpop.permute.xlu0 %3196
  %3198 = vrot.lane.b32.xlu0 %v3191, 8
  %v3199 = vpop.permute.xlu0 %3198
  %3200 = vrot.lane.b32.xlu0 %v3188, 120
  %v3201 = vpop.permute.xlu0 %3200
  %3202 = vrot.lane.b32.xlu0 %v3189, 120
  %v3203 = vpop.permute.xlu0 %3202
  %3204 = vrot.lane.b32.xlu0 %v3190, 120
  %v3205 = vpop.permute.xlu0 %3204
  %3206 = vrot.lane.b32.xlu0 %v3191, 120
  %v3207 = vpop.permute.xlu0 %3206
  %v3208 = vsel %vm2759, %v3193, %v3201
  %v3209 = vsel %vm2759, %v3195, %v3203
  %v3210 = vsel %vm2759, %v3197, %v3205
  %v3211 = vsel %vm2759, %v3199, %v3207
  %v3212 = vadd.f32 %v3188, %v3208
  %v3213 = vadd.f32 %v3189, %v3209
  %v3214 = vadd.f32 %v3190, %v3210
  %v3215 = vadd.f32 %v3191, %v3211
  %v3216 = vmax.f32 %v3112, %v3212
  %v3217 = vmax.f32 %v3113, %v3213
  %v3218 = vmax.f32 %v3114, %v3214
  %v3219 = vmax.f32 %v3115, %v3215
  %v3220 = vsub.f32 %v3112, %v3216
  %v3221 = vsub.f32 %v3113, %v3217
  %v3222 = vsub.f32 %v3114, %v3218
  %v3223 = vsub.f32 %v3115, %v3219
  %v3224 = vmul.f32 %v3220, 1.442695
  %v3225 = vpow.pop %v3224
  %v3226 = vmul.f32 %v3221, 1.442695
  %v3227 = vpow.pop %v3226
  %v3228 = vmul.f32 %v3222, 1.442695
  %v3229 = vpow.pop %v3228
  %v3230 = vmul.f32 %v3223, 1.442695
  %v3231 = vpow.pop %v3230
  %v3232 = vsub.f32 %v3212, %v3216
  %v3233 = vsub.f32 %v3213, %v3217
  %v3234 = vsub.f32 %v3214, %v3218
  %v3235 = vsub.f32 %v3215, %v3219
  %v3236 = vmul.f32 %v3232, 1.442695
  %v3237 = vpow.pop %v3236
  %v3238 = vmul.f32 %v3233, 1.442695
  %v3239 = vpow.pop %v3238
  %v3240 = vmul.f32 %v3234, 1.442695
  %v3241 = vpow.pop %v3240
  %v3242 = vmul.f32 %v3235, 1.442695
  %v3243 = vpow.pop %v3242
  %v3244 = vadd.f32 %v3225, %v3237
  %v3245 = vadd.f32 %v3227, %v3239
  %v3246 = vadd.f32 %v3229, %v3241
  %v3247 = vadd.f32 %v3231, %v3243
  %v3248 = vrcp.pop %v3244
  %v3249 = vrcp.pop %v3245
  %v3250 = vrcp.pop %v3246
  %v3251 = vrcp.pop %v3247
  %v3252 = vmul.f32 %v3225, %v3248
  %v3253 = vmul.f32 %v3227, %v3249
  %v3254 = vmul.f32 %v3229, %v3250
  %v3255 = vmul.f32 %v3231, %v3251
  %v3256 = vmul.f32 %v3252, %v2691
  %v3257 = vmul.f32 %v3253, %v2698
  %v3258 = vmul.f32 %v3254, %v2705
  %v3259 = vmul.f32 %v3255, %v2712
  %v3260 = vmul.f32 %v3237, %v3248
  %v3261 = vmul.f32 %v3239, %v3249
  %v3262 = vmul.f32 %v3241, %v3250
  %v3263 = vmul.f32 %v3243, %v3251
  %v3264 = vmul.f32 %v3260, %v2719
  %v3265 = vmul.f32 %v3261, %v2726
  %v3266 = vmul.f32 %v3262, %v2733
  %v3267 = vmul.f32 %v3263, %v2740
  %v3268 = vadd.f32 %v3256, %v3264
  %v3269 = vadd.f32 %v3257, %v3265
  %v3270 = vadd.f32 %v3258, %v3266
  %v3271 = vadd.f32 %v3259, %v3267
  %v3272 = vld [vmem:[%s5] sm:$0xff]
  %v3273 = vld [vmem:[%s5 + $0x8] sm:$0xff]
  %v3274 = vld [vmem:[%s5 + $0x10] sm:$0xff]
  %v3275 = vld [vmem:[%s5 + $0x18] sm:$0xff]
  %v3276 = vld [vmem:[%s5 + $0x20] sm:$0xff]
  %v3277 = vld [vmem:[%s5 + $0x28] sm:$0xff]
  %v3278 = vld [vmem:[%s5 + $0x30] sm:$0xff]
  %v3279 = vld [vmem:[%s5 + $0x38] sm:$0xff]
  %v3280 = vld [vmem:[%s5 + $0x40] sm:$0xff]
  %v3281 = vld [vmem:[%s5 + $0x48] sm:$0xff]
  %v3282 = vld [vmem:[%s5 + $0x50] sm:$0xff]
  %v3283 = vld [vmem:[%s5 + $0x58] sm:$0xff]
  %v3284 = vld [vmem:[%s5 + $0x60] sm:$0xff]
  %v3285 = vld [vmem:[%s5 + $0x68] sm:$0xff]
  %v3286 = vld [vmem:[%s5 + $0x70] sm:$0xff]
  %v3287 = vld [vmem:[%s5 + $0x78] sm:$0xff]
  %v3288 = vld [vmem:[%s8] sm:$0x1]
  %v3290 = vlaneseq
  %v3291 = vshrl.u32 %v3290, 7
  %v3292 = vsub.s32 0, %v3291
  %v3293 = vrot.slane %v3288, %v3292
  %3295 = vmatprep.subr.mxu0 0.0
  %v3296 = vand.u32 %v3272, 4294901760
  %3297 = vmatpush1.msra.mxu0 %v3296
  %3298 = vmatprep.subr.mxu0 0.0
  %v3299 = vand.u32 %v3273, 4294901760
  %3300 = vmatpush1.msra.mxu0 %v3299
  %3301 = vmatprep.subr.mxu0 0.0
  %v3302 = vand.u32 %v3274, 4294901760
  %3303 = vmatpush1.msra.mxu0 %v3302
  %3304 = vmatprep.subr.mxu0 0.0
  %v3305 = vand.u32 %v3275, 4294901760
  %3306 = vmatpush1.msra.mxu0 %v3305
  %3307 = vmatprep.subr.mxu0 0.0
  %v3308 = vand.u32 %v3276, 4294901760
  %3309 = vmatpush1.msra.mxu0 %v3308
  %3310 = vmatprep.subr.mxu0 0.0
  %v3311 = vand.u32 %v3277, 4294901760
  %3312 = vmatpush1.msra.mxu0 %v3311
  %3313 = vmatprep.subr.mxu0 0.0
  %v3314 = vand.u32 %v3278, 4294901760
  %3315 = vmatpush1.msra.mxu0 %v3314
  %3316 = vmatprep.subr.mxu0 0.0
  %v3317 = vand.u32 %v3279, 4294901760
  %3318 = vmatpush1.msra.mxu0 %v3317
  %3319 = vmatprep.subr.mxu0 0.0
  %v3320 = vand.u32 %v3280, 4294901760
  %3321 = vmatpush1.msra.mxu0 %v3320
  %3322 = vmatprep.subr.mxu0 0.0
  %v3323 = vand.u32 %v3281, 4294901760
  %3324 = vmatpush1.msra.mxu0 %v3323
  %3325 = vmatprep.subr.mxu0 0.0
  %v3326 = vand.u32 %v3282, 4294901760
  %3327 = vmatpush1.msra.mxu0 %v3326
  %3328 = vmatprep.subr.mxu0 0.0
  %v3329 = vand.u32 %v3283, 4294901760
  %3330 = vmatpush1.msra.mxu0 %v3329
  %3331 = vmatprep.subr.mxu0 0.0
  %v3332 = vand.u32 %v3284, 4294901760
  %3333 = vmatpush1.msra.mxu0 %v3332
  %3334 = vmatprep.subr.mxu0 0.0
  %v3335 = vand.u32 %v3285, 4294901760
  %3336 = vmatpush1.msra.mxu0 %v3335
  %3337 = vmatprep.subr.mxu0 0.0
  %v3338 = vand.u32 %v3286, 4294901760
  %3339 = vmatpush1.msra.mxu0 %v3338
  %3340 = vmatprep.subr.mxu0 0.0
  %v3341 = vand.u32 %v3287, 4294901760
  %3342 = vmatpush1.msra.mxu0 %v3341
  %3343 = vmatprep.subr.mxu0 0.0
  %3344 = vmatpush1.msra.mxu0 0.0
  %3345 = vmatprep.subr.mxu0 0.0
  %3346 = vmatpush1.msra.mxu0 0.0
  %3347 = vmatprep.subr.mxu0 0.0
  %3348 = vmatpush1.msra.mxu0 0.0
  %3349 = vmatprep.subr.mxu0 0.0
  %3350 = vmatpush1.msra.mxu0 0.0
  %3351 = vmatprep.subr.mxu0 0.0
  %3352 = vmatpush1.msra.mxu0 0.0
  %3353 = vmatprep.subr.mxu0 0.0
  %3354 = vmatpush1.msra.mxu0 0.0
  %3355 = vmatprep.subr.mxu0 0.0
  %3356 = vmatpush1.msra.mxu0 0.0
  %3357 = vmatprep.subr.mxu0 0.0
  %3358 = vmatpush1.msra.mxu0 0.0
  %3359 = vmatprep.subr.mxu0 0.0
  %3360 = vmatpush1.msra.mxu0 0.0
  %3361 = vmatprep.subr.mxu0 0.0
  %3362 = vmatpush1.msra.mxu0 0.0
  %3363 = vmatprep.subr.mxu0 0.0
  %3364 = vmatpush1.msra.mxu0 0.0
  %3365 = vmatprep.subr.mxu0 0.0
  %3366 = vmatpush1.msra.mxu0 0.0
  %3367 = vmatprep.subr.mxu0 0.0
  %3368 = vmatpush1.msra.mxu0 0.0
  %3369 = vmatprep.subr.mxu0 0.0
  %3370 = vmatpush1.msra.mxu0 0.0
  %3371 = vmatprep.subr.mxu0 0.0
  %3372 = vmatpush1.msra.mxu0 0.0
  %3373 = vmatprep.subr.mxu0 0.0
  %3374 = vmatpush1.msra.mxu0 0.0
  %3375 = vmatprep.mubr.f32.mxu0 0.0
  %v3376 = vand.u32 %v3012, 4294901760
  %v3377 = vsub.f32 %v3012, %v3376
  %v3378 = vand.u32 %v3377, 4294901760
  %v3379 = vsub.f32 %v3377, %v3378
  %v3380 = vand.u32 %v3379, 4294901760
  %3381 = vmatmul.mubr.f32.gmra.mrb[0].mxu0 %v3380
  %v3382 = vpop.f32.mrb[0].mxu0
  %v3383 = vadd.f32 %v3293, %v3382
  %v3384 = vpop.f32.mrb[0].mxu0
  %3385 = vmatprep.mubr.f32.mxu0 0.0
  %v3386 = vand.u32 %v3013, 4294901760
  %v3387 = vsub.f32 %v3013, %v3386
  %v3388 = vand.u32 %v3387, 4294901760
  %v3389 = vsub.f32 %v3387, %v3388
  %v3390 = vand.u32 %v3389, 4294901760
  %3391 = vmatmul.mubr.f32.gmra.mrb[0].mxu0 %v3390
  %v3392 = vpop.f32.mrb[0].mxu0
  %v3393 = vadd.f32 %v3293, %v3392
  %v3394 = vpop.f32.mrb[0].mxu0
  %3395 = vmatprep.mubr.f32.mxu0 0.0
  %v3396 = vand.u32 %v3014, 4294901760
  %v3397 = vsub.f32 %v3014, %v3396
  %v3398 = vand.u32 %v3397, 4294901760
  %v3399 = vsub.f32 %v3397, %v3398
  %v3400 = vand.u32 %v3399, 4294901760
  %3401 = vmatmul.mubr.f32.gmra.mrb[0].mxu0 %v3400
  %v3402 = vpop.f32.mrb[0].mxu0
  %v3403 = vadd.f32 %v3293, %v3402
  %v3404 = vpop.f32.mrb[0].mxu0
  %3405 = vmatprep.mubr.f32.mxu0 0.0
  %v3406 = vand.u32 %v3015, 4294901760
  %v3407 = vsub.f32 %v3015, %v3406
  %v3408 = vand.u32 %v3407, 4294901760
  %v3409 = vsub.f32 %v3407, %v3408
  %v3410 = vand.u32 %v3409, 4294901760
  %3411 = vmatmul.mubr.f32.gmra.mrb[0].mxu0 %v3410
  %v3412 = vpop.f32.mrb[0].mxu0
  %v3413 = vadd.f32 %v3293, %v3412
  %v3414 = vpop.f32.mrb[0].mxu0
  %3415 = vmatprep.mubr.f32.mxu0 0.0
  %v3416 = vand.u32 %v3268, 4294901760
  %v3417 = vsub.f32 %v3268, %v3416
  %v3418 = vand.u32 %v3417, 4294901760
  %v3419 = vsub.f32 %v3417, %v3418
  %v3420 = vand.u32 %v3419, 4294901760
  %3421 = vmatmul.mubr.f32.gmra.mrb[0].mxu0 %v3420
  %v3422 = vpop.f32.mrb[0].mxu0
  %v3423 = vadd.f32 %v3293, %v3422
  %v3424 = vpop.f32.mrb[0].mxu0
  %3425 = vmatprep.mubr.f32.mxu0 0.0
  %v3426 = vand.u32 %v3269, 4294901760
  %v3427 = vsub.f32 %v3269, %v3426
  %v3428 = vand.u32 %v3427, 4294901760
  %v3429 = vsub.f32 %v3427, %v3428
  %v3430 = vand.u32 %v3429, 4294901760
  %3431 = vmatmul.mubr.f32.gmra.mrb[0].mxu0 %v3430
  %v3432 = vpop.f32.mrb[0].mxu0
  %v3433 = vadd.f32 %v3293, %v3432
  %v3434 = vpop.f32.mrb[0].mxu0
  %3435 = vmatprep.mubr.f32.mxu0 0.0
  %v3436 = vand.u32 %v3270, 4294901760
  %v3437 = vsub.f32 %v3270, %v3436
  %v3438 = vand.u32 %v3437, 4294901760
  %v3439 = vsub.f32 %v3437, %v3438
  %v3440 = vand.u32 %v3439, 4294901760
  %3441 = vmatmul.mubr.f32.gmra.mrb[0].mxu0 %v3440
  %v3442 = vpop.f32.mrb[0].mxu0
  %v3443 = vadd.f32 %v3293, %v3442
  %v3444 = vpop.f32.mrb[0].mxu0
  %3445 = vmatprep.mubr.f32.mxu0 0.0
  %v3446 = vand.u32 %v3271, 4294901760
  %v3447 = vsub.f32 %v3271, %v3446
  %v3448 = vand.u32 %v3447, 4294901760
  %v3449 = vsub.f32 %v3447, %v3448
  %v3450 = vand.u32 %v3449, 4294901760
  %3451 = vmatmul.mubr.f32.gmra.mrb[0].mxu0 %v3450
  %v3452 = vpop.f32.mrb[0].mxu0
  %v3453 = vadd.f32 %v3293, %v3452
  %v3454 = vpop.f32.mrb[0].mxu0
  %3455 = vdwg.mxu0
  %3456 = vmatprep.subr.mxu0 0.0
  %v3457 = vand.u32 %v3272, 4294901760
  %v3458 = vsub.f32 %v3272, %v3457
  %v3459 = vand.u32 %v3458, 4294901760
  %v3460 = vsub.f32 %v3458, %v3459
  %v3461 = vand.u32 %v3460, 4294901760
  %3462 = vmatpush1.msra.mxu0 %v3461
  %3463 = vmatprep.subr.mxu0 0.0
  %v3464 = vand.u32 %v3273, 4294901760
  %v3465 = vsub.f32 %v3273, %v3464
  %v3466 = vand.u32 %v3465, 4294901760
  %v3467 = vsub.f32 %v3465, %v3466
  %v3468 = vand.u32 %v3467, 4294901760
  %3469 = vmatpush1.msra.mxu0 %v3468
  %3470 = vmatprep.subr.mxu0 0.0
  %v3471 = vand.u32 %v3274, 4294901760
  %v3472 = vsub.f32 %v3274, %v3471
  %v3473 = vand.u32 %v3472, 4294901760
  %v3474 = vsub.f32 %v3472, %v3473
  %v3475 = vand.u32 %v3474, 4294901760
  %3476 = vmatpush1.msra.mxu0 %v3475
  %3477 = vmatprep.subr.mxu0 0.0
  %v3478 = vand.u32 %v3275, 4294901760
  %v3479 = vsub.f32 %v3275, %v3478
  %v3480 = vand.u32 %v3479, 4294901760
  %v3481 = vsub.f32 %v3479, %v3480
  %v3482 = vand.u32 %v3481, 4294901760
  %3483 = vmatpush1.msra.mxu0 %v3482
  %3484 = vmatprep.subr.mxu0 0.0
  %v3485 = vand.u32 %v3276, 4294901760
  %v3486 = vsub.f32 %v3276, %v3485
  %v3487 = vand.u32 %v3486, 4294901760
  %v3488 = vsub.f32 %v3486, %v3487
  %v3489 = vand.u32 %v3488, 4294901760
  %3490 = vmatpush1.msra.mxu0 %v3489
  %3491 = vmatprep.subr.mxu0 0.0
  %v3492 = vand.u32 %v3277, 4294901760
  %v3493 = vsub.f32 %v3277, %v3492
  %v3494 = vand.u32 %v3493, 4294901760
  %v3495 = vsub.f32 %v3493, %v3494
  %v3496 = vand.u32 %v3495, 4294901760
  %3497 = vmatpush1.msra.mxu0 %v3496
  %3498 = vmatprep.subr.mxu0 0.0
  %v3499 = vand.u32 %v3278, 4294901760
  %v3500 = vsub.f32 %v3278, %v3499
  %v3501 = vand.u32 %v3500, 4294901760
  %v3502 = vsub.f32 %v3500, %v3501
  %v3503 = vand.u32 %v3502, 4294901760
  %3504 = vmatpush1.msra.mxu0 %v3503
  %3505 = vmatprep.subr.mxu0 0.0
  %v3506 = vand.u32 %v3279, 4294901760
  %v3507 = vsub.f32 %v3279, %v3506
  %v3508 = vand.u32 %v3507, 4294901760
  %v3509 = vsub.f32 %v3507, %v3508
  %v3510 = vand.u32 %v3509, 4294901760
  %3511 = vmatpush1.msra.mxu0 %v3510
  %3512 = vmatprep.subr.mxu0 0.0
  %v3513 = vand.u32 %v3280, 4294901760
  %v3514 = vsub.f32 %v3280, %v3513
  %v3515 = vand.u32 %v3514, 4294901760
  %v3516 = vsub.f32 %v3514, %v3515
  %v3517 = vand.u32 %v3516, 4294901760
  %3518 = vmatpush1.msra.mxu0 %v3517
  %3519 = vmatprep.subr.mxu0 0.0
  %v3520 = vand.u32 %v3281, 4294901760
  %v3521 = vsub.f32 %v3281, %v3520
  %v3522 = vand.u32 %v3521, 4294901760
  %v3523 = vsub.f32 %v3521, %v3522
  %v3524 = vand.u32 %v3523, 4294901760
  %3525 = vmatpush1.msra.mxu0 %v3524
  %3526 = vmatprep.subr.mxu0 0.0
  %v3527 = vand.u32 %v3282, 4294901760
  %v3528 = vsub.f32 %v3282, %v3527
  %v3529 = vand.u32 %v3528, 4294901760
  %v3530 = vsub.f32 %v3528, %v3529
  %v3531 = vand.u32 %v3530, 4294901760
  %3532 = vmatpush1.msra.mxu0 %v3531
  %3533 = vmatprep.subr.mxu0 0.0
  %v3534 = vand.u32 %v3283, 4294901760
  %v3535 = vsub.f32 %v3283, %v3534
  %v3536 = vand.u32 %v3535, 4294901760
  %v3537 = vsub.f32 %v3535, %v3536
  %v3538 = vand.u32 %v3537, 4294901760
  %3539 = vmatpush1.msra.mxu0 %v3538
  %3540 = vmatprep.subr.mxu0 0.0
  %v3541 = vand.u32 %v3284, 4294901760
  %v3542 = vsub.f32 %v3284, %v3541
  %v3543 = vand.u32 %v3542, 4294901760
  %v3544 = vsub.f32 %v3542, %v3543
  %v3545 = vand.u32 %v3544, 4294901760
  %3546 = vmatpush1.msra.mxu0 %v3545
  %3547 = vmatprep.subr.mxu0 0.0
  %v3548 = vand.u32 %v3285, 4294901760
  %v3549 = vsub.f32 %v3285, %v3548
  %v3550 = vand.u32 %v3549, 4294901760
  %v3551 = vsub.f32 %v3549, %v3550
  %v3552 = vand.u32 %v3551, 4294901760
  %3553 = vmatpush1.msra.mxu0 %v3552
  %3554 = vmatprep.subr.mxu0 0.0
  %v3555 = vand.u32 %v3286, 4294901760
  %v3556 = vsub.f32 %v3286, %v3555
  %v3557 = vand.u32 %v3556, 4294901760
  %v3558 = vsub.f32 %v3556, %v3557
  %v3559 = vand.u32 %v3558, 4294901760
  %3560 = vmatpush1.msra.mxu0 %v3559
  %3561 = vmatprep.subr.mxu0 0.0
  %v3562 = vand.u32 %v3287, 4294901760
  %v3563 = vsub.f32 %v3287, %v3562
  %v3564 = vand.u32 %v3563, 4294901760
  %v3565 = vsub.f32 %v3563, %v3564
  %v3566 = vand.u32 %v3565, 4294901760
  %3567 = vmatpush1.msra.mxu0 %v3566
  %3568 = vmatprep.subr.mxu0 0.0
  %3569 = vmatpush1.msra.mxu0 0.0
  %3570 = vmatprep.subr.mxu0 0.0
  %3571 = vmatpush1.msra.mxu0 0.0
  %3572 = vmatprep.subr.mxu0 0.0
  %3573 = vmatpush1.msra.mxu0 0.0
  %3574 = vmatprep.subr.mxu0 0.0
  %3575 = vmatpush1.msra.mxu0 0.0
  %3576 = vmatprep.subr.mxu0 0.0
  %3577 = vmatpush1.msra.mxu0 0.0
  %3578 = vmatprep.subr.mxu0 0.0
  %3579 = vmatpush1.msra.mxu0 0.0
  %3580 = vmatprep.subr.mxu0 0.0
  %3581 = vmatpush1.msra.mxu0 0.0
  %3582 = vmatprep.subr.mxu0 0.0
  %3583 = vmatpush1.msra.mxu0 0.0
  %3584 = vmatprep.subr.mxu0 0.0
  %3585 = vmatpush1.msra.mxu0 0.0
  %3586 = vmatprep.subr.mxu0 0.0
  %3587 = vmatpush1.msra.mxu0 0.0
  %3588 = vmatprep.subr.mxu0 0.0
  %3589 = vmatpush1.msra.mxu0 0.0
  %3590 = vmatprep.subr.mxu0 0.0
  %3591 = vmatpush1.msra.mxu0 0.0
  %3592 = vmatprep.subr.mxu0 0.0
  %3593 = vmatpush1.msra.mxu0 0.0
  %3594 = vmatprep.subr.mxu0 0.0
  %3595 = vmatpush1.msra.mxu0 0.0
  %3596 = vmatprep.subr.mxu0 0.0
  %3597 = vmatpush1.msra.mxu0 0.0
  %3598 = vmatprep.subr.mxu0 0.0
  %3599 = vmatpush1.msra.mxu0 0.0
  %3600 = vmatprep.mubr.f32.mxu0 0.0
  %v3601 = vand.u32 %v3012, 4294901760
  %3602 = vmatmul.mubr.f32.gmra.mrb[0].mxu0 %v3601
  %v3603 = vpop.f32.mrb[0].mxu0
  %v3604 = vadd.f32 %v3383, %v3603
  %v3605 = vpop.f32.mrb[0].mxu0
  %3606 = vmatprep.mubr.f32.mxu0 0.0
  %v3607 = vand.u32 %v3013, 4294901760
  %3608 = vmatmul.mubr.f32.gmra.mrb[0].mxu0 %v3607
  %v3609 = vpop.f32.mrb[0].mxu0
  %v3610 = vadd.f32 %v3393, %v3609
  %v3611 = vpop.f32.mrb[0].mxu0
  %3612 = vmatprep.mubr.f32.mxu0 0.0
  %v3613 = vand.u32 %v3014, 4294901760
  %3614 = vmatmul.mubr.f32.gmra.mrb[0].mxu0 %v3613
  %v3615 = vpop.f32.mrb[0].mxu0
  %v3616 = vadd.f32 %v3403, %v3615
  %v3617 = vpop.f32.mrb[0].mxu0
  %3618 = vmatprep.mubr.f32.mxu0 0.0
  %v3619 = vand.u32 %v3015, 4294901760
  %3620 = vmatmul.mubr.f32.gmra.mrb[0].mxu0 %v3619
  %v3621 = vpop.f32.mrb[0].mxu0
  %v3622 = vadd.f32 %v3413, %v3621
  %v3623 = vpop.f32.mrb[0].mxu0
  %3624 = vmatprep.mubr.f32.mxu0 0.0
  %v3625 = vand.u32 %v3268, 4294901760
  %3626 = vmatmul.mubr.f32.gmra.mrb[0].mxu0 %v3625
  %v3627 = vpop.f32.mrb[0].mxu0
  %v3628 = vadd.f32 %v3423, %v3627
  %v3629 = vpop.f32.mrb[0].mxu0
  %3630 = vmatprep.mubr.f32.mxu0 0.0
  %v3631 = vand.u32 %v3269, 4294901760
  %3632 = vmatmul.mubr.f32.gmra.mrb[0].mxu0 %v3631
  %v3633 = vpop.f32.mrb[0].mxu0
  %v3634 = vadd.f32 %v3433, %v3633
  %v3635 = vpop.f32.mrb[0].mxu0
  %3636 = vmatprep.mubr.f32.mxu0 0.0
  %v3637 = vand.u32 %v3270, 4294901760
  %3638 = vmatmul.mubr.f32.gmra.mrb[0].mxu0 %v3637
  %v3639 = vpop.f32.mrb[0].mxu0
  %v3640 = vadd.f32 %v3443, %v3639
  %v3641 = vpop.f32.mrb[0].mxu0
  %3642 = vmatprep.mubr.f32.mxu0 0.0
  %v3643 = vand.u32 %v3271, 4294901760
  %3644 = vmatmul.mubr.f32.gmra.mrb[0].mxu0 %v3643
  %v3645 = vpop.f32.mrb[0].mxu0
  %v3646 = vadd.f32 %v3453, %v3645
  %v3647 = vpop.f32.mrb[0].mxu0
  %3648 = vdwg.mxu0
  %3649 = vmatprep.subr.mxu0 0.0
  %v3650 = vand.u32 %v3272, 4294901760
  %v3651 = vsub.f32 %v3272, %v3650
  %3652 = vmatpush1.msra.mxu0 %v3651
  %3653 = vmatprep.subr.mxu0 0.0
  %v3654 = vand.u32 %v3273, 4294901760
  %v3655 = vsub.f32 %v3273, %v3654
  %3656 = vmatpush1.msra.mxu0 %v3655
  %3657 = vmatprep.subr.mxu0 0.0
  %v3658 = vand.u32 %v3274, 4294901760
  %v3659 = vsub.f32 %v3274, %v3658
  %3660 = vmatpush1.msra.mxu0 %v3659
  %3661 = vmatprep.subr.mxu0 0.0
  %v3662 = vand.u32 %v3275, 4294901760
  %v3663 = vsub.f32 %v3275, %v3662
  %3664 = vmatpush1.msra.mxu0 %v3663
  %3665 = vmatprep.subr.mxu0 0.0
  %v3666 = vand.u32 %v3276, 4294901760
  %v3667 = vsub.f32 %v3276, %v3666
  %3668 = vmatpush1.msra.mxu0 %v3667
  %3669 = vmatprep.subr.mxu0 0.0
  %v3670 = vand.u32 %v3277, 4294901760
  %v3671 = vsub.f32 %v3277, %v3670
  %3672 = vmatpush1.msra.mxu0 %v3671
  %3673 = vmatprep.subr.mxu0 0.0
  %v3674 = vand.u32 %v3278, 4294901760
  %v3675 = vsub.f32 %v3278, %v3674
  %3676 = vmatpush1.msra.mxu0 %v3675
  %3677 = vmatprep.subr.mxu0 0.0
  %v3678 = vand.u32 %v3279, 4294901760
  %v3679 = vsub.f32 %v3279, %v3678
  %3680 = vmatpush1.msra.mxu0 %v3679
  %3681 = vmatprep.subr.mxu0 0.0
  %v3682 = vand.u32 %v3280, 4294901760
  %v3683 = vsub.f32 %v3280, %v3682
  %3684 = vmatpush1.msra.mxu0 %v3683
  %3685 = vmatprep.subr.mxu0 0.0
  %v3686 = vand.u32 %v3281, 4294901760
  %v3687 = vsub.f32 %v3281, %v3686
  %3688 = vmatpush1.msra.mxu0 %v3687
  %3689 = vmatprep.subr.mxu0 0.0
  %v3690 = vand.u32 %v3282, 4294901760
  %v3691 = vsub.f32 %v3282, %v3690
  %3692 = vmatpush1.msra.mxu0 %v3691
  %3693 = vmatprep.subr.mxu0 0.0
  %v3694 = vand.u32 %v3283, 4294901760
  %v3695 = vsub.f32 %v3283, %v3694
  %3696 = vmatpush1.msra.mxu0 %v3695
  %3697 = vmatprep.subr.mxu0 0.0
  %v3698 = vand.u32 %v3284, 4294901760
  %v3699 = vsub.f32 %v3284, %v3698
  %3700 = vmatpush1.msra.mxu0 %v3699
  %3701 = vmatprep.subr.mxu0 0.0
  %v3702 = vand.u32 %v3285, 4294901760
  %v3703 = vsub.f32 %v3285, %v3702
  %3704 = vmatpush1.msra.mxu0 %v3703
  %3705 = vmatprep.subr.mxu0 0.0
  %v3706 = vand.u32 %v3286, 4294901760
  %v3707 = vsub.f32 %v3286, %v3706
  %3708 = vmatpush1.msra.mxu0 %v3707
  %3709 = vmatprep.subr.mxu0 0.0
  %v3710 = vand.u32 %v3287, 4294901760
  %v3711 = vsub.f32 %v3287, %v3710
  %3712 = vmatpush1.msra.mxu0 %v3711
  %3713 = vmatprep.subr.mxu0 0.0
  %3714 = vmatpush1.msra.mxu0 0.0
  %3715 = vmatprep.subr.mxu0 0.0
  %3716 = vmatpush1.msra.mxu0 0.0
  %3717 = vmatprep.subr.mxu0 0.0
  %3718 = vmatpush1.msra.mxu0 0.0
  %3719 = vmatprep.subr.mxu0 0.0
  %3720 = vmatpush1.msra.mxu0 0.0
  %3721 = vmatprep.subr.mxu0 0.0
  %3722 = vmatpush1.msra.mxu0 0.0
  %3723 = vmatprep.subr.mxu0 0.0
  %3724 = vmatpush1.msra.mxu0 0.0
  %3725 = vmatprep.subr.mxu0 0.0
  %3726 = vmatpush1.msra.mxu0 0.0
  %3727 = vmatprep.subr.mxu0 0.0
  %3728 = vmatpush1.msra.mxu0 0.0
  %3729 = vmatprep.subr.mxu0 0.0
  %3730 = vmatpush1.msra.mxu0 0.0
  %3731 = vmatprep.subr.mxu0 0.0
  %3732 = vmatpush1.msra.mxu0 0.0
  %3733 = vmatprep.subr.mxu0 0.0
  %3734 = vmatpush1.msra.mxu0 0.0
  %3735 = vmatprep.subr.mxu0 0.0
  %3736 = vmatpush1.msra.mxu0 0.0
  %3737 = vmatprep.subr.mxu0 0.0
  %3738 = vmatpush1.msra.mxu0 0.0
  %3739 = vmatprep.subr.mxu0 0.0
  %3740 = vmatpush1.msra.mxu0 0.0
  %3741 = vmatprep.subr.mxu0 0.0
  %3742 = vmatpush1.msra.mxu0 0.0
  %3743 = vmatprep.subr.mxu0 0.0
  %3744 = vmatpush1.msra.mxu0 0.0
  %3745 = vmatprep.mubr.f32.mxu0 0.0
  %v3746 = vand.u32 %v3012, 4294901760
  %v3747 = vsub.f32 %v3012, %v3746
  %3748 = vmatmul.mubr.f32.gmra.mrb[0].mxu0 %v3747
  %v3749 = vpop.f32.mrb[0].mxu0
  %v3750 = vadd.f32 %v3604, %v3749
  %v3751 = vpop.f32.mrb[0].mxu0
  %3752 = vmatprep.mubr.f32.mxu0 0.0
  %v3753 = vand.u32 %v3013, 4294901760
  %v3754 = vsub.f32 %v3013, %v3753
  %3755 = vmatmul.mubr.f32.gmra.mrb[0].mxu0 %v3754
  %v3756 = vpop.f32.mrb[0].mxu0
  %v3757 = vadd.f32 %v3610, %v3756
  %v3758 = vpop.f32.mrb[0].mxu0
  %3759 = vmatprep.mubr.f32.mxu0 0.0
  %v3760 = vand.u32 %v3014, 4294901760
  %v3761 = vsub.f32 %v3014, %v3760
  %3762 = vmatmul.mubr.f32.gmra.mrb[0].mxu0 %v3761
  %v3763 = vpop.f32.mrb[0].mxu0
  %v3764 = vadd.f32 %v3616, %v3763
  %v3765 = vpop.f32.mrb[0].mxu0
  %3766 = vmatprep.mubr.f32.mxu0 0.0
  %v3767 = vand.u32 %v3015, 4294901760
  %v3768 = vsub.f32 %v3015, %v3767
  %3769 = vmatmul.mubr.f32.gmra.mrb[0].mxu0 %v3768
  %v3770 = vpop.f32.mrb[0].mxu0
  %v3771 = vadd.f32 %v3622, %v3770
  %v3772 = vpop.f32.mrb[0].mxu0
  %3773 = vmatprep.mubr.f32.mxu0 0.0
  %v3774 = vand.u32 %v3268, 4294901760
  %v3775 = vsub.f32 %v3268, %v3774
  %3776 = vmatmul.mubr.f32.gmra.mrb[0].mxu0 %v3775
  %v3777 = vpop.f32.mrb[0].mxu0
  %v3778 = vadd.f32 %v3628, %v3777
  %v3779 = vpop.f32.mrb[0].mxu0
  %3780 = vmatprep.mubr.f32.mxu0 0.0
  %v3781 = vand.u32 %v3269, 4294901760
  %v3782 = vsub.f32 %v3269, %v3781
  %3783 = vmatmul.mubr.f32.gmra.mrb[0].mxu0 %v3782
  %v3784 = vpop.f32.mrb[0].mxu0
  %v3785 = vadd.f32 %v3634, %v3784
  %v3786 = vpop.f32.mrb[0].mxu0
  %3787 = vmatprep.mubr.f32.mxu0 0.0
  %v3788 = vand.u32 %v3270, 4294901760
  %v3789 = vsub.f32 %v3270, %v3788
  %3790 = vmatmul.mubr.f32.gmra.mrb[0].mxu0 %v3789
  %v3791 = vpop.f32.mrb[0].mxu0
  %v3792 = vadd.f32 %v3640, %v3791
  %v3793 = vpop.f32.mrb[0].mxu0
  %3794 = vmatprep.mubr.f32.mxu0 0.0
  %v3795 = vand.u32 %v3271, 4294901760
  %v3796 = vsub.f32 %v3271, %v3795
  %3797 = vmatmul.mubr.f32.gmra.mrb[0].mxu0 %v3796
  %v3798 = vpop.f32.mrb[0].mxu0
  %v3799 = vadd.f32 %v3646, %v3798
  %v3800 = vpop.f32.mrb[0].mxu0
  %3801 = vdwg.mxu0
  %3802 = vmatprep.subr.mxu0 0.0
  %v3803 = vand.u32 %v3272, 4294901760
  %3804 = vmatpush1.msra.mxu0 %v3803
  %3805 = vmatprep.subr.mxu0 0.0
  %v3806 = vand.u32 %v3273, 4294901760
  %3807 = vmatpush1.msra.mxu0 %v3806
  %3808 = vmatprep.subr.mxu0 0.0
  %v3809 = vand.u32 %v3274, 4294901760
  %3810 = vmatpush1.msra.mxu0 %v3809
  %3811 = vmatprep.subr.mxu0 0.0
  %v3812 = vand.u32 %v3275, 4294901760
  %3813 = vmatpush1.msra.mxu0 %v3812
  %3814 = vmatprep.subr.mxu0 0.0
  %v3815 = vand.u32 %v3276, 4294901760
  %3816 = vmatpush1.msra.mxu0 %v3815
  %3817 = vmatprep.subr.mxu0 0.0
  %v3818 = vand.u32 %v3277, 4294901760
  %3819 = vmatpush1.msra.mxu0 %v3818
  %3820 = vmatprep.subr.mxu0 0.0
  %v3821 = vand.u32 %v3278, 4294901760
  %3822 = vmatpush1.msra.mxu0 %v3821
  %3823 = vmatprep.subr.mxu0 0.0
  %v3824 = vand.u32 %v3279, 4294901760
  %3825 = vmatpush1.msra.mxu0 %v3824
  %3826 = vmatprep.subr.mxu0 0.0
  %v3827 = vand.u32 %v3280, 4294901760
  %3828 = vmatpush1.msra.mxu0 %v3827
  %3829 = vmatprep.subr.mxu0 0.0
  %v3830 = vand.u32 %v3281, 4294901760
  %3831 = vmatpush1.msra.mxu0 %v3830
  %3832 = vmatprep.subr.mxu0 0.0
  %v3833 = vand.u32 %v3282, 4294901760
  %3834 = vmatpush1.msra.mxu0 %v3833
  %3835 = vmatprep.subr.mxu0 0.0
  %v3836 = vand.u32 %v3283, 4294901760
  %3837 = vmatpush1.msra.mxu0 %v3836
  %3838 = vmatprep.subr.mxu0 0.0
  %v3839 = vand.u32 %v3284, 4294901760
  %3840 = vmatpush1.msra.mxu0 %v3839
  %3841 = vmatprep.subr.mxu0 0.0
  %v3842 = vand.u32 %v3285, 4294901760
  %3843 = vmatpush1.msra.mxu0 %v3842
  %3844 = vmatprep.subr.mxu0 0.0
  %v3845 = vand.u32 %v3286, 4294901760
  %3846 = vmatpush1.msra.mxu0 %v3845
  %3847 = vmatprep.subr.mxu0 0.0
  %v3848 = vand.u32 %v3287, 4294901760
  %3849 = vmatpush1.msra.mxu0 %v3848
  %3850 = vmatprep.subr.mxu0 0.0
  %3851 = vmatpush1.msra.mxu0 0.0
  %3852 = vmatprep.subr.mxu0 0.0
  %3853 = vmatpush1.msra.mxu0 0.0
  %3854 = vmatprep.subr.mxu0 0.0
  %3855 = vmatpush1.msra.mxu0 0.0
  %3856 = vmatprep.subr.mxu0 0.0
  %3857 = vmatpush1.msra.mxu0 0.0
  %3858 = vmatprep.subr.mxu0 0.0
  %3859 = vmatpush1.msra.mxu0 0.0
  %3860 = vmatprep.subr.mxu0 0.0
  %3861 = vmatpush1.msra.mxu0 0.0
  %3862 = vmatprep.subr.mxu0 0.0
  %3863 = vmatpush1.msra.mxu0 0.0
  %3864 = vmatprep.subr.mxu0 0.0
  %3865 = vmatpush1.msra.mxu0 0.0
  %3866 = vmatprep.subr.mxu0 0.0
  %3867 = vmatpush1.msra.mxu0 0.0
  %3868 = vmatprep.subr.mxu0 0.0
  %3869 = vmatpush1.msra.mxu0 0.0
  %3870 = vmatprep.subr.mxu0 0.0
  %3871 = vmatpush1.msra.mxu0 0.0
  %3872 = vmatprep.subr.mxu0 0.0
  %3873 = vmatpush1.msra.mxu0 0.0
  %3874 = vmatprep.subr.mxu0 0.0
  %3875 = vmatpush1.msra.mxu0 0.0
  %3876 = vmatprep.subr.mxu0 0.0
  %3877 = vmatpush1.msra.mxu0 0.0
  %3878 = vmatprep.subr.mxu0 0.0
  %3879 = vmatpush1.msra.mxu0 0.0
  %3880 = vmatprep.subr.mxu0 0.0
  %3881 = vmatpush1.msra.mxu0 0.0
  %3882 = vmatprep.mubr.f32.mxu0 0.0
  %v3883 = vand.u32 %v3012, 4294901760
  %v3884 = vsub.f32 %v3012, %v3883
  %v3885 = vand.u32 %v3884, 4294901760
  %3886 = vmatmul.mubr.f32.gmra.mrb[0].mxu0 %v3885
  %v3887 = vpop.f32.mrb[0].mxu0
  %v3888 = vadd.f32 %v3750, %v3887
  %v3889 = vpop.f32.mrb[0].mxu0
  %3890 = vmatprep.mubr.f32.mxu0 0.0
  %v3891 = vand.u32 %v3013, 4294901760
  %v3892 = vsub.f32 %v3013, %v3891
  %v3893 = vand.u32 %v3892, 4294901760
  %3894 = vmatmul.mubr.f32.gmra.mrb[0].mxu0 %v3893
  %v3895 = vpop.f32.mrb[0].mxu0
  %v3896 = vadd.f32 %v3757, %v3895
  %v3897 = vpop.f32.mrb[0].mxu0
  %3898 = vmatprep.mubr.f32.mxu0 0.0
  %v3899 = vand.u32 %v3014, 4294901760
  %v3900 = vsub.f32 %v3014, %v3899
  %v3901 = vand.u32 %v3900, 4294901760
  %3902 = vmatmul.mubr.f32.gmra.mrb[0].mxu0 %v3901
  %v3903 = vpop.f32.mrb[0].mxu0
  %v3904 = vadd.f32 %v3764, %v3903
  %v3905 = vpop.f32.mrb[0].mxu0
  %3906 = vmatprep.mubr.f32.mxu0 0.0
  %v3907 = vand.u32 %v3015, 4294901760
  %v3908 = vsub.f32 %v3015, %v3907
  %v3909 = vand.u32 %v3908, 4294901760
  %3910 = vmatmul.mubr.f32.gmra.mrb[0].mxu0 %v3909
  %v3911 = vpop.f32.mrb[0].mxu0
  %v3912 = vadd.f32 %v3771, %v3911
  %v3913 = vpop.f32.mrb[0].mxu0
  %3914 = vmatprep.mubr.f32.mxu0 0.0
  %v3915 = vand.u32 %v3268, 4294901760
  %v3916 = vsub.f32 %v3268, %v3915
  %v3917 = vand.u32 %v3916, 4294901760
  %3918 = vmatmul.mubr.f32.gmra.mrb[0].mxu0 %v3917
  %v3919 = vpop.f32.mrb[0].mxu0
  %v3920 = vadd.f32 %v3778, %v3919
  %v3921 = vpop.f32.mrb[0].mxu0
  %3922 = vmatprep.mubr.f32.mxu0 0.0
  %v3923 = vand.u32 %v3269, 4294901760
  %v3924 = vsub.f32 %v3269, %v3923
  %v3925 = vand.u32 %v3924, 4294901760
  %3926 = vmatmul.mubr.f32.gmra.mrb[0].mxu0 %v3925
  %v3927 = vpop.f32.mrb[0].mxu0
  %v3928 = vadd.f32 %v3785, %v3927
  %v3929 = vpop.f32.mrb[0].mxu0
  %3930 = vmatprep.mubr.f32.mxu0 0.0
  %v3931 = vand.u32 %v3270, 4294901760
  %v3932 = vsub.f32 %v3270, %v3931
  %v3933 = vand.u32 %v3932, 4294901760
  %3934 = vmatmul.mubr.f32.gmra.mrb[0].mxu0 %v3933
  %v3935 = vpop.f32.mrb[0].mxu0
  %v3936 = vadd.f32 %v3792, %v3935
  %v3937 = vpop.f32.mrb[0].mxu0
  %3938 = vmatprep.mubr.f32.mxu0 0.0
  %v3939 = vand.u32 %v3271, 4294901760
  %v3940 = vsub.f32 %v3271, %v3939
  %v3941 = vand.u32 %v3940, 4294901760
  %3942 = vmatmul.mubr.f32.gmra.mrb[0].mxu0 %v3941
  %v3943 = vpop.f32.mrb[0].mxu0
  %v3944 = vadd.f32 %v3799, %v3943
  %v3945 = vpop.f32.mrb[0].mxu0
  %3946 = vdwg.mxu0
  %3947 = vmatprep.subr.mxu0 0.0
  %v3948 = vand.u32 %v3272, 4294901760
  %v3949 = vsub.f32 %v3272, %v3948
  %v3950 = vand.u32 %v3949, 4294901760
  %3951 = vmatpush1.msra.mxu0 %v3950
  %3952 = vmatprep.subr.mxu0 0.0
  %v3953 = vand.u32 %v3273, 4294901760
  %v3954 = vsub.f32 %v3273, %v3953
  %v3955 = vand.u32 %v3954, 4294901760
  %3956 = vmatpush1.msra.mxu0 %v3955
  %3957 = vmatprep.subr.mxu0 0.0
  %v3958 = vand.u32 %v3274, 4294901760
  %v3959 = vsub.f32 %v3274, %v3958
  %v3960 = vand.u32 %v3959, 4294901760
  %3961 = vmatpush1.msra.mxu0 %v3960
  %3962 = vmatprep.subr.mxu0 0.0
  %v3963 = vand.u32 %v3275, 4294901760
  %v3964 = vsub.f32 %v3275, %v3963
  %v3965 = vand.u32 %v3964, 4294901760
  %3966 = vmatpush1.msra.mxu0 %v3965
  %3967 = vmatprep.subr.mxu0 0.0
  %v3968 = vand.u32 %v3276, 4294901760
  %v3969 = vsub.f32 %v3276, %v3968
  %v3970 = vand.u32 %v3969, 4294901760
  %3971 = vmatpush1.msra.mxu0 %v3970
  %3972 = vmatprep.subr.mxu0 0.0
  %v3973 = vand.u32 %v3277, 4294901760
  %v3974 = vsub.f32 %v3277, %v3973
  %v3975 = vand.u32 %v3974, 4294901760
  %3976 = vmatpush1.msra.mxu0 %v3975
  %3977 = vmatprep.subr.mxu0 0.0
  %v3978 = vand.u32 %v3278, 4294901760
  %v3979 = vsub.f32 %v3278, %v3978
  %v3980 = vand.u32 %v3979, 4294901760
  %3981 = vmatpush1.msra.mxu0 %v3980
  %3982 = vmatprep.subr.mxu0 0.0
  %v3983 = vand.u32 %v3279, 4294901760
  %v3984 = vsub.f32 %v3279, %v3983
  %v3985 = vand.u32 %v3984, 4294901760
  %3986 = vmatpush1.msra.mxu0 %v3985
  %3987 = vmatprep.subr.mxu0 0.0
  %v3988 = vand.u32 %v3280, 4294901760
  %v3989 = vsub.f32 %v3280, %v3988
  %v3990 = vand.u32 %v3989, 4294901760
  %3991 = vmatpush1.msra.mxu0 %v3990
  %3992 = vmatprep.subr.mxu0 0.0
  %v3993 = vand.u32 %v3281, 4294901760
  %v3994 = vsub.f32 %v3281, %v3993
  %v3995 = vand.u32 %v3994, 4294901760
  %3996 = vmatpush1.msra.mxu0 %v3995
  %3997 = vmatprep.subr.mxu0 0.0
  %v3998 = vand.u32 %v3282, 4294901760
  %v3999 = vsub.f32 %v3282, %v3998
  %v4000 = vand.u32 %v3999, 4294901760
  %4001 = vmatpush1.msra.mxu0 %v4000
  %4002 = vmatprep.subr.mxu0 0.0
  %v4003 = vand.u32 %v3283, 4294901760
  %v4004 = vsub.f32 %v3283, %v4003
  %v4005 = vand.u32 %v4004, 4294901760
  %4006 = vmatpush1.msra.mxu0 %v4005
  %4007 = vmatprep.subr.mxu0 0.0
  %v4008 = vand.u32 %v3284, 4294901760
  %v4009 = vsub.f32 %v3284, %v4008
  %v4010 = vand.u32 %v4009, 4294901760
  %4011 = vmatpush1.msra.mxu0 %v4010
  %4012 = vmatprep.subr.mxu0 0.0
  %v4013 = vand.u32 %v3285, 4294901760
  %v4014 = vsub.f32 %v3285, %v4013
  %v4015 = vand.u32 %v4014, 4294901760
  %4016 = vmatpush1.msra.mxu0 %v4015
  %4017 = vmatprep.subr.mxu0 0.0
  %v4018 = vand.u32 %v3286, 4294901760
  %v4019 = vsub.f32 %v3286, %v4018
  %v4020 = vand.u32 %v4019, 4294901760
  %4021 = vmatpush1.msra.mxu0 %v4020
  %4022 = vmatprep.subr.mxu0 0.0
  %v4023 = vand.u32 %v3287, 4294901760
  %v4024 = vsub.f32 %v3287, %v4023
  %v4025 = vand.u32 %v4024, 4294901760
  %4026 = vmatpush1.msra.mxu0 %v4025
  %4027 = vmatprep.subr.mxu0 0.0
  %4028 = vmatpush1.msra.mxu0 0.0
  %4029 = vmatprep.subr.mxu0 0.0
  %4030 = vmatpush1.msra.mxu0 0.0
  %4031 = vmatprep.subr.mxu0 0.0
  %4032 = vmatpush1.msra.mxu0 0.0
  %4033 = vmatprep.subr.mxu0 0.0
  %4034 = vmatpush1.msra.mxu0 0.0
  %4035 = vmatprep.subr.mxu0 0.0
  %4036 = vmatpush1.msra.mxu0 0.0
  %4037 = vmatprep.subr.mxu0 0.0
  %4038 = vmatpush1.msra.mxu0 0.0
  %4039 = vmatprep.subr.mxu0 0.0
  %4040 = vmatpush1.msra.mxu0 0.0
  %4041 = vmatprep.subr.mxu0 0.0
  %4042 = vmatpush1.msra.mxu0 0.0
  %4043 = vmatprep.subr.mxu0 0.0
  %4044 = vmatpush1.msra.mxu0 0.0
  %4045 = vmatprep.subr.mxu0 0.0
  %4046 = vmatpush1.msra.mxu0 0.0
  %4047 = vmatprep.subr.mxu0 0.0
  %4048 = vmatpush1.msra.mxu0 0.0
  %4049 = vmatprep.subr.mxu0 0.0
  %4050 = vmatpush1.msra.mxu0 0.0
  %4051 = vmatprep.subr.mxu0 0.0
  %4052 = vmatpush1.msra.mxu0 0.0
  %4053 = vmatprep.subr.mxu0 0.0
  %4054 = vmatpush1.msra.mxu0 0.0
  %4055 = vmatprep.subr.mxu0 0.0
  %4056 = vmatpush1.msra.mxu0 0.0
  %4057 = vmatprep.subr.mxu0 0.0
  %4058 = vmatpush1.msra.mxu0 0.0
  %4059 = vmatprep.mubr.f32.mxu0 0.0
  %v4060 = vand.u32 %v3012, 4294901760
  %4061 = vmatmul.mubr.f32.gmra.mrb[0].mxu0 %v4060
  %v4062 = vpop.f32.mrb[0].mxu0
  %v4063 = vadd.f32 %v3888, %v4062
  %v4064 = vpop.f32.mrb[0].mxu0
  %4065 = vmatprep.mubr.f32.mxu0 0.0
  %v4066 = vand.u32 %v3013, 4294901760
  %4067 = vmatmul.mubr.f32.gmra.mrb[0].mxu0 %v4066
  %v4068 = vpop.f32.mrb[0].mxu0
  %v4069 = vadd.f32 %v3896, %v4068
  %v4070 = vpop.f32.mrb[0].mxu0
  %4071 = vmatprep.mubr.f32.mxu0 0.0
  %v4072 = vand.u32 %v3014, 4294901760
  %4073 = vmatmul.mubr.f32.gmra.mrb[0].mxu0 %v4072
  %v4074 = vpop.f32.mrb[0].mxu0
  %v4075 = vadd.f32 %v3904, %v4074
  %v4076 = vpop.f32.mrb[0].mxu0
  %4077 = vmatprep.mubr.f32.mxu0 0.0
  %v4078 = vand.u32 %v3015, 4294901760
  %4079 = vmatmul.mubr.f32.gmra.mrb[0].mxu0 %v4078
  %v4080 = vpop.f32.mrb[0].mxu0
  %v4081 = vadd.f32 %v3912, %v4080
  %v4082 = vpop.f32.mrb[0].mxu0
  %4083 = vmatprep.mubr.f32.mxu0 0.0
  %v4084 = vand.u32 %v3268, 4294901760
  %4085 = vmatmul.mubr.f32.gmra.mrb[0].mxu0 %v4084
  %v4086 = vpop.f32.mrb[0].mxu0
  %v4087 = vadd.f32 %v3920, %v4086
  %v4088 = vpop.f32.mrb[0].mxu0
  %4089 = vmatprep.mubr.f32.mxu0 0.0
  %v4090 = vand.u32 %v3269, 4294901760
  %4091 = vmatmul.mubr.f32.gmra.mrb[0].mxu0 %v4090
  %v4092 = vpop.f32.mrb[0].mxu0
  %v4093 = vadd.f32 %v3928, %v4092
  %v4094 = vpop.f32.mrb[0].mxu0
  %4095 = vmatprep.mubr.f32.mxu0 0.0
  %v4096 = vand.u32 %v3270, 4294901760
  %4097 = vmatmul.mubr.f32.gmra.mrb[0].mxu0 %v4096
  %v4098 = vpop.f32.mrb[0].mxu0
  %v4099 = vadd.f32 %v3936, %v4098
  %v4100 = vpop.f32.mrb[0].mxu0
  %4101 = vmatprep.mubr.f32.mxu0 0.0
  %v4102 = vand.u32 %v3271, 4294901760
  %4103 = vmatmul.mubr.f32.gmra.mrb[0].mxu0 %v4102
  %v4104 = vpop.f32.mrb[0].mxu0
  %v4105 = vadd.f32 %v3944, %v4104
  %v4106 = vpop.f32.mrb[0].mxu0
  %4107 = vdwg.mxu0
  %4108 = vmatprep.subr.mxu0 0.0
  %v4109 = vand.u32 %v3272, 4294901760
  %4110 = vmatpush1.msra.mxu0 %v4109
  %4111 = vmatprep.subr.mxu0 0.0
  %v4112 = vand.u32 %v3273, 4294901760
  %4113 = vmatpush1.msra.mxu0 %v4112
  %4114 = vmatprep.subr.mxu0 0.0
  %v4115 = vand.u32 %v3274, 4294901760
  %4116 = vmatpush1.msra.mxu0 %v4115
  %4117 = vmatprep.subr.mxu0 0.0
  %v4118 = vand.u32 %v3275, 4294901760
  %4119 = vmatpush1.msra.mxu0 %v4118
  %4120 = vmatprep.subr.mxu0 0.0
  %v4121 = vand.u32 %v3276, 4294901760
  %4122 = vmatpush1.msra.mxu0 %v4121
  %4123 = vmatprep.subr.mxu0 0.0
  %v4124 = vand.u32 %v3277, 4294901760
  %4125 = vmatpush1.msra.mxu0 %v4124
  %4126 = vmatprep.subr.mxu0 0.0
  %v4127 = vand.u32 %v3278, 4294901760
  %4128 = vmatpush1.msra.mxu0 %v4127
  %4129 = vmatprep.subr.mxu0 0.0
  %v4130 = vand.u32 %v3279, 4294901760
  %4131 = vmatpush1.msra.mxu0 %v4130
  %4132 = vmatprep.subr.mxu0 0.0
  %v4133 = vand.u32 %v3280, 4294901760
  %4134 = vmatpush1.msra.mxu0 %v4133
  %4135 = vmatprep.subr.mxu0 0.0
  %v4136 = vand.u32 %v3281, 4294901760
  %4137 = vmatpush1.msra.mxu0 %v4136
  %4138 = vmatprep.subr.mxu0 0.0
  %v4139 = vand.u32 %v3282, 4294901760
  %4140 = vmatpush1.msra.mxu0 %v4139
  %4141 = vmatprep.subr.mxu0 0.0
  %v4142 = vand.u32 %v3283, 4294901760
  %4143 = vmatpush1.msra.mxu0 %v4142
  %4144 = vmatprep.subr.mxu0 0.0
  %v4145 = vand.u32 %v3284, 4294901760
  %4146 = vmatpush1.msra.mxu0 %v4145
  %4147 = vmatprep.subr.mxu0 0.0
  %v4148 = vand.u32 %v3285, 4294901760
  %4149 = vmatpush1.msra.mxu0 %v4148
  %4150 = vmatprep.subr.mxu0 0.0
  %v4151 = vand.u32 %v3286, 4294901760
  %4152 = vmatpush1.msra.mxu0 %v4151
  %4153 = vmatprep.subr.mxu0 0.0
  %v4154 = vand.u32 %v3287, 4294901760
  %4155 = vmatpush1.msra.mxu0 %v4154
  %4156 = vmatprep.subr.mxu0 0.0
  %4157 = vmatpush1.msra.mxu0 0.0
  %4158 = vmatprep.subr.mxu0 0.0
  %4159 = vmatpush1.msra.mxu0 0.0
  %4160 = vmatprep.subr.mxu0 0.0
  %4161 = vmatpush1.msra.mxu0 0.0
  %4162 = vmatprep.subr.mxu0 0.0
  %4163 = vmatpush1.msra.mxu0 0.0
  %4164 = vmatprep.subr.mxu0 0.0
  %4165 = vmatpush1.msra.mxu0 0.0
  %4166 = vmatprep.subr.mxu0 0.0
  %4167 = vmatpush1.msra.mxu0 0.0
  %4168 = vmatprep.subr.mxu0 0.0
  %4169 = vmatpush1.msra.mxu0 0.0
  %4170 = vmatprep.subr.mxu0 0.0
  %4171 = vmatpush1.msra.mxu0 0.0
  %4172 = vmatprep.subr.mxu0 0.0
  %4173 = vmatpush1.msra.mxu0 0.0
  %4174 = vmatprep.subr.mxu0 0.0
  %4175 = vmatpush1.msra.mxu0 0.0
  %4176 = vmatprep.subr.mxu0 0.0
  %4177 = vmatpush1.msra.mxu0 0.0
  %4178 = vmatprep.subr.mxu0 0.0
  %4179 = vmatpush1.msra.mxu0 0.0
  %4180 = vmatprep.subr.mxu0 0.0
  %4181 = vmatpush1.msra.mxu0 0.0
  %4182 = vmatprep.subr.mxu0 0.0
  %4183 = vmatpush1.msra.mxu0 0.0
  %4184 = vmatprep.subr.mxu0 0.0
  %4185 = vmatpush1.msra.mxu0 0.0
  %4186 = vmatprep.subr.mxu0 0.0
  %4187 = vmatpush1.msra.mxu0 0.0
  %4188 = vmatprep.mubr.f32.mxu0 0.0
  %v4189 = vand.u32 %v3012, 4294901760
  %4190 = vmatmul.mubr.f32.gmra.mrb[0].mxu0 %v4189
  %v4191 = vpop.f32.mrb[0].mxu0
  %v4192 = vadd.f32 %v4063, %v4191
  %v4193 = vpop.f32.mrb[0].mxu0
  %4194 = vmatprep.mubr.f32.mxu0 0.0
  %v4195 = vand.u32 %v3013, 4294901760
  %4196 = vmatmul.mubr.f32.gmra.mrb[0].mxu0 %v4195
  %v4197 = vpop.f32.mrb[0].mxu0
  %v4198 = vadd.f32 %v4069, %v4197
  %v4199 = vpop.f32.mrb[0].mxu0
  %4200 = vmatprep.mubr.f32.mxu0 0.0
  %v4201 = vand.u32 %v3014, 4294901760
  %4202 = vmatmul.mubr.f32.gmra.mrb[0].mxu0 %v4201
  %v4203 = vpop.f32.mrb[0].mxu0
  %v4204 = vadd.f32 %v4075, %v4203
  %v4205 = vpop.f32.mrb[0].mxu0
  %4206 = vmatprep.mubr.f32.mxu0 0.0
  %v4207 = vand.u32 %v3015, 4294901760
  %4208 = vmatmul.mubr.f32.gmra.mrb[0].mxu0 %v4207
  %v4209 = vpop.f32.mrb[0].mxu0
  %v4210 = vadd.f32 %v4081, %v4209
  %v4211 = vpop.f32.mrb[0].mxu0
  %4212 = vmatprep.mubr.f32.mxu0 0.0
  %v4213 = vand.u32 %v3268, 4294901760
  %4214 = vmatmul.mubr.f32.gmra.mrb[0].mxu0 %v4213
  %v4215 = vpop.f32.mrb[0].mxu0
  %v4216 = vadd.f32 %v4087, %v4215
  %v4217 = vpop.f32.mrb[0].mxu0
  %4218 = vmatprep.mubr.f32.mxu0 0.0
  %v4219 = vand.u32 %v3269, 4294901760
  %4220 = vmatmul.mubr.f32.gmra.mrb[0].mxu0 %v4219
  %v4221 = vpop.f32.mrb[0].mxu0
  %v4222 = vadd.f32 %v4093, %v4221
  %v4223 = vpop.f32.mrb[0].mxu0
  %4224 = vmatprep.mubr.f32.mxu0 0.0
  %v4225 = vand.u32 %v3270, 4294901760
  %4226 = vmatmul.mubr.f32.gmra.mrb[0].mxu0 %v4225
  %v4227 = vpop.f32.mrb[0].mxu0
  %v4228 = vadd.f32 %v4099, %v4227
  %v4229 = vpop.f32.mrb[0].mxu0
  %4230 = vmatprep.mubr.f32.mxu0 0.0
  %v4231 = vand.u32 %v3271, 4294901760
  %4232 = vmatmul.mubr.f32.gmra.mrb[0].mxu0 %v4231
  %v4233 = vpop.f32.mrb[0].mxu0
  %v4234 = vadd.f32 %v4105, %v4233
  %v4235 = vpop.f32.mrb[0].mxu0
  %4236 = vdwg.mxu0
  %v4237 = vld [vmem:[%s9] sm:$0xff]
  %v4238 = vld [vmem:[%s9 + $0x8] sm:$0xff]
  %v4239 = vld [vmem:[%s9 + $0x10] sm:$0xff]
  %v4240 = vld [vmem:[%s9 + $0x18] sm:$0xff]
  %v4241 = vld [vmem:[%s10] sm:$0xff]
  %v4242 = vld [vmem:[%s10 + $0x8] sm:$0xff]
  %v4243 = vld [vmem:[%s10 + $0x10] sm:$0xff]
  %v4244 = vld [vmem:[%s10 + $0x18] sm:$0xff]
  %4246 = vset.pattern.permute.xlu0 0
  %4247 = vperm.xlu0 %4246, %v4241
  %v4248 = vpop.permute.xlu0 %4247
  %4251 = vset.pattern.permute.xlu0 0
  %4252 = vperm.xlu0 %4251, %v4242
  %v4253 = vpop.permute.xlu0 %4252
  %4256 = vset.pattern.permute.xlu0 0
  %4257 = vperm.xlu0 %4256, %v4243
  %v4258 = vpop.permute.xlu0 %4257
  %4261 = vset.pattern.permute.xlu0 0
  %4262 = vperm.xlu0 %4261, %v4244
  %v4263 = vpop.permute.xlu0 %4262
  %vm4265 = vcmask 261120
  %v4267 = vsel %vm4265, %v4237, 0
  %v4270 = vsel %vm4265, %v4238, 0
  %v4273 = vsel %vm4265, %v4239, 0
  %v4276 = vsel %vm4265, %v4240, 0
  %v4278 = vand.u32 %v4216, 4294901760
  %4279 = vmatprep.subr.mxu0 %v4278
  %v4280 = vand.u32 %v4192, 4294901760
  %4281 = vmatpush1.msra.mxu0 %v4280
  %v4282 = vand.u32 %v4222, 4294901760
  %4283 = vmatprep.subr.mxu0 %v4282
  %v4284 = vand.u32 %v4198, 4294901760
  %4285 = vmatpush1.msra.mxu0 %v4284
  %v4286 = vand.u32 %v4228, 4294901760
  %4287 = vmatprep.subr.mxu0 %v4286
  %v4288 = vand.u32 %v4204, 4294901760
  %4289 = vmatpush1.msra.mxu0 %v4288
  %v4290 = vand.u32 %v4234, 4294901760
  %4291 = vmatprep.subr.mxu0 %v4290
  %v4292 = vand.u32 %v4210, 4294901760
  %4293 = vmatpush1.msra.mxu0 %v4292
  %4294 = vmatprep.subr.mxu0 0.0
  %4295 = vmatpush1.msra.mxu0 0.0
  %4296 = vmatprep.subr.mxu0 0.0
  %4297 = vmatpush1.msra.mxu0 0.0
  %4298 = vmatprep.subr.mxu0 0.0
  %4299 = vmatpush1.msra.mxu0 0.0
  %4300 = vmatprep.subr.mxu0 0.0
  %4301 = vmatpush1.msra.mxu0 0.0
  %4302 = vmatprep.subr.mxu0 0.0
  %4303 = vmatpush1.msra.mxu0 0.0
  %4304 = vmatprep.subr.mxu0 0.0
  %4305 = vmatpush1.msra.mxu0 0.0
  %4306 = vmatprep.subr.mxu0 0.0
  %4307 = vmatpush1.msra.mxu0 0.0
  %4308 = vmatprep.subr.mxu0 0.0
  %4309 = vmatpush1.msra.mxu0 0.0
  %4310 = vmatprep.subr.mxu0 0.0
  %4311 = vmatpush1.msra.mxu0 0.0
  %4312 = vmatprep.subr.mxu0 0.0
  %4313 = vmatpush1.msra.mxu0 0.0
  %4314 = vmatprep.subr.mxu0 0.0
  %4315 = vmatpush1.msra.mxu0 0.0
  %4316 = vmatprep.subr.mxu0 0.0
  %4317 = vmatpush1.msra.mxu0 0.0
  %4318 = vmatprep.subr.mxu0 0.0
  %4319 = vmatpush1.msra.mxu0 0.0
  %4320 = vmatprep.subr.mxu0 0.0
  %4321 = vmatpush1.msra.mxu0 0.0
  %4322 = vmatprep.subr.mxu0 0.0
  %4323 = vmatpush1.msra.mxu0 0.0
  %4324 = vmatprep.subr.mxu0 0.0
  %4325 = vmatpush1.msra.mxu0 0.0
  %4326 = vmatprep.subr.mxu0 0.0
  %4327 = vmatpush1.msra.mxu0 0.0
  %4328 = vmatprep.subr.mxu0 0.0
  %4329 = vmatpush1.msra.mxu0 0.0
  %4330 = vmatprep.subr.mxu0 0.0
  %4331 = vmatpush1.msra.mxu0 0.0
  %4332 = vmatprep.subr.mxu0 0.0
  %4333 = vmatpush1.msra.mxu0 0.0
  %4334 = vmatprep.subr.mxu0 0.0
  %4335 = vmatpush1.msra.mxu0 0.0
  %4336 = vmatprep.subr.mxu0 0.0
  %4337 = vmatpush1.msra.mxu0 0.0
  %4338 = vmatprep.subr.mxu0 0.0
  %4339 = vmatpush1.msra.mxu0 0.0
  %4340 = vmatprep.subr.mxu0 0.0
  %4341 = vmatpush1.msra.mxu0 0.0
  %4342 = vmatprep.subr.mxu0 0.0
  %4343 = vmatpush1.msra.mxu0 0.0
  %4344 = vmatprep.subr.mxu0 0.0
  %4345 = vmatpush1.msra.mxu0 0.0
  %4346 = vmatprep.subr.mxu0 0.0
  %4347 = vmatpush1.msra.mxu0 0.0
  %4348 = vmatprep.subr.mxu0 0.0
  %4349 = vmatpush1.msra.mxu0 0.0
  %4350 = vmatprep.mubr.f32.mxu0 0.0
  %v4351 = vand.u32 %v4267, 4294901760
  %v4352 = vsub.f32 %v4267, %v4351
  %v4353 = vand.u32 %v4352, 4294901760
  %v4354 = vsub.f32 %v4352, %v4353
  %v4355 = vand.u32 %v4354, 4294901760
  %4356 = vmatmul.mubr.f32.gmra.mrb[0].mxu0 %v4355
  %v4357 = vpop.f32.mrb[0].mxu0
  %v4358 = vadd.f32 %v4248, %v4357
  %v4359 = vpop.f32.mrb[0].mxu0
  %v4360 = vadd.f32 %v4248, %v4359
  %4361 = vmatprep.mubr.f32.mxu0 0.0
  %v4362 = vand.u32 %v4270, 4294901760
  %v4363 = vsub.f32 %v4270, %v4362
  %v4364 = vand.u32 %v4363, 4294901760
  %v4365 = vsub.f32 %v4363, %v4364
  %v4366 = vand.u32 %v4365, 4294901760
  %4367 = vmatmul.mubr.f32.gmra.mrb[0].mxu0 %v4366
  %v4368 = vpop.f32.mrb[0].mxu0
  %v4369 = vadd.f32 %v4253, %v4368
  %v4370 = vpop.f32.mrb[0].mxu0
  %v4371 = vadd.f32 %v4253, %v4370
  %4372 = vmatprep.mubr.f32.mxu0 0.0
  %v4373 = vand.u32 %v4273, 4294901760
  %v4374 = vsub.f32 %v4273, %v4373
  %v4375 = vand.u32 %v4374, 4294901760
  %v4376 = vsub.f32 %v4374, %v4375
  %v4377 = vand.u32 %v4376, 4294901760
  %4378 = vmatmul.mubr.f32.gmra.mrb[0].mxu0 %v4377
  %v4379 = vpop.f32.mrb[0].mxu0
  %v4380 = vadd.f32 %v4258, %v4379
  %v4381 = vpop.f32.mrb[0].mxu0
  %v4382 = vadd.f32 %v4258, %v4381
  %4383 = vmatprep.mubr.f32.mxu0 0.0
  %v4384 = vand.u32 %v4276, 4294901760
  %v4385 = vsub.f32 %v4276, %v4384
  %v4386 = vand.u32 %v4385, 4294901760
  %v4387 = vsub.f32 %v4385, %v4386
  %v4388 = vand.u32 %v4387, 4294901760
  %4389 = vmatmul.mubr.f32.gmra.mrb[0].mxu0 %v4388
  %v4390 = vpop.f32.mrb[0].mxu0
  %v4391 = vadd.f32 %v4263, %v4390
  %v4392 = vpop.f32.mrb[0].mxu0
  %v4393 = vadd.f32 %v4263, %v4392
  %4394 = vdwg.mxu0
  %v4395 = vand.u32 %v4216, 4294901760
  %v4396 = vsub.f32 %v4216, %v4395
  %v4397 = vand.u32 %v4396, 4294901760
  %v4398 = vsub.f32 %v4396, %v4397
  %v4399 = vand.u32 %v4398, 4294901760
  %4400 = vmatprep.subr.mxu0 %v4399
  %v4401 = vand.u32 %v4192, 4294901760
  %v4402 = vsub.f32 %v4192, %v4401
  %v4403 = vand.u32 %v4402, 4294901760
  %v4404 = vsub.f32 %v4402, %v4403
  %v4405 = vand.u32 %v4404, 4294901760
  %4406 = vmatpush1.msra.mxu0 %v4405
  %v4407 = vand.u32 %v4222, 4294901760
  %v4408 = vsub.f32 %v4222, %v4407
  %v4409 = vand.u32 %v4408, 4294901760
  %v4410 = vsub.f32 %v4408, %v4409
  %v4411 = vand.u32 %v4410, 4294901760
  %4412 = vmatprep.subr.mxu0 %v4411
  %v4413 = vand.u32 %v4198, 4294901760
  %v4414 = vsub.f32 %v4198, %v4413
  %v4415 = vand.u32 %v4414, 4294901760
  %v4416 = vsub.f32 %v4414, %v4415
  %v4417 = vand.u32 %v4416, 4294901760
  %4418 = vmatpush1.msra.mxu0 %v4417
  %v4419 = vand.u32 %v4228, 4294901760
  %v4420 = vsub.f32 %v4228, %v4419
  %v4421 = vand.u32 %v4420, 4294901760
  %v4422 = vsub.f32 %v4420, %v4421
  %v4423 = vand.u32 %v4422, 4294901760
  %4424 = vmatprep.subr.mxu0 %v4423
  %v4425 = vand.u32 %v4204, 4294901760
  %v4426 = vsub.f32 %v4204, %v4425
  %v4427 = vand.u32 %v4426, 4294901760
  %v4428 = vsub.f32 %v4426, %v4427
  %v4429 = vand.u32 %v4428, 4294901760
  %4430 = vmatpush1.msra.mxu0 %v4429
  %v4431 = vand.u32 %v4234, 4294901760
  %v4432 = vsub.f32 %v4234, %v4431
  %v4433 = vand.u32 %v4432, 4294901760
  %v4434 = vsub.f32 %v4432, %v4433
  %v4435 = vand.u32 %v4434, 4294901760
  %4436 = vmatprep.subr.mxu0 %v4435
  %v4437 = vand.u32 %v4210, 4294901760
  %v4438 = vsub.f32 %v4210, %v4437
  %v4439 = vand.u32 %v4438, 4294901760
  %v4440 = vsub.f32 %v4438, %v4439
  %v4441 = vand.u32 %v4440, 4294901760
  %4442 = vmatpush1.msra.mxu0 %v4441
  %4443 = vmatprep.subr.mxu0 0.0
  %4444 = vmatpush1.msra.mxu0 0.0
  %4445 = vmatprep.subr.mxu0 0.0
  %4446 = vmatpush1.msra.mxu0 0.0
  %4447 = vmatprep.subr.mxu0 0.0
  %4448 = vmatpush1.msra.mxu0 0.0
  %4449 = vmatprep.subr.mxu0 0.0
  %4450 = vmatpush1.msra.mxu0 0.0
  %4451 = vmatprep.subr.mxu0 0.0
  %4452 = vmatpush1.msra.mxu0 0.0
  %4453 = vmatprep.subr.mxu0 0.0
  %4454 = vmatpush1.msra.mxu0 0.0
  %4455 = vmatprep.subr.mxu0 0.0
  %4456 = vmatpush1.msra.mxu0 0.0
  %4457 = vmatprep.subr.mxu0 0.0
  %4458 = vmatpush1.msra.mxu0 0.0
  %4459 = vmatprep.subr.mxu0 0.0
  %4460 = vmatpush1.msra.mxu0 0.0
  %4461 = vmatprep.subr.mxu0 0.0
  %4462 = vmatpush1.msra.mxu0 0.0
  %4463 = vmatprep.subr.mxu0 0.0
  %4464 = vmatpush1.msra.mxu0 0.0
  %4465 = vmatprep.subr.mxu0 0.0
  %4466 = vmatpush1.msra.mxu0 0.0
  %4467 = vmatprep.subr.mxu0 0.0
  %4468 = vmatpush1.msra.mxu0 0.0
  %4469 = vmatprep.subr.mxu0 0.0
  %4470 = vmatpush1.msra.mxu0 0.0
  %4471 = vmatprep.subr.mxu0 0.0
  %4472 = vmatpush1.msra.mxu0 0.0
  %4473 = vmatprep.subr.mxu0 0.0
  %4474 = vmatpush1.msra.mxu0 0.0
  %4475 = vmatprep.subr.mxu0 0.0
  %4476 = vmatpush1.msra.mxu0 0.0
  %4477 = vmatprep.subr.mxu0 0.0
  %4478 = vmatpush1.msra.mxu0 0.0
  %4479 = vmatprep.subr.mxu0 0.0
  %4480 = vmatpush1.msra.mxu0 0.0
  %4481 = vmatprep.subr.mxu0 0.0
  %4482 = vmatpush1.msra.mxu0 0.0
  %4483 = vmatprep.subr.mxu0 0.0
  %4484 = vmatpush1.msra.mxu0 0.0
  %4485 = vmatprep.subr.mxu0 0.0
  %4486 = vmatpush1.msra.mxu0 0.0
  %4487 = vmatprep.subr.mxu0 0.0
  %4488 = vmatpush1.msra.mxu0 0.0
  %4489 = vmatprep.subr.mxu0 0.0
  %4490 = vmatpush1.msra.mxu0 0.0
  %4491 = vmatprep.subr.mxu0 0.0
  %4492 = vmatpush1.msra.mxu0 0.0
  %4493 = vmatprep.subr.mxu0 0.0
  %4494 = vmatpush1.msra.mxu0 0.0
  %4495 = vmatprep.subr.mxu0 0.0
  %4496 = vmatpush1.msra.mxu0 0.0
  %4497 = vmatprep.subr.mxu0 0.0
  %4498 = vmatpush1.msra.mxu0 0.0
  %4499 = vmatprep.mubr.f32.mxu0 0.0
  %v4500 = vand.u32 %v4267, 4294901760
  %4501 = vmatmul.mubr.f32.gmra.mrb[0].mxu0 %v4500
  %v4502 = vpop.f32.mrb[0].mxu0
  %v4503 = vadd.f32 %v4358, %v4502
  %v4504 = vpop.f32.mrb[0].mxu0
  %v4505 = vadd.f32 %v4360, %v4504
  %4506 = vmatprep.mubr.f32.mxu0 0.0
  %v4507 = vand.u32 %v4270, 4294901760
  %4508 = vmatmul.mubr.f32.gmra.mrb[0].mxu0 %v4507
  %v4509 = vpop.f32.mrb[0].mxu0
  %v4510 = vadd.f32 %v4369, %v4509
  %v4511 = vpop.f32.mrb[0].mxu0
  %v4512 = vadd.f32 %v4371, %v4511
  %4513 = vmatprep.mubr.f32.mxu0 0.0
  %v4514 = vand.u32 %v4273, 4294901760
  %4515 = vmatmul.mubr.f32.gmra.mrb[0].mxu0 %v4514
  %v4516 = vpop.f32.mrb[0].mxu0
  %v4517 = vadd.f32 %v4380, %v4516
  %v4518 = vpop.f32.mrb[0].mxu0
  %v4519 = vadd.f32 %v4382, %v4518
  %4520 = vmatprep.mubr.f32.mxu0 0.0
  %v4521 = vand.u32 %v4276, 4294901760
  %4522 = vmatmul.mubr.f32.gmra.mrb[0].mxu0 %v4521
  %v4523 = vpop.f32.mrb[0].mxu0
  %v4524 = vadd.f32 %v4391, %v4523
  %v4525 = vpop.f32.mrb[0].mxu0
  %v4526 = vadd.f32 %v4393, %v4525
  %4527 = vdwg.mxu0
  %v4528 = vand.u32 %v4216, 4294901760
  %v4529 = vsub.f32 %v4216, %v4528
  %4530 = vmatprep.subr.mxu0 %v4529
  %v4531 = vand.u32 %v4192, 4294901760
  %v4532 = vsub.f32 %v4192, %v4531
  %4533 = vmatpush1.msra.mxu0 %v4532
  %v4534 = vand.u32 %v4222, 4294901760
  %v4535 = vsub.f32 %v4222, %v4534
  %4536 = vmatprep.subr.mxu0 %v4535
  %v4537 = vand.u32 %v4198, 4294901760
  %v4538 = vsub.f32 %v4198, %v4537
  %4539 = vmatpush1.msra.mxu0 %v4538
  %v4540 = vand.u32 %v4228, 4294901760
  %v4541 = vsub.f32 %v4228, %v4540
  %4542 = vmatprep.subr.mxu0 %v4541
  %v4543 = vand.u32 %v4204, 4294901760
  %v4544 = vsub.f32 %v4204, %v4543
  %4545 = vmatpush1.msra.mxu0 %v4544
  %v4546 = vand.u32 %v4234, 4294901760
  %v4547 = vsub.f32 %v4234, %v4546
  %4548 = vmatprep.subr.mxu0 %v4547
  %v4549 = vand.u32 %v4210, 4294901760
  %v4550 = vsub.f32 %v4210, %v4549
  %4551 = vmatpush1.msra.mxu0 %v4550
  %4552 = vmatprep.subr.mxu0 0.0
  %4553 = vmatpush1.msra.mxu0 0.0
  %4554 = vmatprep.subr.mxu0 0.0
  %4555 = vmatpush1.msra.mxu0 0.0
  %4556 = vmatprep.subr.mxu0 0.0
  %4557 = vmatpush1.msra.mxu0 0.0
  %4558 = vmatprep.subr.mxu0 0.0
  %4559 = vmatpush1.msra.mxu0 0.0
  %4560 = vmatprep.subr.mxu0 0.0
  %4561 = vmatpush1.msra.mxu0 0.0
  %4562 = vmatprep.subr.mxu0 0.0
  %4563 = vmatpush1.msra.mxu0 0.0
  %4564 = vmatprep.subr.mxu0 0.0
  %4565 = vmatpush1.msra.mxu0 0.0
  %4566 = vmatprep.subr.mxu0 0.0
  %4567 = vmatpush1.msra.mxu0 0.0
  %4568 = vmatprep.subr.mxu0 0.0
  %4569 = vmatpush1.msra.mxu0 0.0
  %4570 = vmatprep.subr.mxu0 0.0
  %4571 = vmatpush1.msra.mxu0 0.0
  %4572 = vmatprep.subr.mxu0 0.0
  %4573 = vmatpush1.msra.mxu0 0.0
  %4574 = vmatprep.subr.mxu0 0.0
  %4575 = vmatpush1.msra.mxu0 0.0
  %4576 = vmatprep.subr.mxu0 0.0
  %4577 = vmatpush1.msra.mxu0 0.0
  %4578 = vmatprep.subr.mxu0 0.0
  %4579 = vmatpush1.msra.mxu0 0.0
  %4580 = vmatprep.subr.mxu0 0.0
  %4581 = vmatpush1.msra.mxu0 0.0
  %4582 = vmatprep.subr.mxu0 0.0
  %4583 = vmatpush1.msra.mxu0 0.0
  %4584 = vmatprep.subr.mxu0 0.0
  %4585 = vmatpush1.msra.mxu0 0.0
  %4586 = vmatprep.subr.mxu0 0.0
  %4587 = vmatpush1.msra.mxu0 0.0
  %4588 = vmatprep.subr.mxu0 0.0
  %4589 = vmatpush1.msra.mxu0 0.0
  %4590 = vmatprep.subr.mxu0 0.0
  %4591 = vmatpush1.msra.mxu0 0.0
  %4592 = vmatprep.subr.mxu0 0.0
  %4593 = vmatpush1.msra.mxu0 0.0
  %4594 = vmatprep.subr.mxu0 0.0
  %4595 = vmatpush1.msra.mxu0 0.0
  %4596 = vmatprep.subr.mxu0 0.0
  %4597 = vmatpush1.msra.mxu0 0.0
  %4598 = vmatprep.subr.mxu0 0.0
  %4599 = vmatpush1.msra.mxu0 0.0
  %4600 = vmatprep.subr.mxu0 0.0
  %4601 = vmatpush1.msra.mxu0 0.0
  %4602 = vmatprep.subr.mxu0 0.0
  %4603 = vmatpush1.msra.mxu0 0.0
  %4604 = vmatprep.subr.mxu0 0.0
  %4605 = vmatpush1.msra.mxu0 0.0
  %4606 = vmatprep.subr.mxu0 0.0
  %4607 = vmatpush1.msra.mxu0 0.0
  %4608 = vmatprep.mubr.f32.mxu0 0.0
  %v4609 = vand.u32 %v4267, 4294901760
  %v4610 = vsub.f32 %v4267, %v4609
  %4611 = vmatmul.mubr.f32.gmra.mrb[0].mxu0 %v4610
  %v4612 = vpop.f32.mrb[0].mxu0
  %v4613 = vadd.f32 %v4503, %v4612
  %v4614 = vpop.f32.mrb[0].mxu0
  %v4615 = vadd.f32 %v4505, %v4614
  %4616 = vmatprep.mubr.f32.mxu0 0.0
  %v4617 = vand.u32 %v4270, 4294901760
  %v4618 = vsub.f32 %v4270, %v4617
  %4619 = vmatmul.mubr.f32.gmra.mrb[0].mxu0 %v4618
  %v4620 = vpop.f32.mrb[0].mxu0
  %v4621 = vadd.f32 %v4510, %v4620
  %v4622 = vpop.f32.mrb[0].mxu0
  %v4623 = vadd.f32 %v4512, %v4622
  %4624 = vmatprep.mubr.f32.mxu0 0.0
  %v4625 = vand.u32 %v4273, 4294901760
  %v4626 = vsub.f32 %v4273, %v4625
  %4627 = vmatmul.mubr.f32.gmra.mrb[0].mxu0 %v4626
  %v4628 = vpop.f32.mrb[0].mxu0
  %v4629 = vadd.f32 %v4517, %v4628
  %v4630 = vpop.f32.mrb[0].mxu0
  %v4631 = vadd.f32 %v4519, %v4630
  %4632 = vmatprep.mubr.f32.mxu0 0.0
  %v4633 = vand.u32 %v4276, 4294901760
  %v4634 = vsub.f32 %v4276, %v4633
  %4635 = vmatmul.mubr.f32.gmra.mrb[0].mxu0 %v4634
  %v4636 = vpop.f32.mrb[0].mxu0
  %v4637 = vadd.f32 %v4524, %v4636
  %v4638 = vpop.f32.mrb[0].mxu0
  %v4639 = vadd.f32 %v4526, %v4638
  %4640 = vdwg.mxu0
  %v4641 = vand.u32 %v4216, 4294901760
  %4642 = vmatprep.subr.mxu0 %v4641
  %v4643 = vand.u32 %v4192, 4294901760
  %4644 = vmatpush1.msra.mxu0 %v4643
  %v4645 = vand.u32 %v4222, 4294901760
  %4646 = vmatprep.subr.mxu0 %v4645
  %v4647 = vand.u32 %v4198, 4294901760
  %4648 = vmatpush1.msra.mxu0 %v4647
  %v4649 = vand.u32 %v4228, 4294901760
  %4650 = vmatprep.subr.mxu0 %v4649
  %v4651 = vand.u32 %v4204, 4294901760
  %4652 = vmatpush1.msra.mxu0 %v4651
  %v4653 = vand.u32 %v4234, 4294901760
  %4654 = vmatprep.subr.mxu0 %v4653
  %v4655 = vand.u32 %v4210, 4294901760
  %4656 = vmatpush1.msra.mxu0 %v4655
  %4657 = vmatprep.subr.mxu0 0.0
  %4658 = vmatpush1.msra.mxu0 0.0
  %4659 = vmatprep.subr.mxu0 0.0
  %4660 = vmatpush1.msra.mxu0 0.0
  %4661 = vmatprep.subr.mxu0 0.0
  %4662 = vmatpush1.msra.mxu0 0.0
  %4663 = vmatprep.subr.mxu0 0.0
  %4664 = vmatpush1.msra.mxu0 0.0
  %4665 = vmatprep.subr.mxu0 0.0
  %4666 = vmatpush1.msra.mxu0 0.0
  %4667 = vmatprep.subr.mxu0 0.0
  %4668 = vmatpush1.msra.mxu0 0.0
  %4669 = vmatprep.subr.mxu0 0.0
  %4670 = vmatpush1.msra.mxu0 0.0
  %4671 = vmatprep.subr.mxu0 0.0
  %4672 = vmatpush1.msra.mxu0 0.0
  %4673 = vmatprep.subr.mxu0 0.0
  %4674 = vmatpush1.msra.mxu0 0.0
  %4675 = vmatprep.subr.mxu0 0.0
  %4676 = vmatpush1.msra.mxu0 0.0
  %4677 = vmatprep.subr.mxu0 0.0
  %4678 = vmatpush1.msra.mxu0 0.0
  %4679 = vmatprep.subr.mxu0 0.0
  %4680 = vmatpush1.msra.mxu0 0.0
  %4681 = vmatprep.subr.mxu0 0.0
  %4682 = vmatpush1.msra.mxu0 0.0
  %4683 = vmatprep.subr.mxu0 0.0
  %4684 = vmatpush1.msra.mxu0 0.0
  %4685 = vmatprep.subr.mxu0 0.0
  %4686 = vmatpush1.msra.mxu0 0.0
  %4687 = vmatprep.subr.mxu0 0.0
  %4688 = vmatpush1.msra.mxu0 0.0
  %4689 = vmatprep.subr.mxu0 0.0
  %4690 = vmatpush1.msra.mxu0 0.0
  %4691 = vmatprep.subr.mxu0 0.0
  %4692 = vmatpush1.msra.mxu0 0.0
  %4693 = vmatprep.subr.mxu0 0.0
  %4694 = vmatpush1.msra.mxu0 0.0
  %4695 = vmatprep.subr.mxu0 0.0
  %4696 = vmatpush1.msra.mxu0 0.0
  %4697 = vmatprep.subr.mxu0 0.0
  %4698 = vmatpush1.msra.mxu0 0.0
  %4699 = vmatprep.subr.mxu0 0.0
  %4700 = vmatpush1.msra.mxu0 0.0
  %4701 = vmatprep.subr.mxu0 0.0
  %4702 = vmatpush1.msra.mxu0 0.0
  %4703 = vmatprep.subr.mxu0 0.0
  %4704 = vmatpush1.msra.mxu0 0.0
  %4705 = vmatprep.subr.mxu0 0.0
  %4706 = vmatpush1.msra.mxu0 0.0
  %4707 = vmatprep.subr.mxu0 0.0
  %4708 = vmatpush1.msra.mxu0 0.0
  %4709 = vmatprep.subr.mxu0 0.0
  %4710 = vmatpush1.msra.mxu0 0.0
  %4711 = vmatprep.subr.mxu0 0.0
  %4712 = vmatpush1.msra.mxu0 0.0
  %4713 = vmatprep.mubr.f32.mxu0 0.0
  %v4714 = vand.u32 %v4267, 4294901760
  %v4715 = vsub.f32 %v4267, %v4714
  %v4716 = vand.u32 %v4715, 4294901760
  %4717 = vmatmul.mubr.f32.gmra.mrb[0].mxu0 %v4716
  %v4718 = vpop.f32.mrb[0].mxu0
  %v4719 = vadd.f32 %v4613, %v4718
  %v4720 = vpop.f32.mrb[0].mxu0
  %v4721 = vadd.f32 %v4615, %v4720
  %4722 = vmatprep.mubr.f32.mxu0 0.0
  %v4723 = vand.u32 %v4270, 4294901760
  %v4724 = vsub.f32 %v4270, %v4723
  %v4725 = vand.u32 %v4724, 4294901760
  %4726 = vmatmul.mubr.f32.gmra.mrb[0].mxu0 %v4725
  %v4727 = vpop.f32.mrb[0].mxu0
  %v4728 = vadd.f32 %v4621, %v4727
  %v4729 = vpop.f32.mrb[0].mxu0
  %v4730 = vadd.f32 %v4623, %v4729
  %4731 = vmatprep.mubr.f32.mxu0 0.0
  %v4732 = vand.u32 %v4273, 4294901760
  %v4733 = vsub.f32 %v4273, %v4732
  %v4734 = vand.u32 %v4733, 4294901760
  %4735 = vmatmul.mubr.f32.gmra.mrb[0].mxu0 %v4734
  %v4736 = vpop.f32.mrb[0].mxu0
  %v4737 = vadd.f32 %v4629, %v4736
  %v4738 = vpop.f32.mrb[0].mxu0
  %v4739 = vadd.f32 %v4631, %v4738
  %4740 = vmatprep.mubr.f32.mxu0 0.0
  %v4741 = vand.u32 %v4276, 4294901760
  %v4742 = vsub.f32 %v4276, %v4741
  %v4743 = vand.u32 %v4742, 4294901760
  %4744 = vmatmul.mubr.f32.gmra.mrb[0].mxu0 %v4743
  %v4745 = vpop.f32.mrb[0].mxu0
  %v4746 = vadd.f32 %v4637, %v4745
  %v4747 = vpop.f32.mrb[0].mxu0
  %v4748 = vadd.f32 %v4639, %v4747
  %4749 = vdwg.mxu0
  %v4750 = vand.u32 %v4216, 4294901760
  %v4751 = vsub.f32 %v4216, %v4750
  %v4752 = vand.u32 %v4751, 4294901760
  %4753 = vmatprep.subr.mxu0 %v4752
  %v4754 = vand.u32 %v4192, 4294901760
  %v4755 = vsub.f32 %v4192, %v4754
  %v4756 = vand.u32 %v4755, 4294901760
  %4757 = vmatpush1.msra.mxu0 %v4756
  %v4758 = vand.u32 %v4222, 4294901760
  %v4759 = vsub.f32 %v4222, %v4758
  %v4760 = vand.u32 %v4759, 4294901760
  %4761 = vmatprep.subr.mxu0 %v4760
  %v4762 = vand.u32 %v4198, 4294901760
  %v4763 = vsub.f32 %v4198, %v4762
  %v4764 = vand.u32 %v4763, 4294901760
  %4765 = vmatpush1.msra.mxu0 %v4764
  %v4766 = vand.u32 %v4228, 4294901760
  %v4767 = vsub.f32 %v4228, %v4766
  %v4768 = vand.u32 %v4767, 4294901760
  %4769 = vmatprep.subr.mxu0 %v4768
  %v4770 = vand.u32 %v4204, 4294901760
  %v4771 = vsub.f32 %v4204, %v4770
  %v4772 = vand.u32 %v4771, 4294901760
  %4773 = vmatpush1.msra.mxu0 %v4772
  %v4774 = vand.u32 %v4234, 4294901760
  %v4775 = vsub.f32 %v4234, %v4774
  %v4776 = vand.u32 %v4775, 4294901760
  %4777 = vmatprep.subr.mxu0 %v4776
  %v4778 = vand.u32 %v4210, 4294901760
  %v4779 = vsub.f32 %v4210, %v4778
  %v4780 = vand.u32 %v4779, 4294901760
  %4781 = vmatpush1.msra.mxu0 %v4780
  %4782 = vmatprep.subr.mxu0 0.0
  %4783 = vmatpush1.msra.mxu0 0.0
  %4784 = vmatprep.subr.mxu0 0.0
  %4785 = vmatpush1.msra.mxu0 0.0
  %4786 = vmatprep.subr.mxu0 0.0
  %4787 = vmatpush1.msra.mxu0 0.0
  %4788 = vmatprep.subr.mxu0 0.0
  %4789 = vmatpush1.msra.mxu0 0.0
  %4790 = vmatprep.subr.mxu0 0.0
  %4791 = vmatpush1.msra.mxu0 0.0
  %4792 = vmatprep.subr.mxu0 0.0
  %4793 = vmatpush1.msra.mxu0 0.0
  %4794 = vmatprep.subr.mxu0 0.0
  %4795 = vmatpush1.msra.mxu0 0.0
  %4796 = vmatprep.subr.mxu0 0.0
  %4797 = vmatpush1.msra.mxu0 0.0
  %4798 = vmatprep.subr.mxu0 0.0
  %4799 = vmatpush1.msra.mxu0 0.0
  %4800 = vmatprep.subr.mxu0 0.0
  %4801 = vmatpush1.msra.mxu0 0.0
  %4802 = vmatprep.subr.mxu0 0.0
  %4803 = vmatpush1.msra.mxu0 0.0
  %4804 = vmatprep.subr.mxu0 0.0
  %4805 = vmatpush1.msra.mxu0 0.0
  %4806 = vmatprep.subr.mxu0 0.0
  %4807 = vmatpush1.msra.mxu0 0.0
  %4808 = vmatprep.subr.mxu0 0.0
  %4809 = vmatpush1.msra.mxu0 0.0
  %4810 = vmatprep.subr.mxu0 0.0
  %4811 = vmatpush1.msra.mxu0 0.0
  %4812 = vmatprep.subr.mxu0 0.0
  %4813 = vmatpush1.msra.mxu0 0.0
  %4814 = vmatprep.subr.mxu0 0.0
  %4815 = vmatpush1.msra.mxu0 0.0
  %4816 = vmatprep.subr.mxu0 0.0
  %4817 = vmatpush1.msra.mxu0 0.0
  %4818 = vmatprep.subr.mxu0 0.0
  %4819 = vmatpush1.msra.mxu0 0.0
  %4820 = vmatprep.subr.mxu0 0.0
  %4821 = vmatpush1.msra.mxu0 0.0
  %4822 = vmatprep.subr.mxu0 0.0
  %4823 = vmatpush1.msra.mxu0 0.0
  %4824 = vmatprep.subr.mxu0 0.0
  %4825 = vmatpush1.msra.mxu0 0.0
  %4826 = vmatprep.subr.mxu0 0.0
  %4827 = vmatpush1.msra.mxu0 0.0
  %4828 = vmatprep.subr.mxu0 0.0
  %4829 = vmatpush1.msra.mxu0 0.0
  %4830 = vmatprep.subr.mxu0 0.0
  %4831 = vmatpush1.msra.mxu0 0.0
  %4832 = vmatprep.subr.mxu0 0.0
  %4833 = vmatpush1.msra.mxu0 0.0
  %4834 = vmatprep.subr.mxu0 0.0
  %4835 = vmatpush1.msra.mxu0 0.0
  %4836 = vmatprep.subr.mxu0 0.0
  %4837 = vmatpush1.msra.mxu0 0.0
  %4838 = vmatprep.mubr.f32.mxu0 0.0
  %v4839 = vand.u32 %v4267, 4294901760
  %4840 = vmatmul.mubr.f32.gmra.mrb[0].mxu0 %v4839
  %v4841 = vpop.f32.mrb[0].mxu0
  %v4842 = vadd.f32 %v4719, %v4841
  %v4843 = vpop.f32.mrb[0].mxu0
  %v4844 = vadd.f32 %v4721, %v4843
  %4845 = vmatprep.mubr.f32.mxu0 0.0
  %v4846 = vand.u32 %v4270, 4294901760
  %4847 = vmatmul.mubr.f32.gmra.mrb[0].mxu0 %v4846
  %v4848 = vpop.f32.mrb[0].mxu0
  %v4849 = vadd.f32 %v4728, %v4848
  %v4850 = vpop.f32.mrb[0].mxu0
  %v4851 = vadd.f32 %v4730, %v4850
  %4852 = vmatprep.mubr.f32.mxu0 0.0
  %v4853 = vand.u32 %v4273, 4294901760
  %4854 = vmatmul.mubr.f32.gmra.mrb[0].mxu0 %v4853
  %v4855 = vpop.f32.mrb[0].mxu0
  %v4856 = vadd.f32 %v4737, %v4855
  %v4857 = vpop.f32.mrb[0].mxu0
  %v4858 = vadd.f32 %v4739, %v4857
  %4859 = vmatprep.mubr.f32.mxu0 0.0
  %v4860 = vand.u32 %v4276, 4294901760
  %4861 = vmatmul.mubr.f32.gmra.mrb[0].mxu0 %v4860
  %v4862 = vpop.f32.mrb[0].mxu0
  %v4863 = vadd.f32 %v4746, %v4862
  %v4864 = vpop.f32.mrb[0].mxu0
  %v4865 = vadd.f32 %v4748, %v4864
  %4866 = vdwg.mxu0
  %v4867 = vand.u32 %v4216, 4294901760
  %4868 = vmatprep.subr.mxu0 %v4867
  %v4869 = vand.u32 %v4192, 4294901760
  %4870 = vmatpush1.msra.mxu0 %v4869
  %v4871 = vand.u32 %v4222, 4294901760
  %4872 = vmatprep.subr.mxu0 %v4871
  %v4873 = vand.u32 %v4198, 4294901760
  %4874 = vmatpush1.msra.mxu0 %v4873
  %v4875 = vand.u32 %v4228, 4294901760
  %4876 = vmatprep.subr.mxu0 %v4875
  %v4877 = vand.u32 %v4204, 4294901760
  %4878 = vmatpush1.msra.mxu0 %v4877
  %v4879 = vand.u32 %v4234, 4294901760
  %4880 = vmatprep.subr.mxu0 %v4879
  %v4881 = vand.u32 %v4210, 4294901760
  %4882 = vmatpush1.msra.mxu0 %v4881
  %4883 = vmatprep.subr.mxu0 0.0
  %4884 = vmatpush1.msra.mxu0 0.0
  %4885 = vmatprep.subr.mxu0 0.0
  %4886 = vmatpush1.msra.mxu0 0.0
  %4887 = vmatprep.subr.mxu0 0.0
  %4888 = vmatpush1.msra.mxu0 0.0
  %4889 = vmatprep.subr.mxu0 0.0
  %4890 = vmatpush1.msra.mxu0 0.0
  %4891 = vmatprep.subr.mxu0 0.0
  %4892 = vmatpush1.msra.mxu0 0.0
  %4893 = vmatprep.subr.mxu0 0.0
  %4894 = vmatpush1.msra.mxu0 0.0
  %4895 = vmatprep.subr.mxu0 0.0
  %4896 = vmatpush1.msra.mxu0 0.0
  %4897 = vmatprep.subr.mxu0 0.0
  %4898 = vmatpush1.msra.mxu0 0.0
  %4899 = vmatprep.subr.mxu0 0.0
  %4900 = vmatpush1.msra.mxu0 0.0
  %4901 = vmatprep.subr.mxu0 0.0
  %4902 = vmatpush1.msra.mxu0 0.0
  %4903 = vmatprep.subr.mxu0 0.0
  %4904 = vmatpush1.msra.mxu0 0.0
  %4905 = vmatprep.subr.mxu0 0.0
  %4906 = vmatpush1.msra.mxu0 0.0
  %4907 = vmatprep.subr.mxu0 0.0
  %4908 = vmatpush1.msra.mxu0 0.0
  %4909 = vmatprep.subr.mxu0 0.0
  %4910 = vmatpush1.msra.mxu0 0.0
  %4911 = vmatprep.subr.mxu0 0.0
  %4912 = vmatpush1.msra.mxu0 0.0
  %4913 = vmatprep.subr.mxu0 0.0
  %4914 = vmatpush1.msra.mxu0 0.0
  %4915 = vmatprep.subr.mxu0 0.0
  %4916 = vmatpush1.msra.mxu0 0.0
  %4917 = vmatprep.subr.mxu0 0.0
  %4918 = vmatpush1.msra.mxu0 0.0
  %4919 = vmatprep.subr.mxu0 0.0
  %4920 = vmatpush1.msra.mxu0 0.0
  %4921 = vmatprep.subr.mxu0 0.0
  %4922 = vmatpush1.msra.mxu0 0.0
  %4923 = vmatprep.subr.mxu0 0.0
  %4924 = vmatpush1.msra.mxu0 0.0
  %4925 = vmatprep.subr.mxu0 0.0
  %4926 = vmatpush1.msra.mxu0 0.0
  %4927 = vmatprep.subr.mxu0 0.0
  %4928 = vmatpush1.msra.mxu0 0.0
  %4929 = vmatprep.subr.mxu0 0.0
  %4930 = vmatpush1.msra.mxu0 0.0
  %4931 = vmatprep.subr.mxu0 0.0
  %4932 = vmatpush1.msra.mxu0 0.0
  %4933 = vmatprep.subr.mxu0 0.0
  %4934 = vmatpush1.msra.mxu0 0.0
  %4935 = vmatprep.subr.mxu0 0.0
  %4936 = vmatpush1.msra.mxu0 0.0
  %4937 = vmatprep.subr.mxu0 0.0
  %4938 = vmatpush1.msra.mxu0 0.0
  %4939 = vmatprep.mubr.f32.mxu0 0.0
  %v4940 = vand.u32 %v4267, 4294901760
  %4941 = vmatmul.mubr.f32.gmra.mrb[0].mxu0 %v4940
  %v4942 = vpop.f32.mrb[0].mxu0
  %v4943 = vadd.f32 %v4842, %v4942
  %v4944 = vpop.f32.mrb[0].mxu0
  %v4945 = vadd.f32 %v4844, %v4944
  %4946 = vmatprep.mubr.f32.mxu0 0.0
  %v4947 = vand.u32 %v4270, 4294901760
  %4948 = vmatmul.mubr.f32.gmra.mrb[0].mxu0 %v4947
  %v4949 = vpop.f32.mrb[0].mxu0
  %v4950 = vadd.f32 %v4849, %v4949
  %v4951 = vpop.f32.mrb[0].mxu0
  %v4952 = vadd.f32 %v4851, %v4951
  %4953 = vmatprep.mubr.f32.mxu0 0.0
  %v4954 = vand.u32 %v4273, 4294901760
  %4955 = vmatmul.mubr.f32.gmra.mrb[0].mxu0 %v4954
  %v4956 = vpop.f32.mrb[0].mxu0
  %v4957 = vadd.f32 %v4856, %v4956
  %v4958 = vpop.f32.mrb[0].mxu0
  %v4959 = vadd.f32 %v4858, %v4958
  %4960 = vmatprep.mubr.f32.mxu0 0.0
  %v4961 = vand.u32 %v4276, 4294901760
  %4962 = vmatmul.mubr.f32.gmra.mrb[0].mxu0 %v4961
  %v4963 = vpop.f32.mrb[0].mxu0
  %v4964 = vadd.f32 %v4863, %v4963
  %v4965 = vpop.f32.mrb[0].mxu0
  %v4966 = vadd.f32 %v4865, %v4965
  %4967 = vdwg.mxu0
  %v4968 = vadd.f32 %v4943, %v38
  %v4969 = vadd.f32 %v4950, %v39
  %v4970 = vadd.f32 %v4957, %v40
  %v4971 = vadd.f32 %v4964, %v41
  %v4972 = vmul.f32 %v4968, 0.70710677
  %v4973 = vmul.f32 %v4969, 0.70710677
  %v4974 = vmul.f32 %v4970, 0.70710677
  %v4975 = vmul.f32 %v4971, 0.70710677
  %4976 = vst [vmem:[%s11] sm:$0xff] %v4972
  %4977 = vst [vmem:[%s11 + $0x8] sm:$0xff] %v4973
  %4978 = vst [vmem:[%s11 + $0x10] sm:$0xff] %v4974
  %4979 = vst [vmem:[%s11 + $0x18] sm:$0xff] %v4975
  %v4980 = vadd.f32 %v4945, %v42
  %v4981 = vadd.f32 %v4952, %v43
  %v4982 = vadd.f32 %v4959, %v44
  %v4983 = vadd.f32 %v4966, %v45
  %v4984 = vmul.f32 %v4980, 0.70710677
  %v4985 = vmul.f32 %v4981, 0.70710677
  %v4986 = vmul.f32 %v4982, 0.70710677
  %v4987 = vmul.f32 %v4983, 0.70710677
  %4988 = vst [vmem:[%s11 + $0x20] sm:$0xff] %v4984
  %4989 = vst [vmem:[%s11 + $0x28] sm:$0xff] %v4985
  %4990 = vst [vmem:[%s11 + $0x30] sm:$0xff] %v4986
  %4991 = vst [vmem:[%s11 + $0x38] sm:$0xff] %v4987
  // Predicated region
  $region46: #{attn_block_forward.1} parent=0 // pred_check
    _
  $region47: #{attn_block_forward.1} parent=0 // pred_check_branch
    %4993 = sbr.rel (0) target = $region49
  $region48: #{attn_block_forward.1} parent=0 // pred_region
    _
  $region49: #{attn_block_forward.1} parent=0 // pred_fallthru
    _
  // Predicated region
  $region50: #{attn_block_forward.1} parent=0 // pred_check
    _
  $region51: #{attn_block_forward.1} parent=0 // pred_check_branch
    %4995 = sbr.rel (0) target = $region53
  $region52: #{attn_block_forward.1} parent=0 // pred_region
    _
  $region53: #{attn_block_forward.1} parent=0 // pred_fallthru
    _

</llo_original>
